<compile_context>
chip_gen: v7x
topology: tpu7x:2x2x1
jax: 0.10.0
libtpu: 0.0.40
codegen_flags: <defaults>
</compile_context>

<pallas_src>
import jax
import jax.numpy as jnp
import numpy as np
from jax.experimental import pallas as pl
from jax.experimental.pallas import tpu as pltpu


# ---------------------------------------------------------------------------
# Fused forward kernel
# ---------------------------------------------------------------------------
def _policy_fused_kernel(xs_ref, w1_ref, b1_ref, w2_ref, b2_ref,
                         w3_ref, b3_ref, w4_ref, b4_ref, o_ref):
    f32 = jnp.float32
    xs = xs_ref[...]                       # (tb, 40, 24, 16): 4 parity planes x 10 rows
    tb = xs.shape[0]
    w1 = w1_ref[...]                       # (64, 16)   conv1, kernel layout
    b1 = b1_ref[...]                       # (1, 16)
    w2 = w2_ref[...]                       # (256, 32)  conv2, kernel layout
    b2 = b2_ref[...]                       # (1, 32)

    # ---- conv1: 8x8 / stride-4 on 80x80 == 2x2 / stride-1 on the 4x4 space-to-depth grid.
    # Patches are built per output-(row,col)-parity class (so conv2's stride-2 reads become
    # contiguous slices), then all four classes are run through ONE GEMM.
    patches = []
    for PR in (0, 1):
        for PC in (0, 1):
            taps = []
            for a in (0, 1):
                rp, rs = (PR + a) % 2, (PR + a) // 2
                for b in (0, 1):
                    cp, cs = (PC + b) % 2, (PC + b) // 2
                    row0 = (2 * rp + cp) * 10 + rs          # plane * 10 + row offset
                    taps.append(xs[:, row0:row0 + 9, cs:cs + 16, :])    # (tb,9,16,16)
            patches.append(jnp.concatenate(taps, axis=-1))             # (tb,9,16,64)
    p1 = jnp.stack(patches, axis=0).reshape(4 * tb * 9 * 16, 64)       # (4*tb*144, 64)
    c1 = jnp.dot(p1, w1, preferred_element_type=f32) + b1
    a1 = jnp.maximum(c1, 0.0).reshape(4, tb, 9, 16, 16)     # index by 2*PR + PC

    # ---- conv2: 4x4 / stride-2 over the (18x18 used part of the) conv1 output.
    taps2 = []
    for kh in range(4):
        for kw in range(4):
            src = a1[2 * (kh % 2) + (kw % 2)]                                 # (tb,9,16,16)
            taps2.append(src[:, kh // 2:kh // 2 + 8, kw // 2:kw // 2 + 8, :])  # (tb,8,8,16)
    p2 = jnp.concatenate(taps2, axis=-1)                                       # (tb,8,8,256)
    a2 = jnp.dot(p2.reshape(tb * 64, 256), w2, preferred_element_type=f32) + b2
    a2 = jnp.maximum(a2, 0.0).reshape(tb, 8, 8, 32)                            # (tb,8,8,32)

    # ---- flatten to (h, w, c) feature order via minor-dim concats (fc1 rows pre-permuted).
    rows = jnp.concatenate([a2[:, :, j, :] for j in range(8)], axis=-1)       # (tb,8,256)
    flat = jnp.concatenate([rows[:, i, :] for i in range(8)], axis=-1)        # (tb,2048)

    # ---- fc1 + ReLU, fc2 (padded to 128 lanes), masked softmax over the 3 real classes.
    h1 = jnp.dot(flat, w3_ref[...], preferred_element_type=f32) + b3_ref[...]
    h1 = jnp.maximum(h1, 0.0)                                                 # (tb,128)
    logits = jnp.dot(h1, w4_ref[...], preferred_element_type=f32) + b4_ref[...]
    lane = jax.lax.broadcasted_iota(jnp.int32, logits.shape, 1)
    logits = jnp.where(lane < 3, logits, jnp.float32(-1e30))
    logits = logits - jnp.max(logits, axis=-1, keepdims=True)
    e = jnp.exp(logits)
    inv = pl.reciprocal(jnp.sum(e, axis=-1, keepdims=True), approx=True)
    o_ref[...] = (e * inv).astype(o_ref.dtype)


# ---------------------------------------------------------------------------
# Host-side one-time weight re-layout (replaces runtime NCHW<->NHWC shuttles)
# ---------------------------------------------------------------------------
def prepare_params(p):
    w1 = jnp.asarray(p["conv1_w"], jnp.float32)                 # (16,1,8,8) OIHW
    # kernel feature order: f = 32*a + 16*b + 4*si + sj  with ki=4a+si, kj=4b+sj
    w1k = (w1.reshape(16, 2, 4, 2, 4).transpose(0, 1, 3, 2, 4)
             .reshape(16, 64).T)                                # (64,16)
    b1k = jnp.asarray(p["conv1_b"], jnp.float32).reshape(1, 16)

    w2 = jnp.asarray(p["conv2_w"], jnp.float32)                 # (32,16,4,4) OIHW
    w2k = w2.transpose(2, 3, 1, 0).reshape(256, 32)             # f2 = (4kh+kw)*16 + c
    b2k = jnp.asarray(p["conv2_b"], jnp.float32).reshape(1, 32)

    w3 = jnp.asarray(p["fc1_w"], jnp.float32)                   # (2048,128), rows (c,h,w)
    w3k = (w3.reshape(32, 8, 8, 128).transpose(1, 2, 0, 3)
             .reshape(2048, 128))                               # rows (h,w,c)
    b3k = jnp.asarray(p["fc1_b"], jnp.float32).reshape(1, 128)

    w4 = jnp.asarray(p["fc2_w"], jnp.float32)                   # (128,3)
    w4k = jnp.zeros((128, 128), jnp.float32).at[:, :3].set(w4)  # lane-padded logits
    b4k = jnp.zeros((1, 128), jnp.float32).at[0, :3].set(
        jnp.asarray(p["fc2_b"], jnp.float32))
    return {"w1": w1k, "b1": b1k, "w2": w2k, "b2": b2k,
            "w3": w3k, "b3": b3k, "w4": w4k, "b4": b4k}


# ---------------------------------------------------------------------------
# Input preprocessing: 4x4 space-to-depth, split by conv1-output parity class.
# Layout-only transform of the raw input (no im2col blowup through HBM).
# ---------------------------------------------------------------------------
def _space_to_depth_parity(x):
    x = jnp.asarray(x, jnp.float32).reshape(-1, 80, 80)
    B = x.shape[0]
    x7 = x.reshape(B, 10, 2, 4, 10, 2, 4)                # (b, i, pr, si, j, pc, sj)
    xs = x7.transpose(2, 5, 0, 1, 4, 3, 6)               # (pr, pc, b, i, j, si, sj)
    xs = xs.reshape(4, B, 10, 10, 16).transpose(1, 0, 2, 3, 4)   # (B, plane, i, j, s)
    xs = xs.reshape(B, 40, 10, 16)                       # merge (plane, i) -> 40
    # pad j: 10 -> 24 so in-kernel 16-wide column windows are in-bounds & 8-aligned
    return jnp.pad(xs, ((0, 0), (0, 0), (0, 14), (0, 0)))


def _pick_batch_tile(B):
    # Prefer a larger tile (bigger M for fc1/fc2 GEMMs, fewer grid steps) while staying
    # ~10 MB of VMEM per step; tile must be a multiple of 8 (f32 sublanes) or the whole batch.
    for tb in (32, 16, 8):
        if B % tb == 0:
            return tb
    return B


# ---------------------------------------------------------------------------
# Full forward pass (one pallas_call)
# ---------------------------------------------------------------------------
def policy_forward(x, kparams, *, batch_tile=None):
    xs = _space_to_depth_parity(x)                       # (B, 40, 24, 16)
    B = xs.shape[0]
    tb = _pick_batch_tile(B) if batch_tile is None else batch_tile
    assert B % tb == 0
    grid = (B // tb,)

    def const_spec(shape):
        return pl.BlockSpec(shape, lambda i: (0,) * len(shape))

    in_specs = [
        pl.BlockSpec((tb, 40, 24, 16), lambda i: (i, 0, 0, 0)),
        const_spec((64, 16)), const_spec((1, 16)),
        const_spec((256, 32)), const_spec((1, 32)),
        const_spec((2048, 128)), const_spec((1, 128)),
        const_spec((128, 128)), const_spec((1, 128)),
    ]
    out_spec = pl.BlockSpec((tb, 128), lambda i: (i, 0))

    flops = 2 * B * (4 * 144 * 64 * 16 + 64 * 256 * 32 + 2048 * 128 + 128 * 128)
    bytes_accessed = 4 * (B * (40 * 24 * 16 + 128)
                          + 64 * 16 + 16 + 256 * 32 + 32
                          + 2048 * 128 + 128 + 128 * 128 + 128)

    probs_pad = pl.pallas_call(
        _policy_fused_kernel,
        out_shape=jax.ShapeDtypeStruct((B, 128), jnp.float32),
        grid_spec=pltpu.PrefetchScalarGridSpec(
            num_scalar_prefetch=0,
            grid=grid,
            in_specs=in_specs,
            out_specs=out_spec,
        ),
        compiler_params=pltpu.CompilerParams(
            dimension_semantics=("parallel",),
            vmem_limit_bytes=32 * 1024 * 1024,
        ),
        cost_estimate=pl.CostEstimate(
            flops=flops, transcendentals=B * 128, bytes_accessed=bytes_accessed),
    )(xs, kparams["w1"], kparams["b1"], kparams["w2"], kparams["b2"],
      kparams["w3"], kparams["b3"], kparams["w4"], kparams["b4"])

    return probs_pad[:, :3]                              # lane-padded slab sliced outside


# Pure-JAX reference (same math, original PyTorch-style params, no Pallas).
def policy_forward_ref(x, p):
    x = jnp.asarray(x, jnp.float32).reshape(-1, 1, 80, 80)
    x = jax.lax.conv_general_dilated(x, p["conv1_w"], (4, 4), "VALID",
                                     dimension_numbers=("NCHW", "OIHW", "NCHW"))
    x = jnp.maximum(x + p["conv1_b"][None, :, None, None], 0.0)
    x = jax.lax.conv_general_dilated(x, p["conv2_w"], (2, 2), "VALID",
                                     dimension_numbers=("NCHW", "OIHW", "NCHW"))
    x = jnp.maximum(x + p["conv2_b"][None, :, None, None], 0.0)
    x = x.reshape(x.shape[0], -1)
    h = jnp.maximum(x @ p["fc1_w"] + p["fc1_b"], 0.0)
    return jax.nn.softmax(h @ p["fc2_w"] + p["fc2_b"], axis=-1)


if __name__ == "__main__":
    key = jax.random.PRNGKey(0)
    ks = jax.random.split(key, 10)

    params = {
        # nn.Conv2d(1, 16, kernel_size=8, stride=4): weight (16,1,8,8), bias (16,)
        "conv1_w": 0.05 * jax.random.normal(ks[1], (16, 1, 8, 8), jnp.float32),
        "conv1_b": 0.05 * jax.random.normal(ks[2], (16,), jnp.float32),
        # nn.Conv2d(16, 32, kernel_size=4, stride=2): weight (32,16,4,4), bias (32,)
        "conv2_w": 0.05 * jax.random.normal(ks[3], (32, 16, 4, 4), jnp.float32),
        "conv2_b": 0.05 * jax.random.normal(ks[4], (32,), jnp.float32),
        # nn.Linear(32*8*8, 128): stored transposed (in, out), rows in (c,h,w) order
        "fc1_w": 0.02 * jax.random.normal(ks[5], (32 * 8 * 8, 128), jnp.float32),
        "fc1_b": 0.02 * jax.random.normal(ks[6], (128,), jnp.float32),
        # nn.Linear(128, 3): stored transposed (in, out)
        "fc2_w": 0.05 * jax.random.normal(ks[7], (128, 3), jnp.float32),
        "fc2_b": 0.05 * jax.random.normal(ks[8], (3,), jnp.float32),
    }
    kparams = prepare_params(params)                     # one-time host-side re-layout

    fwd = jax.jit(policy_forward, static_argnames=("batch_tile",))

    # --- small batch (rollout-style), single grid step, tb == B ---
    B = 2
    x = jax.random.normal(ks[0], (B, 1, 80, 80), jnp.float32)
    probs = jax.block_until_ready(fwd(x, kparams))
    assert probs.shape == (B, 3)
    np.testing.assert_allclose(np.asarray(probs).sum(axis=-1), np.ones(B), atol=5e-3)
    ref = jax.block_until_ready(policy_forward_ref(x, params))
    np.testing.assert_allclose(np.asarray(probs), np.asarray(ref), atol=1e-2, rtol=1e-2)

    # --- larger batch (training-style), exercises batch tiling / multi-step grid ---
    B2 = 16
    x2 = jax.random.normal(ks[9], (B2, 1, 80, 80), jnp.float32)
    probs2 = jax.block_until_ready(fwd(x2, kparams, batch_tile=8))
    assert probs2.shape == (B2, 3)
    ref2 = jax.block_until_ready(policy_forward_ref(x2, params))
    np.testing.assert_allclose(np.asarray(probs2), np.asarray(ref2), atol=1e-2, rtol=1e-2)

    print("KERNEL_OK")
</pallas_src>

<mosaic_0001>
module attributes {stable_mosaic.version = 11 : i64} {
  func.func @_policy_fused_kernel(%arg0: i32, %arg1: memref<2x40x24x16xf32, #tpu.memory_space<vmem>>, %arg2: memref<64x16xf32, #tpu.memory_space<vmem>>, %arg3: memref<1x16xf32, #tpu.memory_space<vmem>>, %arg4: memref<256x32xf32, #tpu.memory_space<vmem>>, %arg5: memref<1x32xf32, #tpu.memory_space<vmem>>, %arg6: memref<2048x128xf32, #tpu.memory_space<vmem>>, %arg7: memref<1x128xf32, #tpu.memory_space<vmem>>, %arg8: memref<128x128xf32, #tpu.memory_space<vmem>>, %arg9: memref<1x128xf32, #tpu.memory_space<vmem>>, %arg10: memref<2x128xf32, #tpu.memory_space<vmem>>) attributes {dimension_semantics = [#tpu.dimension_semantics<parallel>], iteration_bounds = array<i64: 1>, scalar_prefetch = 0 : i64, scratch_operands = 0 : i64, tpu.core_type = #tpu.core_type<tc>, window_params = [{transform_indices = @transform_0, window_bounds = array<i64: 2, 40, 24, 16>}, {pipeline_mode = #tpu.pipeline_mode<synchronous>, transform_indices = @transform_1, window_bounds = array<i64: 64, 16>}, {pipeline_mode = #tpu.pipeline_mode<synchronous>, transform_indices = @transform_2, window_bounds = array<i64: 1, 16>}, {pipeline_mode = #tpu.pipeline_mode<synchronous>, transform_indices = @transform_3, window_bounds = array<i64: 256, 32>}, {pipeline_mode = #tpu.pipeline_mode<synchronous>, transform_indices = @transform_4, window_bounds = array<i64: 1, 32>}, {pipeline_mode = #tpu.pipeline_mode<synchronous>, transform_indices = @transform_5, window_bounds = array<i64: 2048, 128>}, {pipeline_mode = #tpu.pipeline_mode<synchronous>, transform_indices = @transform_6, window_bounds = array<i64: 1, 128>}, {pipeline_mode = #tpu.pipeline_mode<synchronous>, transform_indices = @transform_7, window_bounds = array<i64: 128, 128>}, {pipeline_mode = #tpu.pipeline_mode<synchronous>, transform_indices = @transform_8, window_bounds = array<i64: 1, 128>}, {transform_indices = @transform_9, window_bounds = array<i64: 2, 128>}]} {
    %c0 = arith.constant 0 : index
    %c0_0 = arith.constant 0 : index
    %c0_1 = arith.constant 0 : index
    %c0_2 = arith.constant 0 : index
    %0 = vector.load %arg1[%c0, %c0_0, %c0_1, %c0_2] : memref<2x40x24x16xf32, #tpu.memory_space<vmem>>, vector<2x40x24x16xf32>
    %c0_3 = arith.constant 0 : index
    %c0_4 = arith.constant 0 : index
    %1 = vector.load %arg2[%c0_3, %c0_4] : memref<64x16xf32, #tpu.memory_space<vmem>>, vector<64x16xf32>
    %c0_5 = arith.constant 0 : index
    %c0_6 = arith.constant 0 : index
    %2 = vector.load %arg3[%c0_5, %c0_6] : memref<1x16xf32, #tpu.memory_space<vmem>>, vector<1x16xf32>
    %c0_7 = arith.constant 0 : index
    %c0_8 = arith.constant 0 : index
    %3 = vector.load %arg4[%c0_7, %c0_8] : memref<256x32xf32, #tpu.memory_space<vmem>>, vector<256x32xf32>
    %c0_9 = arith.constant 0 : index
    %c0_10 = arith.constant 0 : index
    %4 = vector.load %arg5[%c0_9, %c0_10] : memref<1x32xf32, #tpu.memory_space<vmem>>, vector<1x32xf32>
    %5 = vector.extract_strided_slice %0 {offsets = [0, 0, 0, 0], sizes = [2, 9, 16, 16], strides = [1, 1, 1, 1]} : vector<2x40x24x16xf32> to vector<2x9x16x16xf32>
    %6 = vector.extract_strided_slice %0 {offsets = [0, 10, 0, 0], sizes = [2, 9, 16, 16], strides = [1, 1, 1, 1]} : vector<2x40x24x16xf32> to vector<2x9x16x16xf32>
    %7 = vector.extract_strided_slice %0 {offsets = [0, 20, 0, 0], sizes = [2, 9, 16, 16], strides = [1, 1, 1, 1]} : vector<2x40x24x16xf32> to vector<2x9x16x16xf32>
    %8 = vector.extract_strided_slice %0 {offsets = [0, 30, 0, 0], sizes = [2, 9, 16, 16], strides = [1, 1, 1, 1]} : vector<2x40x24x16xf32> to vector<2x9x16x16xf32>
    %9 = tpu.concatenate %5, %6, %7, %8 in 3 : vector<2x9x16x16xf32>, vector<2x9x16x16xf32>, vector<2x9x16x16xf32>, vector<2x9x16x16xf32> -> vector<2x9x16x64xf32>
    %10 = vector.extract_strided_slice %0 {offsets = [0, 10, 0, 0], sizes = [2, 9, 16, 16], strides = [1, 1, 1, 1]} : vector<2x40x24x16xf32> to vector<2x9x16x16xf32>
    %11 = vector.extract_strided_slice %0 {offsets = [0, 0, 1, 0], sizes = [2, 9, 16, 16], strides = [1, 1, 1, 1]} : vector<2x40x24x16xf32> to vector<2x9x16x16xf32>
    %12 = vector.extract_strided_slice %0 {offsets = [0, 30, 0, 0], sizes = [2, 9, 16, 16], strides = [1, 1, 1, 1]} : vector<2x40x24x16xf32> to vector<2x9x16x16xf32>
    %13 = vector.extract_strided_slice %0 {offsets = [0, 20, 1, 0], sizes = [2, 9, 16, 16], strides = [1, 1, 1, 1]} : vector<2x40x24x16xf32> to vector<2x9x16x16xf32>
    %14 = tpu.concatenate %10, %11, %12, %13 in 3 : vector<2x9x16x16xf32>, vector<2x9x16x16xf32>, vector<2x9x16x16xf32>, vector<2x9x16x16xf32> -> vector<2x9x16x64xf32>
    %15 = vector.extract_strided_slice %0 {offsets = [0, 20, 0, 0], sizes = [2, 9, 16, 16], strides = [1, 1, 1, 1]} : vector<2x40x24x16xf32> to vector<2x9x16x16xf32>
    %16 = vector.extract_strided_slice %0 {offsets = [0, 30, 0, 0], sizes = [2, 9, 16, 16], strides = [1, 1, 1, 1]} : vector<2x40x24x16xf32> to vector<2x9x16x16xf32>
    %17 = vector.extract_strided_slice %0 {offsets = [0, 1, 0, 0], sizes = [2, 9, 16, 16], strides = [1, 1, 1, 1]} : vector<2x40x24x16xf32> to vector<2x9x16x16xf32>
    %18 = vector.extract_strided_slice %0 {offsets = [0, 11, 0, 0], sizes = [2, 9, 16, 16], strides = [1, 1, 1, 1]} : vector<2x40x24x16xf32> to vector<2x9x16x16xf32>
    %19 = tpu.concatenate %15, %16, %17, %18 in 3 : vector<2x9x16x16xf32>, vector<2x9x16x16xf32>, vector<2x9x16x16xf32>, vector<2x9x16x16xf32> -> vector<2x9x16x64xf32>
    %20 = vector.extract_strided_slice %0 {offsets = [0, 30, 0, 0], sizes = [2, 9, 16, 16], strides = [1, 1, 1, 1]} : vector<2x40x24x16xf32> to vector<2x9x16x16xf32>
    %21 = vector.extract_strided_slice %0 {offsets = [0, 20, 1, 0], sizes = [2, 9, 16, 16], strides = [1, 1, 1, 1]} : vector<2x40x24x16xf32> to vector<2x9x16x16xf32>
    %22 = vector.extract_strided_slice %0 {offsets = [0, 11, 0, 0], sizes = [2, 9, 16, 16], strides = [1, 1, 1, 1]} : vector<2x40x24x16xf32> to vector<2x9x16x16xf32>
    %23 = vector.extract_strided_slice %0 {offsets = [0, 1, 1, 0], sizes = [2, 9, 16, 16], strides = [1, 1, 1, 1]} : vector<2x40x24x16xf32> to vector<2x9x16x16xf32>
    %24 = tpu.concatenate %20, %21, %22, %23 in 3 : vector<2x9x16x16xf32>, vector<2x9x16x16xf32>, vector<2x9x16x16xf32>, vector<2x9x16x16xf32> -> vector<2x9x16x64xf32>
    %25 = vector.shape_cast %9 : vector<2x9x16x64xf32> to vector<1x2x9x16x64xf32>
    %26 = vector.shape_cast %14 : vector<2x9x16x64xf32> to vector<1x2x9x16x64xf32>
    %27 = vector.shape_cast %19 : vector<2x9x16x64xf32> to vector<1x2x9x16x64xf32>
    %28 = vector.shape_cast %24 : vector<2x9x16x64xf32> to vector<1x2x9x16x64xf32>
    %29 = tpu.concatenate %25, %26, %27, %28 in 0 : vector<1x2x9x16x64xf32>, vector<1x2x9x16x64xf32>, vector<1x2x9x16x64xf32>, vector<1x2x9x16x64xf32> -> vector<4x2x9x16x64xf32>
    %30 = vector.shape_cast %29 : vector<4x2x9x16x64xf32> to vector<1152x64xf32>
    %cst = arith.constant dense<0.000000e+00> : vector<1152x16xf32>
    %31 = tpu.matmul %30, %1, %cst {dimension_numbers = #tpu.dot_dimension_numbers<[1], [0], [0], [1], [0, 0, 1, 1], [], []>} : vector<1152x64xf32>, vector<64x16xf32>, vector<1152x16xf32> -> vector<1152x16xf32>
    %32 = vector.broadcast %2 : vector<1x16xf32> to vector<1152x16xf32>
    %33 = arith.addf %31, %32 : vector<1152x16xf32>
    %cst_11 = arith.constant 0.000000e+00 : f32
    %34 = vector.broadcast %cst_11 : f32 to vector<1152x16xf32>
    %35 = arith.maximumf %33, %34 : vector<1152x16xf32>
    %36 = vector.shape_cast %35 : vector<1152x16xf32> to vector<4x2x9x16x16xf32>
    %37 = vector.extract_strided_slice %36 {offsets = [0, 0, 0, 0, 0], sizes = [1, 2, 9, 16, 16], strides = [1, 1, 1, 1, 1]} : vector<4x2x9x16x16xf32> to vector<1x2x9x16x16xf32>
    %38 = vector.shape_cast %37 : vector<1x2x9x16x16xf32> to vector<2x9x16x16xf32>
    %39 = vector.extract_strided_slice %38 {offsets = [0, 0, 0, 0], sizes = [2, 8, 8, 16], strides = [1, 1, 1, 1]} : vector<2x9x16x16xf32> to vector<2x8x8x16xf32>
    %40 = vector.extract_strided_slice %36 {offsets = [1, 0, 0, 0, 0], sizes = [1, 2, 9, 16, 16], strides = [1, 1, 1, 1, 1]} : vector<4x2x9x16x16xf32> to vector<1x2x9x16x16xf32>
    %41 = vector.shape_cast %40 : vector<1x2x9x16x16xf32> to vector<2x9x16x16xf32>
    %42 = vector.extract_strided_slice %41 {offsets = [0, 0, 0, 0], sizes = [2, 8, 8, 16], strides = [1, 1, 1, 1]} : vector<2x9x16x16xf32> to vector<2x8x8x16xf32>
    %43 = vector.extract_strided_slice %36 {offsets = [0, 0, 0, 0, 0], sizes = [1, 2, 9, 16, 16], strides = [1, 1, 1, 1, 1]} : vector<4x2x9x16x16xf32> to vector<1x2x9x16x16xf32>
    %44 = vector.shape_cast %43 : vector<1x2x9x16x16xf32> to vector<2x9x16x16xf32>
    %45 = vector.extract_strided_slice %44 {offsets = [0, 0, 1, 0], sizes = [2, 8, 8, 16], strides = [1, 1, 1, 1]} : vector<2x9x16x16xf32> to vector<2x8x8x16xf32>
    %46 = vector.extract_strided_slice %36 {offsets = [1, 0, 0, 0, 0], sizes = [1, 2, 9, 16, 16], strides = [1, 1, 1, 1, 1]} : vector<4x2x9x16x16xf32> to vector<1x2x9x16x16xf32>
    %47 = vector.shape_cast %46 : vector<1x2x9x16x16xf32> to vector<2x9x16x16xf32>
    %48 = vector.extract_strided_slice %47 {offsets = [0, 0, 1, 0], sizes = [2, 8, 8, 16], strides = [1, 1, 1, 1]} : vector<2x9x16x16xf32> to vector<2x8x8x16xf32>
    %49 = vector.extract_strided_slice %36 {offsets = [2, 0, 0, 0, 0], sizes = [1, 2, 9, 16, 16], strides = [1, 1, 1, 1, 1]} : vector<4x2x9x16x16xf32> to vector<1x2x9x16x16xf32>
    %50 = vector.shape_cast %49 : vector<1x2x9x16x16xf32> to vector<2x9x16x16xf32>
    %51 = vector.extract_strided_slice %50 {offsets = [0, 0, 0, 0], sizes = [2, 8, 8, 16], strides = [1, 1, 1, 1]} : vector<2x9x16x16xf32> to vector<2x8x8x16xf32>
    %52 = vector.extract_strided_slice %36 {offsets = [3, 0, 0, 0, 0], sizes = [1, 2, 9, 16, 16], strides = [1, 1, 1, 1, 1]} : vector<4x2x9x16x16xf32> to vector<1x2x9x16x16xf32>
    %53 = vector.shape_cast %52 : vector<1x2x9x16x16xf32> to vector<2x9x16x16xf32>
    %54 = vector.extract_strided_slice %53 {offsets = [0, 0, 0, 0], sizes = [2, 8, 8, 16], strides = [1, 1, 1, 1]} : vector<2x9x16x16xf32> to vector<2x8x8x16xf32>
    %55 = vector.extract_strided_slice %36 {offsets = [2, 0, 0, 0, 0], sizes = [1, 2, 9, 16, 16], strides = [1, 1, 1, 1, 1]} : vector<4x2x9x16x16xf32> to vector<1x2x9x16x16xf32>
    %56 = vector.shape_cast %55 : vector<1x2x9x16x16xf32> to vector<2x9x16x16xf32>
    %57 = vector.extract_strided_slice %56 {offsets = [0, 0, 1, 0], sizes = [2, 8, 8, 16], strides = [1, 1, 1, 1]} : vector<2x9x16x16xf32> to vector<2x8x8x16xf32>
    %58 = vector.extract_strided_slice %36 {offsets = [3, 0, 0, 0, 0], sizes = [1, 2, 9, 16, 16], strides = [1, 1, 1, 1, 1]} : vector<4x2x9x16x16xf32> to vector<1x2x9x16x16xf32>
    %59 = vector.shape_cast %58 : vector<1x2x9x16x16xf32> to vector<2x9x16x16xf32>
    %60 = vector.extract_strided_slice %59 {offsets = [0, 0, 1, 0], sizes = [2, 8, 8, 16], strides = [1, 1, 1, 1]} : vector<2x9x16x16xf32> to vector<2x8x8x16xf32>
    %61 = vector.extract_strided_slice %36 {offsets = [0, 0, 0, 0, 0], sizes = [1, 2, 9, 16, 16], strides = [1, 1, 1, 1, 1]} : vector<4x2x9x16x16xf32> to vector<1x2x9x16x16xf32>
    %62 = vector.shape_cast %61 : vector<1x2x9x16x16xf32> to vector<2x9x16x16xf32>
    %63 = vector.extract_strided_slice %62 {offsets = [0, 1, 0, 0], sizes = [2, 8, 8, 16], strides = [1, 1, 1, 1]} : vector<2x9x16x16xf32> to vector<2x8x8x16xf32>
    %64 = vector.extract_strided_slice %36 {offsets = [1, 0, 0, 0, 0], sizes = [1, 2, 9, 16, 16], strides = [1, 1, 1, 1, 1]} : vector<4x2x9x16x16xf32> to vector<1x2x9x16x16xf32>
    %65 = vector.shape_cast %64 : vector<1x2x9x16x16xf32> to vector<2x9x16x16xf32>
    %66 = vector.extract_strided_slice %65 {offsets = [0, 1, 0, 0], sizes = [2, 8, 8, 16], strides = [1, 1, 1, 1]} : vector<2x9x16x16xf32> to vector<2x8x8x16xf32>
    %67 = vector.extract_strided_slice %36 {offsets = [0, 0, 0, 0, 0], sizes = [1, 2, 9, 16, 16], strides = [1, 1, 1, 1, 1]} : vector<4x2x9x16x16xf32> to vector<1x2x9x16x16xf32>
    %68 = vector.shape_cast %67 : vector<1x2x9x16x16xf32> to vector<2x9x16x16xf32>
    %69 = vector.extract_strided_slice %68 {offsets = [0, 1, 1, 0], sizes = [2, 8, 8, 16], strides = [1, 1, 1, 1]} : vector<2x9x16x16xf32> to vector<2x8x8x16xf32>
    %70 = vector.extract_strided_slice %36 {offsets = [1, 0, 0, 0, 0], sizes = [1, 2, 9, 16, 16], strides = [1, 1, 1, 1, 1]} : vector<4x2x9x16x16xf32> to vector<1x2x9x16x16xf32>
    %71 = vector.shape_cast %70 : vector<1x2x9x16x16xf32> to vector<2x9x16x16xf32>
    %72 = vector.extract_strided_slice %71 {offsets = [0, 1, 1, 0], sizes = [2, 8, 8, 16], strides = [1, 1, 1, 1]} : vector<2x9x16x16xf32> to vector<2x8x8x16xf32>
    %73 = vector.extract_strided_slice %36 {offsets = [2, 0, 0, 0, 0], sizes = [1, 2, 9, 16, 16], strides = [1, 1, 1, 1, 1]} : vector<4x2x9x16x16xf32> to vector<1x2x9x16x16xf32>
    %74 = vector.shape_cast %73 : vector<1x2x9x16x16xf32> to vector<2x9x16x16xf32>
    %75 = vector.extract_strided_slice %74 {offsets = [0, 1, 0, 0], sizes = [2, 8, 8, 16], strides = [1, 1, 1, 1]} : vector<2x9x16x16xf32> to vector<2x8x8x16xf32>
    %76 = vector.extract_strided_slice %36 {offsets = [3, 0, 0, 0, 0], sizes = [1, 2, 9, 16, 16], strides = [1, 1, 1, 1, 1]} : vector<4x2x9x16x16xf32> to vector<1x2x9x16x16xf32>
    %77 = vector.shape_cast %76 : vector<1x2x9x16x16xf32> to vector<2x9x16x16xf32>
    %78 = vector.extract_strided_slice %77 {offsets = [0, 1, 0, 0], sizes = [2, 8, 8, 16], strides = [1, 1, 1, 1]} : vector<2x9x16x16xf32> to vector<2x8x8x16xf32>
    %79 = vector.extract_strided_slice %36 {offsets = [2, 0, 0, 0, 0], sizes = [1, 2, 9, 16, 16], strides = [1, 1, 1, 1, 1]} : vector<4x2x9x16x16xf32> to vector<1x2x9x16x16xf32>
    %80 = vector.shape_cast %79 : vector<1x2x9x16x16xf32> to vector<2x9x16x16xf32>
    %81 = vector.extract_strided_slice %80 {offsets = [0, 1, 1, 0], sizes = [2, 8, 8, 16], strides = [1, 1, 1, 1]} : vector<2x9x16x16xf32> to vector<2x8x8x16xf32>
    %82 = vector.extract_strided_slice %36 {offsets = [3, 0, 0, 0, 0], sizes = [1, 2, 9, 16, 16], strides = [1, 1, 1, 1, 1]} : vector<4x2x9x16x16xf32> to vector<1x2x9x16x16xf32>
    %83 = vector.shape_cast %82 : vector<1x2x9x16x16xf32> to vector<2x9x16x16xf32>
    %84 = vector.extract_strided_slice %83 {offsets = [0, 1, 1, 0], sizes = [2, 8, 8, 16], strides = [1, 1, 1, 1]} : vector<2x9x16x16xf32> to vector<2x8x8x16xf32>
    %85 = tpu.concatenate %39, %42, %45, %48, %51, %54, %57, %60, %63, %66, %69, %72, %75, %78, %81, %84 in 3 : vector<2x8x8x16xf32>, vector<2x8x8x16xf32>, vector<2x8x8x16xf32>, vector<2x8x8x16xf32>, vector<2x8x8x16xf32>, vector<2x8x8x16xf32>, vector<2x8x8x16xf32>, vector<2x8x8x16xf32>, vector<2x8x8x16xf32>, vector<2x8x8x16xf32>, vector<2x8x8x16xf32>, vector<2x8x8x16xf32>, vector<2x8x8x16xf32>, vector<2x8x8x16xf32>, vector<2x8x8x16xf32>, vector<2x8x8x16xf32> -> vector<2x8x8x256xf32>
    %86 = vector.shape_cast %85 : vector<2x8x8x256xf32> to vector<128x256xf32>
    %cst_12 = arith.constant dense<0.000000e+00> : vector<128x32xf32>
    %87 = tpu.matmul %86, %3, %cst_12 {dimension_numbers = #tpu.dot_dimension_numbers<[1], [0], [0], [1], [0, 0, 1, 1], [], []>} : vector<128x256xf32>, vector<256x32xf32>, vector<128x32xf32> -> vector<128x32xf32>
    %88 = vector.broadcast %4 : vector<1x32xf32> to vector<128x32xf32>
    %89 = arith.addf %87, %88 : vector<128x32xf32>
    %cst_13 = arith.constant 0.000000e+00 : f32
    %90 = vector.broadcast %cst_13 : f32 to vector<128x32xf32>
    %91 = arith.maximumf %89, %90 : vector<128x32xf32>
    %92 = vector.shape_cast %91 : vector<128x32xf32> to vector<2x8x8x32xf32>
    %93 = vector.extract_strided_slice %92 {offsets = [0, 0, 0, 0], sizes = [2, 8, 1, 32], strides = [1, 1, 1, 1]} : vector<2x8x8x32xf32> to vector<2x8x1x32xf32>
    %94 = vector.shape_cast %93 : vector<2x8x1x32xf32> to vector<2x8x32xf32>
    %95 = vector.extract_strided_slice %92 {offsets = [0, 0, 1, 0], sizes = [2, 8, 1, 32], strides = [1, 1, 1, 1]} : vector<2x8x8x32xf32> to vector<2x8x1x32xf32>
    %96 = vector.shape_cast %95 : vector<2x8x1x32xf32> to vector<2x8x32xf32>
    %97 = vector.extract_strided_slice %92 {offsets = [0, 0, 2, 0], sizes = [2, 8, 1, 32], strides = [1, 1, 1, 1]} : vector<2x8x8x32xf32> to vector<2x8x1x32xf32>
    %98 = vector.shape_cast %97 : vector<2x8x1x32xf32> to vector<2x8x32xf32>
    %99 = vector.extract_strided_slice %92 {offsets = [0, 0, 3, 0], sizes = [2, 8, 1, 32], strides = [1, 1, 1, 1]} : vector<2x8x8x32xf32> to vector<2x8x1x32xf32>
    %100 = vector.shape_cast %99 : vector<2x8x1x32xf32> to vector<2x8x32xf32>
    %101 = vector.extract_strided_slice %92 {offsets = [0, 0, 4, 0], sizes = [2, 8, 1, 32], strides = [1, 1, 1, 1]} : vector<2x8x8x32xf32> to vector<2x8x1x32xf32>
    %102 = vector.shape_cast %101 : vector<2x8x1x32xf32> to vector<2x8x32xf32>
    %103 = vector.extract_strided_slice %92 {offsets = [0, 0, 5, 0], sizes = [2, 8, 1, 32], strides = [1, 1, 1, 1]} : vector<2x8x8x32xf32> to vector<2x8x1x32xf32>
    %104 = vector.shape_cast %103 : vector<2x8x1x32xf32> to vector<2x8x32xf32>
    %105 = vector.extract_strided_slice %92 {offsets = [0, 0, 6, 0], sizes = [2, 8, 1, 32], strides = [1, 1, 1, 1]} : vector<2x8x8x32xf32> to vector<2x8x1x32xf32>
    %106 = vector.shape_cast %105 : vector<2x8x1x32xf32> to vector<2x8x32xf32>
    %107 = vector.extract_strided_slice %92 {offsets = [0, 0, 7, 0], sizes = [2, 8, 1, 32], strides = [1, 1, 1, 1]} : vector<2x8x8x32xf32> to vector<2x8x1x32xf32>
    %108 = vector.shape_cast %107 : vector<2x8x1x32xf32> to vector<2x8x32xf32>
    %109 = tpu.concatenate %94, %96, %98, %100, %102, %104, %106, %108 in 2 : vector<2x8x32xf32>, vector<2x8x32xf32>, vector<2x8x32xf32>, vector<2x8x32xf32>, vector<2x8x32xf32>, vector<2x8x32xf32>, vector<2x8x32xf32>, vector<2x8x32xf32> -> vector<2x8x256xf32>
    %110 = vector.extract_strided_slice %109 {offsets = [0, 0, 0], sizes = [2, 1, 256], strides = [1, 1, 1]} : vector<2x8x256xf32> to vector<2x1x256xf32>
    %111 = vector.shape_cast %110 : vector<2x1x256xf32> to vector<2x256xf32>
    %112 = vector.extract_strided_slice %109 {offsets = [0, 1, 0], sizes = [2, 1, 256], strides = [1, 1, 1]} : vector<2x8x256xf32> to vector<2x1x256xf32>
    %113 = vector.shape_cast %112 : vector<2x1x256xf32> to vector<2x256xf32>
    %114 = vector.extract_strided_slice %109 {offsets = [0, 2, 0], sizes = [2, 1, 256], strides = [1, 1, 1]} : vector<2x8x256xf32> to vector<2x1x256xf32>
    %115 = vector.shape_cast %114 : vector<2x1x256xf32> to vector<2x256xf32>
    %116 = vector.extract_strided_slice %109 {offsets = [0, 3, 0], sizes = [2, 1, 256], strides = [1, 1, 1]} : vector<2x8x256xf32> to vector<2x1x256xf32>
    %117 = vector.shape_cast %116 : vector<2x1x256xf32> to vector<2x256xf32>
    %118 = vector.extract_strided_slice %109 {offsets = [0, 4, 0], sizes = [2, 1, 256], strides = [1, 1, 1]} : vector<2x8x256xf32> to vector<2x1x256xf32>
    %119 = vector.shape_cast %118 : vector<2x1x256xf32> to vector<2x256xf32>
    %120 = vector.extract_strided_slice %109 {offsets = [0, 5, 0], sizes = [2, 1, 256], strides = [1, 1, 1]} : vector<2x8x256xf32> to vector<2x1x256xf32>
    %121 = vector.shape_cast %120 : vector<2x1x256xf32> to vector<2x256xf32>
    %122 = vector.extract_strided_slice %109 {offsets = [0, 6, 0], sizes = [2, 1, 256], strides = [1, 1, 1]} : vector<2x8x256xf32> to vector<2x1x256xf32>
    %123 = vector.shape_cast %122 : vector<2x1x256xf32> to vector<2x256xf32>
    %124 = vector.extract_strided_slice %109 {offsets = [0, 7, 0], sizes = [2, 1, 256], strides = [1, 1, 1]} : vector<2x8x256xf32> to vector<2x1x256xf32>
    %125 = vector.shape_cast %124 : vector<2x1x256xf32> to vector<2x256xf32>
    %126 = tpu.concatenate %111, %113, %115, %117, %119, %121, %123, %125 in 1 : vector<2x256xf32>, vector<2x256xf32>, vector<2x256xf32>, vector<2x256xf32>, vector<2x256xf32>, vector<2x256xf32>, vector<2x256xf32>, vector<2x256xf32> -> vector<2x2048xf32>
    %c0_14 = arith.constant 0 : index
    %c0_15 = arith.constant 0 : index
    %127 = vector.load %arg6[%c0_14, %c0_15] : memref<2048x128xf32, #tpu.memory_space<vmem>>, vector<2048x128xf32>
    %cst_16 = arith.constant dense<0.000000e+00> : vector<2x128xf32>
    %128 = tpu.matmul %126, %127, %cst_16 {dimension_numbers = #tpu.dot_dimension_numbers<[1], [0], [0], [1], [0, 0, 1, 1], [], []>} : vector<2x2048xf32>, vector<2048x128xf32>, vector<2x128xf32> -> vector<2x128xf32>
    %c0_17 = arith.constant 0 : index
    %c0_18 = arith.constant 0 : index
    %129 = vector.load %arg7[%c0_17, %c0_18] : memref<1x128xf32, #tpu.memory_space<vmem>>, vector<1x128xf32>
    %130 = vector.broadcast %129 : vector<1x128xf32> to vector<2x128xf32>
    %131 = arith.addf %128, %130 : vector<2x128xf32>
    %cst_19 = arith.constant 0.000000e+00 : f32
    %132 = vector.broadcast %cst_19 : f32 to vector<2x128xf32>
    %133 = arith.maximumf %131, %132 : vector<2x128xf32>
    %c0_20 = arith.constant 0 : index
    %c0_21 = arith.constant 0 : index
    %134 = vector.load %arg8[%c0_20, %c0_21] : memref<128x128xf32, #tpu.memory_space<vmem>>, vector<128x128xf32>
    %cst_22 = arith.constant dense<0.000000e+00> : vector<2x128xf32>
    %135 = tpu.matmul %133, %134, %cst_22 {dimension_numbers = #tpu.dot_dimension_numbers<[1], [0], [0], [1], [0, 0, 1, 1], [], []>} : vector<2x128xf32>, vector<128x128xf32>, vector<2x128xf32> -> vector<2x128xf32>
    %c0_23 = arith.constant 0 : index
    %c0_24 = arith.constant 0 : index
    %136 = vector.load %arg9[%c0_23, %c0_24] : memref<1x128xf32, #tpu.memory_space<vmem>>, vector<1x128xf32>
    %137 = vector.broadcast %136 : vector<1x128xf32> to vector<2x128xf32>
    %138 = arith.addf %135, %137 : vector<2x128xf32>
    %139 = tpu.iota {dimensions = array<i32: 1>} : vector<2x128xi32>
    %c3_i32 = arith.constant 3 : i32
    %140 = vector.broadcast %c3_i32 : i32 to vector<2x128xi32>
    %141 = arith.cmpi slt, %139, %140 : vector<2x128xi32>
    %cst_25 = arith.constant -1.000000e+30 : f32
    %142 = vector.broadcast %cst_25 : f32 to vector<2x128xf32>
    %143 = arith.select %141, %138, %142 : vector<2x128xi1>, vector<2x128xf32>
    %cst_26 = arith.constant dense<0xFF800000> : vector<2xf32>
    %144 = vector.multi_reduction <maximumf>, %143, %cst_26 [1] : vector<2x128xf32> to vector<2xf32>
    %145 = vector.shape_cast %144 : vector<2xf32> to vector<2x1xf32>
    %146 = vector.broadcast %145 : vector<2x1xf32> to vector<2x128xf32>
    %147 = arith.subf %143, %146 : vector<2x128xf32>
    %148 = math.exp %147 : vector<2x128xf32>
    %cst_27 = arith.constant dense<0.000000e+00> : vector<2xf32>
    %149 = vector.multi_reduction <add>, %148, %cst_27 [1] : vector<2x128xf32> to vector<2xf32>
    %150 = vector.shape_cast %149 : vector<2xf32> to vector<2x1xf32>
    %151 = tpu.reciprocal %150 {approx = true} : vector<2x1xf32> -> vector<2x1xf32>
    %152 = vector.broadcast %151 : vector<2x1xf32> to vector<2x128xf32>
    %153 = arith.mulf %148, %152 : vector<2x128xf32>
    %c0_28 = arith.constant 0 : index
    %c0_29 = arith.constant 0 : index
    %154 = vector.load %arg10[%c0_28, %c0_29] : memref<2x128xf32, #tpu.memory_space<vmem>>, vector<2x128xf32>
    tpu.vector_store %arg10[%c0_28, %c0_29], %153 {strides = array<i32>} : memref<2x128xf32, #tpu.memory_space<vmem>>, vector<2x128xf32>,
    return
  }
  func.func @transform_0(%arg0: i32) -> (i32, i32, i32, i32) {
    %c0_i32 = arith.constant 0 : i32
    %c0_i32_0 = arith.constant 0 : i32
    %c0_i32_1 = arith.constant 0 : i32
    %c0_i32_2 = arith.constant 0 : i32
    return %arg0, %c0_i32, %c0_i32_0, %c0_i32_1 : i32, i32, i32, i32
  }
  func.func @transform_1(%arg0: i32) -> (i32, i32) {
    %c0_i32 = arith.constant 0 : i32
    %c0_i32_0 = arith.constant 0 : i32
    %c0_i32_1 = arith.constant 0 : i32
    return %c0_i32, %c0_i32_0 : i32, i32
  }
  func.func @transform_2(%arg0: i32) -> (i32, i32) {
    %c0_i32 = arith.constant 0 : i32
    %c0_i32_0 = arith.constant 0 : i32
    %c0_i32_1 = arith.constant 0 : i32
    return %c0_i32, %c0_i32_0 : i32, i32
  }
  func.func @transform_3(%arg0: i32) -> (i32, i32) {
    %c0_i32 = arith.constant 0 : i32
    %c0_i32_0 = arith.constant 0 : i32
    %c0_i32_1 = arith.constant 0 : i32
    return %c0_i32, %c0_i32_0 : i32, i32
  }
  func.func @transform_4(%arg0: i32) -> (i32, i32) {
    %c0_i32 = arith.constant 0 : i32
    %c0_i32_0 = arith.constant 0 : i32
    %c0_i32_1 = arith.constant 0 : i32
    return %c0_i32, %c0_i32_0 : i32, i32
  }
  func.func @transform_5(%arg0: i32) -> (i32, i32) {
    %c0_i32 = arith.constant 0 : i32
    %c0_i32_0 = arith.constant 0 : i32
    %c0_i32_1 = arith.constant 0 : i32
    return %c0_i32, %c0_i32_0 : i32, i32
  }
  func.func @transform_6(%arg0: i32) -> (i32, i32) {
    %c0_i32 = arith.constant 0 : i32
    %c0_i32_0 = arith.constant 0 : i32
    %c0_i32_1 = arith.constant 0 : i32
    return %c0_i32, %c0_i32_0 : i32, i32
  }
  func.func @transform_7(%arg0: i32) -> (i32, i32) {
    %c0_i32 = arith.constant 0 : i32
    %c0_i32_0 = arith.constant 0 : i32
    %c0_i32_1 = arith.constant 0 : i32
    return %c0_i32, %c0_i32_0 : i32, i32
  }
  func.func @transform_8(%arg0: i32) -> (i32, i32) {
    %c0_i32 = arith.constant 0 : i32
    %c0_i32_0 = arith.constant 0 : i32
    %c0_i32_1 = arith.constant 0 : i32
    return %c0_i32, %c0_i32_0 : i32, i32
  }
  func.func @transform_9(%arg0: i32) -> (i32, i32) {
    %c0_i32 = arith.constant 0 : i32
    %c0_i32_0 = arith.constant 0 : i32
    return %arg0, %c0_i32 : i32, i32
  }
}

</mosaic_0001>

<llo_original>
// kernel: policy_forward.1
$region0: #{policy_forward.1}
  #allocation0 [shape = 'u32[]', space=smem, size = 0x4, offset = 0x4, fixed_abs, tag = 'smem constant byte address 0x4 - core index']
  #allocation1 [shape = 'u32[144,128]{1,0:T(1,128)}', space=vmem, size = 0x12000, scoped, tag = 'internal scratch']
  %s0 = inlined_call_operand.vmem [shape: f32[2,40,24,16], index: 0, kind: input, shape index: {}]
  %s1 = inlined_call_operand.vmem [shape: f32[64,16], index: 1, kind: input, shape index: {}]
  %s2 = inlined_call_operand.vmem [shape: f32[1,16], index: 2, kind: input, shape index: {}]
  %s3 = inlined_call_operand.vmem [shape: f32[256,32], index: 3, kind: input, shape index: {}]
  %s4 = inlined_call_operand.vmem [shape: f32[1,32], index: 4, kind: input, shape index: {}]
  %s5 = inlined_call_operand.vmem [shape: f32[2048,128], index: 5, kind: input, shape index: {}]
  %s6 = inlined_call_operand.vmem [shape: f32[1,128], index: 6, kind: input, shape index: {}]
  %s7 = inlined_call_operand.vmem [shape: f32[128,128], index: 7, kind: input, shape index: {}]
  %s8 = inlined_call_operand.vmem [shape: f32[1,128], index: 8, kind: input, shape index: {}]
  %s9 = inlined_call_operand.hbm [shape: f32[2,128], index: 9, kind: output, shape index: {}]
  %s10 = sld [smem:[#allocation0]]
  $region46: #{policy_forward.1} parent=0
    _
  %s12 = ssub.s32 1, %s10
  %s13 = scalar_select 0, %s12, %s10
  $region1: #{policy_forward.1} parent=0
    #allocation2 [shape = 'u8[1024]{0}', space=vmem, size = 0x400, scoped, tag = 'output window, operand 0, single buffered']
    #allocation3 [shape = 's32[1]{0}', space=sflag, size = 0x4, scoped, tag = 'scoped memory for policy_forward.1']
    %14 = vsyncpa [#allocation3], 0
    // Predicated region
    $region2: #{policy_forward.1} parent=1 // pred_check
      _
    $region3: #{policy_forward.1} parent=1 // pred_check_branch
      %16 = sbr.rel (0) target = $region5
    $region4: #{policy_forward.1} parent=1 // pred_region
      _
    $region5: #{policy_forward.1} parent=1 // pred_fallthru
      _
    // Predicated region
    $region6: #{policy_forward.1} parent=1 // pred_check
      _
    $region7: #{policy_forward.1} parent=1 // pred_check_branch
      %18 = sbr.rel (0) target = $region9
    $region8: #{policy_forward.1} parent=1 // pred_region
      _
    $region9: #{policy_forward.1} parent=1 // pred_fallthru
      _
    // Predicated region
    $region10: #{policy_forward.1} parent=1 // pred_check
      _
    $region11: #{policy_forward.1} parent=1 // pred_check_branch
      %20 = sbr.rel (0) target = $region13
    $region12: #{policy_forward.1} parent=1 // pred_region
      _
    $region13: #{policy_forward.1} parent=1 // pred_fallthru
      _
    // Predicated region
    $region14: #{policy_forward.1} parent=1 // pred_check
      _
    $region15: #{policy_forward.1} parent=1 // pred_check_branch
      %22 = sbr.rel (0) target = $region17
    $region16: #{policy_forward.1} parent=1 // pred_region
      _
    $region17: #{policy_forward.1} parent=1 // pred_fallthru
      _
    // Predicated region
    $region18: #{policy_forward.1} parent=1 // pred_check
      _
    $region19: #{policy_forward.1} parent=1 // pred_check_branch
      %24 = sbr.rel (0) target = $region21
    $region20: #{policy_forward.1} parent=1 // pred_region
      _
    $region21: #{policy_forward.1} parent=1 // pred_fallthru
      _
    // Predicated region
    $region22: #{policy_forward.1} parent=1 // pred_check
      _
    $region23: #{policy_forward.1} parent=1 // pred_check_branch
      %26 = sbr.rel (0) target = $region25
    $region24: #{policy_forward.1} parent=1 // pred_region
      _
    $region25: #{policy_forward.1} parent=1 // pred_fallthru
      _
    // Predicated region
    $region26: #{policy_forward.1} parent=1 // pred_check
      _
    $region27: #{policy_forward.1} parent=1 // pred_check_branch
      %28 = sbr.rel (0) target = $region29
    $region28: #{policy_forward.1} parent=1 // pred_region
      _
    $region29: #{policy_forward.1} parent=1 // pred_fallthru
      _
    // Predicated region
    $region30: #{policy_forward.1} parent=1 // pred_check
      _
    $region31: #{policy_forward.1} parent=1 // pred_check_branch
      %30 = sbr.rel (0) target = $region33
    $region32: #{policy_forward.1} parent=1 // pred_region
      _
    $region33: #{policy_forward.1} parent=1 // pred_fallthru
      _
    // Predicated region
    $region34: #{policy_forward.1} parent=1 // pred_check
      _
    $region35: #{policy_forward.1} parent=1 // pred_check_branch
      %32 = sbr.rel (0) target = $region37
    $region36: #{policy_forward.1} parent=1 // pred_region
      _
    $region37: #{policy_forward.1} parent=1 // pred_fallthru
      _
    %v33 = vld [vmem:[%s0] sm:$0xff]
    %v34 = vld [vmem:[%s0 + $0x8] sm:$0xff]
    %v35 = vld [vmem:[%s0 + $0x10] sm:$0xff]
    %v36 = vld [vmem:[%s0 + $0x18] sm:$0xff]
    %v37 = vld [vmem:[%s0 + $0x20] sm:$0xff]
    %v38 = vld [vmem:[%s0 + $0x28] sm:$0xff]
    %v39 = vld [vmem:[%s0 + $0x30] sm:$0xff]
    %v40 = vld [vmem:[%s0 + $0x38] sm:$0xff]
    %v41 = vld [vmem:[%s0 + $0x40] sm:$0xff]
    %v42 = vld [vmem:[%s0 + $0x48] sm:$0xff]
    %v43 = vld [vmem:[%s0 + $0x50] sm:$0xff]
    %v44 = vld [vmem:[%s0 + $0x58] sm:$0xff]
    %v45 = vld [vmem:[%s0 + $0x60] sm:$0xff]
    %v46 = vld [vmem:[%s0 + $0x68] sm:$0xff]
    %v47 = vld [vmem:[%s0 + $0x70] sm:$0xff]
    %v48 = vld [vmem:[%s0 + $0x78] sm:$0xff]
    %v49 = vld [vmem:[%s0 + $0x80] sm:$0xff]
    %v50 = vld [vmem:[%s0 + $0x88] sm:$0xff]
    %v51 = vld [vmem:[%s0 + $0x90] sm:$0xff]
    %v52 = vld [vmem:[%s0 + $0x98] sm:$0xff]
    %v53 = vld [vmem:[%s0 + $0xa0] sm:$0xff]
    %v54 = vld [vmem:[%s0 + $0xa8] sm:$0xff]
    %v55 = vld [vmem:[%s0 + $0xb0] sm:$0xff]
    %v56 = vld [vmem:[%s0 + $0xb8] sm:$0xff]
    %v57 = vld [vmem:[%s0 + $0xc0] sm:$0xff]
    %v58 = vld [vmem:[%s0 + $0xc8] sm:$0xff]
    %v59 = vld [vmem:[%s0 + $0xd0] sm:$0xff]
    %v60 = vld [vmem:[%s0 + $0xd8] sm:$0xff]
    %v61 = vld [vmem:[%s0 + $0xe0] sm:$0xff]
    %v62 = vld [vmem:[%s0 + $0xe8] sm:$0xff]
    %v63 = vld [vmem:[%s0 + $0xf0] sm:$0xff]
    %v64 = vld [vmem:[%s0 + $0xf8] sm:$0xff]
    %v65 = vld [vmem:[%s0 + $0x108] sm:$0xff]
    %v66 = vld [vmem:[%s0 + $0x110] sm:$0xff]
    %v67 = vld [vmem:[%s0 + $0x120] sm:$0xff]
    %v68 = vld [vmem:[%s0 + $0x128] sm:$0xff]
    %v69 = vld [vmem:[%s0 + $0x138] sm:$0xff]
    %v70 = vld [vmem:[%s0 + $0x140] sm:$0xff]
    %v71 = vld [vmem:[%s0 + $0x150] sm:$0xff]
    %v72 = vld [vmem:[%s0 + $0x158] sm:$0xff]
    %v73 = vld [vmem:[%s0 + $0x168] sm:$0xff]
    %v74 = vld [vmem:[%s0 + $0x170] sm:$0xff]
    %v75 = vld [vmem:[%s0 + $0x180] sm:$0xff]
    %v76 = vld [vmem:[%s0 + $0x188] sm:$0xff]
    %v77 = vld [vmem:[%s0 + $0x198] sm:$0xff]
    %v78 = vld [vmem:[%s0 + $0x1a0] sm:$0xff]
    %v79 = vld [vmem:[%s0 + $0x1b0] sm:$0xff]
    %v80 = vld [vmem:[%s0 + $0x1b8] sm:$0xff]
    %v81 = vld [vmem:[%s0 + $0x1c8] sm:$0xff]
    %v82 = vld [vmem:[%s0 + $0x1d0] sm:$0xff]
    %v83 = vld [vmem:[%s0 + $0x1e0] sm:$0xff]
    %v84 = vld [vmem:[%s0 + $0x1e8] sm:$0xff]
    %v85 = vld [vmem:[%s0 + $0x1f0] sm:$0xff]
    %v86 = vld [vmem:[%s0 + $0x1f8] sm:$0xff]
    %v87 = vld [vmem:[%s0 + $0x200] sm:$0xff]
    %v88 = vld [vmem:[%s0 + $0x208] sm:$0xff]
    %v89 = vld [vmem:[%s0 + $0x210] sm:$0xff]
    %v90 = vld [vmem:[%s0 + $0x218] sm:$0xff]
    %v91 = vld [vmem:[%s0 + $0x220] sm:$0xff]
    %v92 = vld [vmem:[%s0 + $0x228] sm:$0xff]
    %v93 = vld [vmem:[%s0 + $0x230] sm:$0xff]
    %v94 = vld [vmem:[%s0 + $0x238] sm:$0xff]
    %v95 = vld [vmem:[%s0 + $0x240] sm:$0xff]
    %v96 = vld [vmem:[%s0 + $0x248] sm:$0xff]
    %v97 = vld [vmem:[%s0 + $0x250] sm:$0xff]
    %v98 = vld [vmem:[%s0 + $0x258] sm:$0xff]
    %v99 = vld [vmem:[%s0 + $0x260] sm:$0xff]
    %v100 = vld [vmem:[%s0 + $0x268] sm:$0xff]
    %v101 = vld [vmem:[%s0 + $0x270] sm:$0xff]
    %v102 = vld [vmem:[%s0 + $0x278] sm:$0xff]
    %v103 = vld [vmem:[%s0 + $0x280] sm:$0xff]
    %v104 = vld [vmem:[%s0 + $0x288] sm:$0xff]
    %v105 = vld [vmem:[%s0 + $0x290] sm:$0xff]
    %v106 = vld [vmem:[%s0 + $0x298] sm:$0xff]
    %v107 = vld [vmem:[%s0 + $0x2a0] sm:$0xff]
    %v108 = vld [vmem:[%s0 + $0x2a8] sm:$0xff]
    %v109 = vld [vmem:[%s0 + $0x2b0] sm:$0xff]
    %v110 = vld [vmem:[%s0 + $0x2d0] sm:$0xff]
    %v111 = vld [vmem:[%s0 + $0x2d8] sm:$0xff]
    %v112 = vld [vmem:[%s0 + $0x2e8] sm:$0xff]
    %v113 = vld [vmem:[%s0 + $0x2f0] sm:$0xff]
    %v114 = vld [vmem:[%s0 + $0x300] sm:$0xff]
    %v115 = vld [vmem:[%s0 + $0x308] sm:$0xff]
    %v116 = vld [vmem:[%s0 + $0x318] sm:$0xff]
    %v117 = vld [vmem:[%s0 + $0x320] sm:$0xff]
    %v118 = vld [vmem:[%s0 + $0x330] sm:$0xff]
    %v119 = vld [vmem:[%s0 + $0x338] sm:$0xff]
    %v120 = vld [vmem:[%s0 + $0x348] sm:$0xff]
    %v121 = vld [vmem:[%s0 + $0x350] sm:$0xff]
    %v122 = vld [vmem:[%s0 + $0x360] sm:$0xff]
    %v123 = vld [vmem:[%s0 + $0x368] sm:$0xff]
    %v124 = vld [vmem:[%s0 + $0x378] sm:$0xff]
    %v125 = vld [vmem:[%s0 + $0x380] sm:$0xff]
    %v126 = vld [vmem:[%s0 + $0x390] sm:$0xff]
    %v127 = vld [vmem:[%s0 + $0x398] sm:$0xff]
    %v128 = vld [vmem:[%s0 + $0x3c0] sm:$0xff]
    %v129 = vld [vmem:[%s0 + $0x3c8] sm:$0xff]
    %v130 = vld [vmem:[%s0 + $0x3d0] sm:$0xff]
    %v131 = vld [vmem:[%s0 + $0x3d8] sm:$0xff]
    %v132 = vld [vmem:[%s0 + $0x3e0] sm:$0xff]
    %v133 = vld [vmem:[%s0 + $0x3e8] sm:$0xff]
    %v134 = vld [vmem:[%s0 + $0x3f0] sm:$0xff]
    %v135 = vld [vmem:[%s0 + $0x3f8] sm:$0xff]
    %v136 = vld [vmem:[%s0 + $0x400] sm:$0xff]
    %v137 = vld [vmem:[%s0 + $0x408] sm:$0xff]
    %v138 = vld [vmem:[%s0 + $0x410] sm:$0xff]
    %v139 = vld [vmem:[%s0 + $0x418] sm:$0xff]
    %v140 = vld [vmem:[%s0 + $0x420] sm:$0xff]
    %v141 = vld [vmem:[%s0 + $0x428] sm:$0xff]
    %v142 = vld [vmem:[%s0 + $0x430] sm:$0xff]
    %v143 = vld [vmem:[%s0 + $0x438] sm:$0xff]
    %v144 = vld [vmem:[%s0 + $0x440] sm:$0xff]
    %v145 = vld [vmem:[%s0 + $0x448] sm:$0xff]
    %v146 = vld [vmem:[%s0 + $0x450] sm:$0xff]
    %v147 = vld [vmem:[%s0 + $0x458] sm:$0xff]
    %v148 = vld [vmem:[%s0 + $0x460] sm:$0xff]
    %v149 = vld [vmem:[%s0 + $0x468] sm:$0xff]
    %v150 = vld [vmem:[%s0 + $0x470] sm:$0xff]
    %v151 = vld [vmem:[%s0 + $0x478] sm:$0xff]
    %v152 = vld [vmem:[%s0 + $0x480] sm:$0xff]
    %v153 = vld [vmem:[%s0 + $0x488] sm:$0xff]
    %v154 = vld [vmem:[%s0 + $0x490] sm:$0xff]
    %v155 = vld [vmem:[%s0 + $0x498] sm:$0xff]
    %v156 = vld [vmem:[%s0 + $0x4a0] sm:$0xff]
    %v157 = vld [vmem:[%s0 + $0x4a8] sm:$0xff]
    %v158 = vld [vmem:[%s0 + $0x4b0] sm:$0xff]
    %v159 = vld [vmem:[%s0 + $0x4b8] sm:$0xff]
    %v160 = vld [vmem:[%s0 + $0x4c8] sm:$0xff]
    %v161 = vld [vmem:[%s0 + $0x4d0] sm:$0xff]
    %v162 = vld [vmem:[%s0 + $0x4e0] sm:$0xff]
    %v163 = vld [vmem:[%s0 + $0x4e8] sm:$0xff]
    %v164 = vld [vmem:[%s0 + $0x4f8] sm:$0xff]
    %v165 = vld [vmem:[%s0 + $0x500] sm:$0xff]
    %v166 = vld [vmem:[%s0 + $0x510] sm:$0xff]
    %v167 = vld [vmem:[%s0 + $0x518] sm:$0xff]
    %v168 = vld [vmem:[%s0 + $0x528] sm:$0xff]
    %v169 = vld [vmem:[%s0 + $0x530] sm:$0xff]
    %v170 = vld [vmem:[%s0 + $0x540] sm:$0xff]
    %v171 = vld [vmem:[%s0 + $0x548] sm:$0xff]
    %v172 = vld [vmem:[%s0 + $0x558] sm:$0xff]
    %v173 = vld [vmem:[%s0 + $0x560] sm:$0xff]
    %v174 = vld [vmem:[%s0 + $0x570] sm:$0xff]
    %v175 = vld [vmem:[%s0 + $0x578] sm:$0xff]
    %v176 = vld [vmem:[%s0 + $0x588] sm:$0xff]
    %v177 = vld [vmem:[%s0 + $0x590] sm:$0xff]
    %v178 = vld [vmem:[%s0 + $0x5a0] sm:$0xff]
    %v179 = vld [vmem:[%s0 + $0x5a8] sm:$0xff]
    %v180 = vld [vmem:[%s0 + $0x5b0] sm:$0xff]
    %v181 = vld [vmem:[%s0 + $0x5b8] sm:$0xff]
    %v182 = vld [vmem:[%s0 + $0x5c0] sm:$0xff]
    %v183 = vld [vmem:[%s0 + $0x5c8] sm:$0xff]
    %v184 = vld [vmem:[%s0 + $0x5d0] sm:$0xff]
    %v185 = vld [vmem:[%s0 + $0x5d8] sm:$0xff]
    %v186 = vld [vmem:[%s0 + $0x5e0] sm:$0xff]
    %v187 = vld [vmem:[%s0 + $0x5e8] sm:$0xff]
    %v188 = vld [vmem:[%s0 + $0x5f0] sm:$0xff]
    %v189 = vld [vmem:[%s0 + $0x5f8] sm:$0xff]
    %v190 = vld [vmem:[%s0 + $0x600] sm:$0xff]
    %v191 = vld [vmem:[%s0 + $0x608] sm:$0xff]
    %v192 = vld [vmem:[%s0 + $0x610] sm:$0xff]
    %v193 = vld [vmem:[%s0 + $0x618] sm:$0xff]
    %v194 = vld [vmem:[%s0 + $0x620] sm:$0xff]
    %v195 = vld [vmem:[%s0 + $0x628] sm:$0xff]
    %v196 = vld [vmem:[%s0 + $0x630] sm:$0xff]
    %v197 = vld [vmem:[%s0 + $0x638] sm:$0xff]
    %v198 = vld [vmem:[%s0 + $0x640] sm:$0xff]
    %v199 = vld [vmem:[%s0 + $0x648] sm:$0xff]
    %v200 = vld [vmem:[%s0 + $0x650] sm:$0xff]
    %v201 = vld [vmem:[%s0 + $0x658] sm:$0xff]
    %v202 = vld [vmem:[%s0 + $0x660] sm:$0xff]
    %v203 = vld [vmem:[%s0 + $0x668] sm:$0xff]
    %v204 = vld [vmem:[%s0 + $0x670] sm:$0xff]
    %v205 = vld [vmem:[%s0 + $0x690] sm:$0xff]
    %v206 = vld [vmem:[%s0 + $0x698] sm:$0xff]
    %v207 = vld [vmem:[%s0 + $0x6a8] sm:$0xff]
    %v208 = vld [vmem:[%s0 + $0x6b0] sm:$0xff]
    %v209 = vld [vmem:[%s0 + $0x6c0] sm:$0xff]
    %v210 = vld [vmem:[%s0 + $0x6c8] sm:$0xff]
    %v211 = vld [vmem:[%s0 + $0x6d8] sm:$0xff]
    %v212 = vld [vmem:[%s0 + $0x6e0] sm:$0xff]
    %v213 = vld [vmem:[%s0 + $0x6f0] sm:$0xff]
    %v214 = vld [vmem:[%s0 + $0x6f8] sm:$0xff]
    %v215 = vld [vmem:[%s0 + $0x708] sm:$0xff]
    %v216 = vld [vmem:[%s0 + $0x710] sm:$0xff]
    %v217 = vld [vmem:[%s0 + $0x720] sm:$0xff]
    %v218 = vld [vmem:[%s0 + $0x728] sm:$0xff]
    %v219 = vld [vmem:[%s0 + $0x738] sm:$0xff]
    %v220 = vld [vmem:[%s0 + $0x740] sm:$0xff]
    %v221 = vld [vmem:[%s0 + $0x750] sm:$0xff]
    %v222 = vld [vmem:[%s0 + $0x758] sm:$0xff]
    %v223 = vld [vmem:[%s1] sm:$0xff]
    %v224 = vld [vmem:[%s1 + $0x8] sm:$0xff]
    %v225 = vld [vmem:[%s1 + $0x10] sm:$0xff]
    %v226 = vld [vmem:[%s1 + $0x18] sm:$0xff]
    %v227 = vld [vmem:[%s1 + $0x20] sm:$0xff]
    %v228 = vld [vmem:[%s1 + $0x28] sm:$0xff]
    %v229 = vld [vmem:[%s1 + $0x30] sm:$0xff]
    %v230 = vld [vmem:[%s1 + $0x38] sm:$0xff]
    %v231 = vld [vmem:[%s2] sm:$0x1]
    %v232 = vld [vmem:[%s3] sm:$0xff]
    %v233 = vld [vmem:[%s3 + $0x8] sm:$0xff]
    %v234 = vld [vmem:[%s3 + $0x10] sm:$0xff]
    %v235 = vld [vmem:[%s3 + $0x18] sm:$0xff]
    %v236 = vld [vmem:[%s3 + $0x20] sm:$0xff]
    %v237 = vld [vmem:[%s3 + $0x28] sm:$0xff]
    %v238 = vld [vmem:[%s3 + $0x30] sm:$0xff]
    %v239 = vld [vmem:[%s3 + $0x38] sm:$0xff]
    %v240 = vld [vmem:[%s3 + $0x40] sm:$0xff]
    %v241 = vld [vmem:[%s3 + $0x48] sm:$0xff]
    %v242 = vld [vmem:[%s3 + $0x50] sm:$0xff]
    %v243 = vld [vmem:[%s3 + $0x58] sm:$0xff]
    %v244 = vld [vmem:[%s3 + $0x60] sm:$0xff]
    %v245 = vld [vmem:[%s3 + $0x68] sm:$0xff]
    %v246 = vld [vmem:[%s3 + $0x70] sm:$0xff]
    %v247 = vld [vmem:[%s3 + $0x78] sm:$0xff]
    %v248 = vld [vmem:[%s3 + $0x80] sm:$0xff]
    %v249 = vld [vmem:[%s3 + $0x88] sm:$0xff]
    %v250 = vld [vmem:[%s3 + $0x90] sm:$0xff]
    %v251 = vld [vmem:[%s3 + $0x98] sm:$0xff]
    %v252 = vld [vmem:[%s3 + $0xa0] sm:$0xff]
    %v253 = vld [vmem:[%s3 + $0xa8] sm:$0xff]
    %v254 = vld [vmem:[%s3 + $0xb0] sm:$0xff]
    %v255 = vld [vmem:[%s3 + $0xb8] sm:$0xff]
    %v256 = vld [vmem:[%s3 + $0xc0] sm:$0xff]
    %v257 = vld [vmem:[%s3 + $0xc8] sm:$0xff]
    %v258 = vld [vmem:[%s3 + $0xd0] sm:$0xff]
    %v259 = vld [vmem:[%s3 + $0xd8] sm:$0xff]
    %v260 = vld [vmem:[%s3 + $0xe0] sm:$0xff]
    %v261 = vld [vmem:[%s3 + $0xe8] sm:$0xff]
    %v262 = vld [vmem:[%s3 + $0xf0] sm:$0xff]
    %v263 = vld [vmem:[%s3 + $0xf8] sm:$0xff]
    %v264 = vld [vmem:[%s4] sm:$0x1]
    %301 = vrot.lane.b32.xlu0 %v63, 16
    %v302 = vpop.permute.xlu0 %301
    %303 = vrot.lane.b32.xlu0 %v64, 16
    %v304 = vpop.permute.xlu0 %303
    %305 = vrot.lane.b32.xlu0 %v65, 16
    %v306 = vpop.permute.xlu0 %305
    %307 = vrot.lane.b32.xlu0 %v66, 16
    %v308 = vpop.permute.xlu0 %307
    %309 = vrot.lane.b32.xlu0 %v67, 16
    %v310 = vpop.permute.xlu0 %309
    %311 = vrot.lane.b32.xlu0 %v68, 16
    %v312 = vpop.permute.xlu0 %311
    %313 = vrot.lane.b32.xlu0 %v69, 16
    %v314 = vpop.permute.xlu0 %313
    %315 = vrot.lane.b32.xlu0 %v70, 16
    %v316 = vpop.permute.xlu0 %315
    %317 = vrot.lane.b32.xlu0 %v71, 16
    %v318 = vpop.permute.xlu0 %317
    %319 = vrot.lane.b32.xlu0 %v72, 16
    %v320 = vpop.permute.xlu0 %319
    %321 = vrot.lane.b32.xlu0 %v73, 16
    %v322 = vpop.permute.xlu0 %321
    %323 = vrot.lane.b32.xlu0 %v74, 16
    %v324 = vpop.permute.xlu0 %323
    %325 = vrot.lane.b32.xlu0 %v75, 16
    %v326 = vpop.permute.xlu0 %325
    %327 = vrot.lane.b32.xlu0 %v76, 16
    %v328 = vpop.permute.xlu0 %327
    %329 = vrot.lane.b32.xlu0 %v77, 16
    %v330 = vpop.permute.xlu0 %329
    %331 = vrot.lane.b32.xlu0 %v78, 16
    %v332 = vpop.permute.xlu0 %331
    %333 = vrot.lane.b32.xlu0 %v79, 16
    %v334 = vpop.permute.xlu0 %333
    %335 = vrot.lane.b32.xlu0 %v80, 16
    %v336 = vpop.permute.xlu0 %335
    %337 = vrot.lane.b32.xlu0 %v158, 16
    %v338 = vpop.permute.xlu0 %337
    %339 = vrot.lane.b32.xlu0 %v159, 16
    %v340 = vpop.permute.xlu0 %339
    %341 = vrot.lane.b32.xlu0 %v160, 16
    %v342 = vpop.permute.xlu0 %341
    %343 = vrot.lane.b32.xlu0 %v161, 16
    %v344 = vpop.permute.xlu0 %343
    %345 = vrot.lane.b32.xlu0 %v162, 16
    %v346 = vpop.permute.xlu0 %345
    %347 = vrot.lane.b32.xlu0 %v163, 16
    %v348 = vpop.permute.xlu0 %347
    %349 = vrot.lane.b32.xlu0 %v164, 16
    %v350 = vpop.permute.xlu0 %349
    %351 = vrot.lane.b32.xlu0 %v165, 16
    %v352 = vpop.permute.xlu0 %351
    %353 = vrot.lane.b32.xlu0 %v166, 16
    %v354 = vpop.permute.xlu0 %353
    %355 = vrot.lane.b32.xlu0 %v167, 16
    %v356 = vpop.permute.xlu0 %355
    %357 = vrot.lane.b32.xlu0 %v168, 16
    %v358 = vpop.permute.xlu0 %357
    %359 = vrot.lane.b32.xlu0 %v169, 16
    %v360 = vpop.permute.xlu0 %359
    %361 = vrot.lane.b32.xlu0 %v170, 16
    %v362 = vpop.permute.xlu0 %361
    %363 = vrot.lane.b32.xlu0 %v171, 16
    %v364 = vpop.permute.xlu0 %363
    %365 = vrot.lane.b32.xlu0 %v172, 16
    %v366 = vpop.permute.xlu0 %365
    %367 = vrot.lane.b32.xlu0 %v173, 16
    %v368 = vpop.permute.xlu0 %367
    %369 = vrot.lane.b32.xlu0 %v174, 16
    %v370 = vpop.permute.xlu0 %369
    %371 = vrot.lane.b32.xlu0 %v175, 16
    %v372 = vpop.permute.xlu0 %371
    %445 = vrot.lane.b32.xlu0 %v83, 32
    %v446 = vpop.permute.xlu0 %445
    %447 = vrot.lane.b32.xlu0 %v84, 32
    %v448 = vpop.permute.xlu0 %447
    %449 = vrot.lane.b32.xlu0 %v86, 32
    %v450 = vpop.permute.xlu0 %449
    %451 = vrot.lane.b32.xlu0 %v87, 32
    %v452 = vpop.permute.xlu0 %451
    %453 = vrot.lane.b32.xlu0 %v89, 32
    %v454 = vpop.permute.xlu0 %453
    %455 = vrot.lane.b32.xlu0 %v90, 32
    %v456 = vpop.permute.xlu0 %455
    %457 = vrot.lane.b32.xlu0 %v92, 32
    %v458 = vpop.permute.xlu0 %457
    %459 = vrot.lane.b32.xlu0 %v93, 32
    %v460 = vpop.permute.xlu0 %459
    %461 = vrot.lane.b32.xlu0 %v95, 32
    %v462 = vpop.permute.xlu0 %461
    %463 = vrot.lane.b32.xlu0 %v96, 32
    %v464 = vpop.permute.xlu0 %463
    %465 = vrot.lane.b32.xlu0 %v98, 32
    %v466 = vpop.permute.xlu0 %465
    %467 = vrot.lane.b32.xlu0 %v99, 32
    %v468 = vpop.permute.xlu0 %467
    %469 = vrot.lane.b32.xlu0 %v101, 32
    %v470 = vpop.permute.xlu0 %469
    %471 = vrot.lane.b32.xlu0 %v102, 32
    %v472 = vpop.permute.xlu0 %471
    %473 = vrot.lane.b32.xlu0 %v104, 32
    %v474 = vpop.permute.xlu0 %473
    %475 = vrot.lane.b32.xlu0 %v105, 32
    %v476 = vpop.permute.xlu0 %475
    %477 = vrot.lane.b32.xlu0 %v107, 32
    %v478 = vpop.permute.xlu0 %477
    %479 = vrot.lane.b32.xlu0 %v108, 32
    %v480 = vpop.permute.xlu0 %479
    %481 = vrot.lane.b32.xlu0 %v178, 32
    %v482 = vpop.permute.xlu0 %481
    %483 = vrot.lane.b32.xlu0 %v179, 32
    %v484 = vpop.permute.xlu0 %483
    %485 = vrot.lane.b32.xlu0 %v181, 32
    %v486 = vpop.permute.xlu0 %485
    %487 = vrot.lane.b32.xlu0 %v182, 32
    %v488 = vpop.permute.xlu0 %487
    %489 = vrot.lane.b32.xlu0 %v184, 32
    %v490 = vpop.permute.xlu0 %489
    %491 = vrot.lane.b32.xlu0 %v185, 32
    %v492 = vpop.permute.xlu0 %491
    %493 = vrot.lane.b32.xlu0 %v187, 32
    %v494 = vpop.permute.xlu0 %493
    %495 = vrot.lane.b32.xlu0 %v188, 32
    %v496 = vpop.permute.xlu0 %495
    %497 = vrot.lane.b32.xlu0 %v190, 32
    %v498 = vpop.permute.xlu0 %497
    %499 = vrot.lane.b32.xlu0 %v191, 32
    %v500 = vpop.permute.xlu0 %499
    %501 = vrot.lane.b32.xlu0 %v193, 32
    %v502 = vpop.permute.xlu0 %501
    %503 = vrot.lane.b32.xlu0 %v194, 32
    %v504 = vpop.permute.xlu0 %503
    %505 = vrot.lane.b32.xlu0 %v196, 32
    %v506 = vpop.permute.xlu0 %505
    %507 = vrot.lane.b32.xlu0 %v197, 32
    %v508 = vpop.permute.xlu0 %507
    %509 = vrot.lane.b32.xlu0 %v199, 32
    %v510 = vpop.permute.xlu0 %509
    %511 = vrot.lane.b32.xlu0 %v200, 32
    %v512 = vpop.permute.xlu0 %511
    %513 = vrot.lane.b32.xlu0 %v202, 32
    %v514 = vpop.permute.xlu0 %513
    %515 = vrot.lane.b32.xlu0 %v203, 32
    %v516 = vpop.permute.xlu0 %515
    %589 = vrot.lane.b32.xlu0 %v110, 48
    %v590 = vpop.permute.xlu0 %589
    %591 = vrot.lane.b32.xlu0 %v111, 48
    %v592 = vpop.permute.xlu0 %591
    %593 = vrot.lane.b32.xlu0 %v112, 48
    %v594 = vpop.permute.xlu0 %593
    %595 = vrot.lane.b32.xlu0 %v113, 48
    %v596 = vpop.permute.xlu0 %595
    %597 = vrot.lane.b32.xlu0 %v114, 48
    %v598 = vpop.permute.xlu0 %597
    %599 = vrot.lane.b32.xlu0 %v115, 48
    %v600 = vpop.permute.xlu0 %599
    %601 = vrot.lane.b32.xlu0 %v116, 48
    %v602 = vpop.permute.xlu0 %601
    %603 = vrot.lane.b32.xlu0 %v117, 48
    %v604 = vpop.permute.xlu0 %603
    %605 = vrot.lane.b32.xlu0 %v118, 48
    %v606 = vpop.permute.xlu0 %605
    %607 = vrot.lane.b32.xlu0 %v119, 48
    %v608 = vpop.permute.xlu0 %607
    %609 = vrot.lane.b32.xlu0 %v120, 48
    %v610 = vpop.permute.xlu0 %609
    %611 = vrot.lane.b32.xlu0 %v121, 48
    %v612 = vpop.permute.xlu0 %611
    %613 = vrot.lane.b32.xlu0 %v122, 48
    %v614 = vpop.permute.xlu0 %613
    %615 = vrot.lane.b32.xlu0 %v123, 48
    %v616 = vpop.permute.xlu0 %615
    %617 = vrot.lane.b32.xlu0 %v124, 48
    %v618 = vpop.permute.xlu0 %617
    %619 = vrot.lane.b32.xlu0 %v125, 48
    %v620 = vpop.permute.xlu0 %619
    %621 = vrot.lane.b32.xlu0 %v126, 48
    %v622 = vpop.permute.xlu0 %621
    %623 = vrot.lane.b32.xlu0 %v127, 48
    %v624 = vpop.permute.xlu0 %623
    %625 = vrot.lane.b32.xlu0 %v205, 48
    %v626 = vpop.permute.xlu0 %625
    %627 = vrot.lane.b32.xlu0 %v206, 48
    %v628 = vpop.permute.xlu0 %627
    %629 = vrot.lane.b32.xlu0 %v207, 48
    %v630 = vpop.permute.xlu0 %629
    %631 = vrot.lane.b32.xlu0 %v208, 48
    %v632 = vpop.permute.xlu0 %631
    %633 = vrot.lane.b32.xlu0 %v209, 48
    %v634 = vpop.permute.xlu0 %633
    %635 = vrot.lane.b32.xlu0 %v210, 48
    %v636 = vpop.permute.xlu0 %635
    %637 = vrot.lane.b32.xlu0 %v211, 48
    %v638 = vpop.permute.xlu0 %637
    %639 = vrot.lane.b32.xlu0 %v212, 48
    %v640 = vpop.permute.xlu0 %639
    %641 = vrot.lane.b32.xlu0 %v213, 48
    %v642 = vpop.permute.xlu0 %641
    %643 = vrot.lane.b32.xlu0 %v214, 48
    %v644 = vpop.permute.xlu0 %643
    %645 = vrot.lane.b32.xlu0 %v215, 48
    %v646 = vpop.permute.xlu0 %645
    %647 = vrot.lane.b32.xlu0 %v216, 48
    %v648 = vpop.permute.xlu0 %647
    %649 = vrot.lane.b32.xlu0 %v217, 48
    %v650 = vpop.permute.xlu0 %649
    %651 = vrot.lane.b32.xlu0 %v218, 48
    %v652 = vpop.permute.xlu0 %651
    %653 = vrot.lane.b32.xlu0 %v219, 48
    %v654 = vpop.permute.xlu0 %653
    %655 = vrot.lane.b32.xlu0 %v220, 48
    %v656 = vpop.permute.xlu0 %655
    %657 = vrot.lane.b32.xlu0 %v221, 48
    %v658 = vpop.permute.xlu0 %657
    %659 = vrot.lane.b32.xlu0 %v222, 48
    %v660 = vpop.permute.xlu0 %659
    %vm697 = vcmask 130048
    %v698 = vsel %vm697, %v33, %v302
    %v699 = vsel %vm697, %v34, %v304
    %v700 = vsel %vm697, %v36, %v306
    %v701 = vsel %vm697, %v37, %v308
    %v702 = vsel %vm697, %v39, %v310
    %v703 = vsel %vm697, %v40, %v312
    %v704 = vsel %vm697, %v42, %v314
    %v705 = vsel %vm697, %v43, %v316
    %v706 = vsel %vm697, %v45, %v318
    %v707 = vsel %vm697, %v46, %v320
    %v708 = vsel %vm697, %v48, %v322
    %v709 = vsel %vm697, %v49, %v324
    %v710 = vsel %vm697, %v51, %v326
    %v711 = vsel %vm697, %v52, %v328
    %v712 = vsel %vm697, %v54, %v330
    %v713 = vsel %vm697, %v55, %v332
    %v714 = vsel %vm697, %v57, %v334
    %v715 = vsel %vm697, %v58, %v336
    %v716 = vsel %vm697, %v128, %v338
    %v717 = vsel %vm697, %v129, %v340
    %v718 = vsel %vm697, %v131, %v342
    %v719 = vsel %vm697, %v132, %v344
    %v720 = vsel %vm697, %v134, %v346
    %v721 = vsel %vm697, %v135, %v348
    %v722 = vsel %vm697, %v137, %v350
    %v723 = vsel %vm697, %v138, %v352
    %v724 = vsel %vm697, %v140, %v354
    %v725 = vsel %vm697, %v141, %v356
    %v726 = vsel %vm697, %v143, %v358
    %v727 = vsel %vm697, %v144, %v360
    %v728 = vsel %vm697, %v146, %v362
    %v729 = vsel %vm697, %v147, %v364
    %v730 = vsel %vm697, %v149, %v366
    %v731 = vsel %vm697, %v150, %v368
    %v732 = vsel %vm697, %v152, %v370
    %v733 = vsel %vm697, %v153, %v372
    %vm734 = vcmask 261120
    %v735 = vsel %vm734, %v698, %v446
    %v736 = vsel %vm734, %v699, %v448
    %v737 = vsel %vm734, %v700, %v450
    %v738 = vsel %vm734, %v701, %v452
    %v739 = vsel %vm734, %v702, %v454
    %v740 = vsel %vm734, %v703, %v456
    %v741 = vsel %vm734, %v704, %v458
    %v742 = vsel %vm734, %v705, %v460
    %v743 = vsel %vm734, %v706, %v462
    %v744 = vsel %vm734, %v707, %v464
    %v745 = vsel %vm734, %v708, %v466
    %v746 = vsel %vm734, %v709, %v468
    %v747 = vsel %vm734, %v710, %v470
    %v748 = vsel %vm734, %v711, %v472
    %v749 = vsel %vm734, %v712, %v474
    %v750 = vsel %vm734, %v713, %v476
    %v751 = vsel %vm734, %v714, %v478
    %v752 = vsel %vm734, %v715, %v480
    %v753 = vsel %vm734, %v716, %v482
    %v754 = vsel %vm734, %v717, %v484
    %v755 = vsel %vm734, %v718, %v486
    %v756 = vsel %vm734, %v719, %v488
    %v757 = vsel %vm734, %v720, %v490
    %v758 = vsel %vm734, %v721, %v492
    %v759 = vsel %vm734, %v722, %v494
    %v760 = vsel %vm734, %v723, %v496
    %v761 = vsel %vm734, %v724, %v498
    %v762 = vsel %vm734, %v725, %v500
    %v763 = vsel %vm734, %v726, %v502
    %v764 = vsel %vm734, %v727, %v504
    %v765 = vsel %vm734, %v728, %v506
    %v766 = vsel %vm734, %v729, %v508
    %v767 = vsel %vm734, %v730, %v510
    %v768 = vsel %vm734, %v731, %v512
    %v769 = vsel %vm734, %v732, %v514
    %v770 = vsel %vm734, %v733, %v516
    %vm771 = vcmask 392192
    %v772 = vsel %vm771, %v735, %v590
    %v773 = vsel %vm771, %v736, %v592
    %v774 = vsel %vm771, %v737, %v594
    %v775 = vsel %vm771, %v738, %v596
    %v776 = vsel %vm771, %v739, %v598
    %v777 = vsel %vm771, %v740, %v600
    %v778 = vsel %vm771, %v741, %v602
    %v779 = vsel %vm771, %v742, %v604
    %v780 = vsel %vm771, %v743, %v606
    %v781 = vsel %vm771, %v744, %v608
    %v782 = vsel %vm771, %v745, %v610
    %v783 = vsel %vm771, %v746, %v612
    %v784 = vsel %vm771, %v747, %v614
    %v785 = vsel %vm771, %v748, %v616
    %v786 = vsel %vm771, %v749, %v618
    %v787 = vsel %vm771, %v750, %v620
    %v788 = vsel %vm771, %v751, %v622
    %v789 = vsel %vm771, %v752, %v624
    %v790 = vsel %vm771, %v753, %v626
    %v791 = vsel %vm771, %v754, %v628
    %v792 = vsel %vm771, %v755, %v630
    %v793 = vsel %vm771, %v756, %v632
    %v794 = vsel %vm771, %v757, %v634
    %v795 = vsel %vm771, %v758, %v636
    %v796 = vsel %vm771, %v759, %v638
    %v797 = vsel %vm771, %v760, %v640
    %v798 = vsel %vm771, %v761, %v642
    %v799 = vsel %vm771, %v762, %v644
    %v800 = vsel %vm771, %v763, %v646
    %v801 = vsel %vm771, %v764, %v648
    %v802 = vsel %vm771, %v765, %v650
    %v803 = vsel %vm771, %v766, %v652
    %v804 = vsel %vm771, %v767, %v654
    %v805 = vsel %vm771, %v768, %v656
    %v806 = vsel %vm771, %v769, %v658
    %v807 = vsel %vm771, %v770, %v660
    %vm862 = vcmask 1046528
    %v863 = vrot.slane %v33, 1
    %v864 = vrot.slane %v34, 1
    %v865 = vsel %vm862, %v863, %v864
    %v866 = vrot.slane %v35, 1
    %v867 = vsel %vm862, %v864, %v866
    %v868 = vrot.slane %v36, 1
    %v869 = vrot.slane %v37, 1
    %v870 = vsel %vm862, %v868, %v869
    %v871 = vrot.slane %v38, 1
    %v872 = vsel %vm862, %v869, %v871
    %v873 = vrot.slane %v39, 1
    %v874 = vrot.slane %v40, 1
    %v875 = vsel %vm862, %v873, %v874
    %v876 = vrot.slane %v41, 1
    %v877 = vsel %vm862, %v874, %v876
    %v878 = vrot.slane %v42, 1
    %v879 = vrot.slane %v43, 1
    %v880 = vsel %vm862, %v878, %v879
    %v881 = vrot.slane %v44, 1
    %v882 = vsel %vm862, %v879, %v881
    %v883 = vrot.slane %v45, 1
    %v884 = vrot.slane %v46, 1
    %v885 = vsel %vm862, %v883, %v884
    %v886 = vrot.slane %v47, 1
    %v887 = vsel %vm862, %v884, %v886
    %v888 = vrot.slane %v48, 1
    %v889 = vrot.slane %v49, 1
    %v890 = vsel %vm862, %v888, %v889
    %v891 = vrot.slane %v50, 1
    %v892 = vsel %vm862, %v889, %v891
    %v893 = vrot.slane %v51, 1
    %v894 = vrot.slane %v52, 1
    %v895 = vsel %vm862, %v893, %v894
    %v896 = vrot.slane %v53, 1
    %v897 = vsel %vm862, %v894, %v896
    %v898 = vrot.slane %v54, 1
    %v899 = vrot.slane %v55, 1
    %v900 = vsel %vm862, %v898, %v899
    %v901 = vrot.slane %v56, 1
    %v902 = vsel %vm862, %v899, %v901
    %v903 = vrot.slane %v57, 1
    %v904 = vrot.slane %v58, 1
    %v905 = vsel %vm862, %v903, %v904
    %v906 = vrot.slane %v59, 1
    %v907 = vsel %vm862, %v904, %v906
    %v908 = vrot.slane %v128, 1
    %v909 = vrot.slane %v129, 1
    %v910 = vsel %vm862, %v908, %v909
    %v911 = vrot.slane %v130, 1
    %v912 = vsel %vm862, %v909, %v911
    %v913 = vrot.slane %v131, 1
    %v914 = vrot.slane %v132, 1
    %v915 = vsel %vm862, %v913, %v914
    %v916 = vrot.slane %v133, 1
    %v917 = vsel %vm862, %v914, %v916
    %v918 = vrot.slane %v134, 1
    %v919 = vrot.slane %v135, 1
    %v920 = vsel %vm862, %v918, %v919
    %v921 = vrot.slane %v136, 1
    %v922 = vsel %vm862, %v919, %v921
    %v923 = vrot.slane %v137, 1
    %v924 = vrot.slane %v138, 1
    %v925 = vsel %vm862, %v923, %v924
    %v926 = vrot.slane %v139, 1
    %v927 = vsel %vm862, %v924, %v926
    %v928 = vrot.slane %v140, 1
    %v929 = vrot.slane %v141, 1
    %v930 = vsel %vm862, %v928, %v929
    %v931 = vrot.slane %v142, 1
    %v932 = vsel %vm862, %v929, %v931
    %v933 = vrot.slane %v143, 1
    %v934 = vrot.slane %v144, 1
    %v935 = vsel %vm862, %v933, %v934
    %v936 = vrot.slane %v145, 1
    %v937 = vsel %vm862, %v934, %v936
    %v938 = vrot.slane %v146, 1
    %v939 = vrot.slane %v147, 1
    %v940 = vsel %vm862, %v938, %v939
    %v941 = vrot.slane %v148, 1
    %v942 = vsel %vm862, %v939, %v941
    %v943 = vrot.slane %v149, 1
    %v944 = vrot.slane %v150, 1
    %v945 = vsel %vm862, %v943, %v944
    %v946 = vrot.slane %v151, 1
    %v947 = vsel %vm862, %v944, %v946
    %v948 = vrot.slane %v152, 1
    %v949 = vrot.slane %v153, 1
    %v950 = vsel %vm862, %v948, %v949
    %v951 = vrot.slane %v154, 1
    %v952 = vsel %vm862, %v949, %v951
    %953 = vrot.lane.b32.xlu0 %v865, 16
    %v954 = vpop.permute.xlu0 %953
    %955 = vrot.lane.b32.xlu0 %v867, 16
    %v956 = vpop.permute.xlu0 %955
    %957 = vrot.lane.b32.xlu0 %v870, 16
    %v958 = vpop.permute.xlu0 %957
    %959 = vrot.lane.b32.xlu0 %v872, 16
    %v960 = vpop.permute.xlu0 %959
    %961 = vrot.lane.b32.xlu0 %v875, 16
    %v962 = vpop.permute.xlu0 %961
    %963 = vrot.lane.b32.xlu0 %v877, 16
    %v964 = vpop.permute.xlu0 %963
    %965 = vrot.lane.b32.xlu0 %v880, 16
    %v966 = vpop.permute.xlu0 %965
    %967 = vrot.lane.b32.xlu0 %v882, 16
    %v968 = vpop.permute.xlu0 %967
    %969 = vrot.lane.b32.xlu0 %v885, 16
    %v970 = vpop.permute.xlu0 %969
    %971 = vrot.lane.b32.xlu0 %v887, 16
    %v972 = vpop.permute.xlu0 %971
    %973 = vrot.lane.b32.xlu0 %v890, 16
    %v974 = vpop.permute.xlu0 %973
    %975 = vrot.lane.b32.xlu0 %v892, 16
    %v976 = vpop.permute.xlu0 %975
    %977 = vrot.lane.b32.xlu0 %v895, 16
    %v978 = vpop.permute.xlu0 %977
    %979 = vrot.lane.b32.xlu0 %v897, 16
    %v980 = vpop.permute.xlu0 %979
    %981 = vrot.lane.b32.xlu0 %v900, 16
    %v982 = vpop.permute.xlu0 %981
    %983 = vrot.lane.b32.xlu0 %v902, 16
    %v984 = vpop.permute.xlu0 %983
    %985 = vrot.lane.b32.xlu0 %v905, 16
    %v986 = vpop.permute.xlu0 %985
    %987 = vrot.lane.b32.xlu0 %v907, 16
    %v988 = vpop.permute.xlu0 %987
    %989 = vrot.lane.b32.xlu0 %v910, 16
    %v990 = vpop.permute.xlu0 %989
    %991 = vrot.lane.b32.xlu0 %v912, 16
    %v992 = vpop.permute.xlu0 %991
    %993 = vrot.lane.b32.xlu0 %v915, 16
    %v994 = vpop.permute.xlu0 %993
    %995 = vrot.lane.b32.xlu0 %v917, 16
    %v996 = vpop.permute.xlu0 %995
    %997 = vrot.lane.b32.xlu0 %v920, 16
    %v998 = vpop.permute.xlu0 %997
    %999 = vrot.lane.b32.xlu0 %v922, 16
    %v1000 = vpop.permute.xlu0 %999
    %1001 = vrot.lane.b32.xlu0 %v925, 16
    %v1002 = vpop.permute.xlu0 %1001
    %1003 = vrot.lane.b32.xlu0 %v927, 16
    %v1004 = vpop.permute.xlu0 %1003
    %1005 = vrot.lane.b32.xlu0 %v930, 16
    %v1006 = vpop.permute.xlu0 %1005
    %1007 = vrot.lane.b32.xlu0 %v932, 16
    %v1008 = vpop.permute.xlu0 %1007
    %1009 = vrot.lane.b32.xlu0 %v935, 16
    %v1010 = vpop.permute.xlu0 %1009
    %1011 = vrot.lane.b32.xlu0 %v937, 16
    %v1012 = vpop.permute.xlu0 %1011
    %1013 = vrot.lane.b32.xlu0 %v940, 16
    %v1014 = vpop.permute.xlu0 %1013
    %1015 = vrot.lane.b32.xlu0 %v942, 16
    %v1016 = vpop.permute.xlu0 %1015
    %1017 = vrot.lane.b32.xlu0 %v945, 16
    %v1018 = vpop.permute.xlu0 %1017
    %1019 = vrot.lane.b32.xlu0 %v947, 16
    %v1020 = vpop.permute.xlu0 %1019
    %1021 = vrot.lane.b32.xlu0 %v950, 16
    %v1022 = vpop.permute.xlu0 %1021
    %1023 = vrot.lane.b32.xlu0 %v952, 16
    %v1024 = vpop.permute.xlu0 %1023
    %1061 = vrot.lane.b32.xlu0 %v110, 32
    %v1062 = vpop.permute.xlu0 %1061
    %1063 = vrot.lane.b32.xlu0 %v111, 32
    %v1064 = vpop.permute.xlu0 %1063
    %1065 = vrot.lane.b32.xlu0 %v112, 32
    %v1066 = vpop.permute.xlu0 %1065
    %1067 = vrot.lane.b32.xlu0 %v113, 32
    %v1068 = vpop.permute.xlu0 %1067
    %1069 = vrot.lane.b32.xlu0 %v114, 32
    %v1070 = vpop.permute.xlu0 %1069
    %1071 = vrot.lane.b32.xlu0 %v115, 32
    %v1072 = vpop.permute.xlu0 %1071
    %1073 = vrot.lane.b32.xlu0 %v116, 32
    %v1074 = vpop.permute.xlu0 %1073
    %1075 = vrot.lane.b32.xlu0 %v117, 32
    %v1076 = vpop.permute.xlu0 %1075
    %1077 = vrot.lane.b32.xlu0 %v118, 32
    %v1078 = vpop.permute.xlu0 %1077
    %1079 = vrot.lane.b32.xlu0 %v119, 32
    %v1080 = vpop.permute.xlu0 %1079
    %1081 = vrot.lane.b32.xlu0 %v120, 32
    %v1082 = vpop.permute.xlu0 %1081
    %1083 = vrot.lane.b32.xlu0 %v121, 32
    %v1084 = vpop.permute.xlu0 %1083
    %1085 = vrot.lane.b32.xlu0 %v122, 32
    %v1086 = vpop.permute.xlu0 %1085
    %1087 = vrot.lane.b32.xlu0 %v123, 32
    %v1088 = vpop.permute.xlu0 %1087
    %1089 = vrot.lane.b32.xlu0 %v124, 32
    %v1090 = vpop.permute.xlu0 %1089
    %1091 = vrot.lane.b32.xlu0 %v125, 32
    %v1092 = vpop.permute.xlu0 %1091
    %1093 = vrot.lane.b32.xlu0 %v126, 32
    %v1094 = vpop.permute.xlu0 %1093
    %1095 = vrot.lane.b32.xlu0 %v127, 32
    %v1096 = vpop.permute.xlu0 %1095
    %1097 = vrot.lane.b32.xlu0 %v205, 32
    %v1098 = vpop.permute.xlu0 %1097
    %1099 = vrot.lane.b32.xlu0 %v206, 32
    %v1100 = vpop.permute.xlu0 %1099
    %1101 = vrot.lane.b32.xlu0 %v207, 32
    %v1102 = vpop.permute.xlu0 %1101
    %1103 = vrot.lane.b32.xlu0 %v208, 32
    %v1104 = vpop.permute.xlu0 %1103
    %1105 = vrot.lane.b32.xlu0 %v209, 32
    %v1106 = vpop.permute.xlu0 %1105
    %1107 = vrot.lane.b32.xlu0 %v210, 32
    %v1108 = vpop.permute.xlu0 %1107
    %1109 = vrot.lane.b32.xlu0 %v211, 32
    %v1110 = vpop.permute.xlu0 %1109
    %1111 = vrot.lane.b32.xlu0 %v212, 32
    %v1112 = vpop.permute.xlu0 %1111
    %1113 = vrot.lane.b32.xlu0 %v213, 32
    %v1114 = vpop.permute.xlu0 %1113
    %1115 = vrot.lane.b32.xlu0 %v214, 32
    %v1116 = vpop.permute.xlu0 %1115
    %1117 = vrot.lane.b32.xlu0 %v215, 32
    %v1118 = vpop.permute.xlu0 %1117
    %1119 = vrot.lane.b32.xlu0 %v216, 32
    %v1120 = vpop.permute.xlu0 %1119
    %1121 = vrot.lane.b32.xlu0 %v217, 32
    %v1122 = vpop.permute.xlu0 %1121
    %1123 = vrot.lane.b32.xlu0 %v218, 32
    %v1124 = vpop.permute.xlu0 %1123
    %1125 = vrot.lane.b32.xlu0 %v219, 32
    %v1126 = vpop.permute.xlu0 %1125
    %1127 = vrot.lane.b32.xlu0 %v220, 32
    %v1128 = vpop.permute.xlu0 %1127
    %1129 = vrot.lane.b32.xlu0 %v221, 32
    %v1130 = vpop.permute.xlu0 %1129
    %1131 = vrot.lane.b32.xlu0 %v222, 32
    %v1132 = vpop.permute.xlu0 %1131
    %v1187 = vrot.slane %v83, 1
    %v1188 = vrot.slane %v84, 1
    %v1189 = vsel %vm862, %v1187, %v1188
    %v1190 = vrot.slane %v85, 1
    %v1191 = vsel %vm862, %v1188, %v1190
    %v1192 = vrot.slane %v86, 1
    %v1193 = vrot.slane %v87, 1
    %v1194 = vsel %vm862, %v1192, %v1193
    %v1195 = vrot.slane %v88, 1
    %v1196 = vsel %vm862, %v1193, %v1195
    %v1197 = vrot.slane %v89, 1
    %v1198 = vrot.slane %v90, 1
    %v1199 = vsel %vm862, %v1197, %v1198
    %v1200 = vrot.slane %v91, 1
    %v1201 = vsel %vm862, %v1198, %v1200
    %v1202 = vrot.slane %v92, 1
    %v1203 = vrot.slane %v93, 1
    %v1204 = vsel %vm862, %v1202, %v1203
    %v1205 = vrot.slane %v94, 1
    %v1206 = vsel %vm862, %v1203, %v1205
    %v1207 = vrot.slane %v95, 1
    %v1208 = vrot.slane %v96, 1
    %v1209 = vsel %vm862, %v1207, %v1208
    %v1210 = vrot.slane %v97, 1
    %v1211 = vsel %vm862, %v1208, %v1210
    %v1212 = vrot.slane %v98, 1
    %v1213 = vrot.slane %v99, 1
    %v1214 = vsel %vm862, %v1212, %v1213
    %v1215 = vrot.slane %v100, 1
    %v1216 = vsel %vm862, %v1213, %v1215
    %v1217 = vrot.slane %v101, 1
    %v1218 = vrot.slane %v102, 1
    %v1219 = vsel %vm862, %v1217, %v1218
    %v1220 = vrot.slane %v103, 1
    %v1221 = vsel %vm862, %v1218, %v1220
    %v1222 = vrot.slane %v104, 1
    %v1223 = vrot.slane %v105, 1
    %v1224 = vsel %vm862, %v1222, %v1223
    %v1225 = vrot.slane %v106, 1
    %v1226 = vsel %vm862, %v1223, %v1225
    %v1227 = vrot.slane %v107, 1
    %v1228 = vrot.slane %v108, 1
    %v1229 = vsel %vm862, %v1227, %v1228
    %v1230 = vrot.slane %v109, 1
    %v1231 = vsel %vm862, %v1228, %v1230
    %v1232 = vrot.slane %v178, 1
    %v1233 = vrot.slane %v179, 1
    %v1234 = vsel %vm862, %v1232, %v1233
    %v1235 = vrot.slane %v180, 1
    %v1236 = vsel %vm862, %v1233, %v1235
    %v1237 = vrot.slane %v181, 1
    %v1238 = vrot.slane %v182, 1
    %v1239 = vsel %vm862, %v1237, %v1238
    %v1240 = vrot.slane %v183, 1
    %v1241 = vsel %vm862, %v1238, %v1240
    %v1242 = vrot.slane %v184, 1
    %v1243 = vrot.slane %v185, 1
    %v1244 = vsel %vm862, %v1242, %v1243
    %v1245 = vrot.slane %v186, 1
    %v1246 = vsel %vm862, %v1243, %v1245
    %v1247 = vrot.slane %v187, 1
    %v1248 = vrot.slane %v188, 1
    %v1249 = vsel %vm862, %v1247, %v1248
    %v1250 = vrot.slane %v189, 1
    %v1251 = vsel %vm862, %v1248, %v1250
    %v1252 = vrot.slane %v190, 1
    %v1253 = vrot.slane %v191, 1
    %v1254 = vsel %vm862, %v1252, %v1253
    %v1255 = vrot.slane %v192, 1
    %v1256 = vsel %vm862, %v1253, %v1255
    %v1257 = vrot.slane %v193, 1
    %v1258 = vrot.slane %v194, 1
    %v1259 = vsel %vm862, %v1257, %v1258
    %v1260 = vrot.slane %v195, 1
    %v1261 = vsel %vm862, %v1258, %v1260
    %v1262 = vrot.slane %v196, 1
    %v1263 = vrot.slane %v197, 1
    %v1264 = vsel %vm862, %v1262, %v1263
    %v1265 = vrot.slane %v198, 1
    %v1266 = vsel %vm862, %v1263, %v1265
    %v1267 = vrot.slane %v199, 1
    %v1268 = vrot.slane %v200, 1
    %v1269 = vsel %vm862, %v1267, %v1268
    %v1270 = vrot.slane %v201, 1
    %v1271 = vsel %vm862, %v1268, %v1270
    %v1272 = vrot.slane %v202, 1
    %v1273 = vrot.slane %v203, 1
    %v1274 = vsel %vm862, %v1272, %v1273
    %v1275 = vrot.slane %v204, 1
    %v1276 = vsel %vm862, %v1273, %v1275
    %1277 = vrot.lane.b32.xlu0 %v1189, 48
    %v1278 = vpop.permute.xlu0 %1277
    %1279 = vrot.lane.b32.xlu0 %v1191, 48
    %v1280 = vpop.permute.xlu0 %1279
    %1281 = vrot.lane.b32.xlu0 %v1194, 48
    %v1282 = vpop.permute.xlu0 %1281
    %1283 = vrot.lane.b32.xlu0 %v1196, 48
    %v1284 = vpop.permute.xlu0 %1283
    %1285 = vrot.lane.b32.xlu0 %v1199, 48
    %v1286 = vpop.permute.xlu0 %1285
    %1287 = vrot.lane.b32.xlu0 %v1201, 48
    %v1288 = vpop.permute.xlu0 %1287
    %1289 = vrot.lane.b32.xlu0 %v1204, 48
    %v1290 = vpop.permute.xlu0 %1289
    %1291 = vrot.lane.b32.xlu0 %v1206, 48
    %v1292 = vpop.permute.xlu0 %1291
    %1293 = vrot.lane.b32.xlu0 %v1209, 48
    %v1294 = vpop.permute.xlu0 %1293
    %1295 = vrot.lane.b32.xlu0 %v1211, 48
    %v1296 = vpop.permute.xlu0 %1295
    %1297 = vrot.lane.b32.xlu0 %v1214, 48
    %v1298 = vpop.permute.xlu0 %1297
    %1299 = vrot.lane.b32.xlu0 %v1216, 48
    %v1300 = vpop.permute.xlu0 %1299
    %1301 = vrot.lane.b32.xlu0 %v1219, 48
    %v1302 = vpop.permute.xlu0 %1301
    %1303 = vrot.lane.b32.xlu0 %v1221, 48
    %v1304 = vpop.permute.xlu0 %1303
    %1305 = vrot.lane.b32.xlu0 %v1224, 48
    %v1306 = vpop.permute.xlu0 %1305
    %1307 = vrot.lane.b32.xlu0 %v1226, 48
    %v1308 = vpop.permute.xlu0 %1307
    %1309 = vrot.lane.b32.xlu0 %v1229, 48
    %v1310 = vpop.permute.xlu0 %1309
    %1311 = vrot.lane.b32.xlu0 %v1231, 48
    %v1312 = vpop.permute.xlu0 %1311
    %1313 = vrot.lane.b32.xlu0 %v1234, 48
    %v1314 = vpop.permute.xlu0 %1313
    %1315 = vrot.lane.b32.xlu0 %v1236, 48
    %v1316 = vpop.permute.xlu0 %1315
    %1317 = vrot.lane.b32.xlu0 %v1239, 48
    %v1318 = vpop.permute.xlu0 %1317
    %1319 = vrot.lane.b32.xlu0 %v1241, 48
    %v1320 = vpop.permute.xlu0 %1319
    %1321 = vrot.lane.b32.xlu0 %v1244, 48
    %v1322 = vpop.permute.xlu0 %1321
    %1323 = vrot.lane.b32.xlu0 %v1246, 48
    %v1324 = vpop.permute.xlu0 %1323
    %1325 = vrot.lane.b32.xlu0 %v1249, 48
    %v1326 = vpop.permute.xlu0 %1325
    %1327 = vrot.lane.b32.xlu0 %v1251, 48
    %v1328 = vpop.permute.xlu0 %1327
    %1329 = vrot.lane.b32.xlu0 %v1254, 48
    %v1330 = vpop.permute.xlu0 %1329
    %1331 = vrot.lane.b32.xlu0 %v1256, 48
    %v1332 = vpop.permute.xlu0 %1331
    %1333 = vrot.lane.b32.xlu0 %v1259, 48
    %v1334 = vpop.permute.xlu0 %1333
    %1335 = vrot.lane.b32.xlu0 %v1261, 48
    %v1336 = vpop.permute.xlu0 %1335
    %1337 = vrot.lane.b32.xlu0 %v1264, 48
    %v1338 = vpop.permute.xlu0 %1337
    %1339 = vrot.lane.b32.xlu0 %v1266, 48
    %v1340 = vpop.permute.xlu0 %1339
    %1341 = vrot.lane.b32.xlu0 %v1269, 48
    %v1342 = vpop.permute.xlu0 %1341
    %1343 = vrot.lane.b32.xlu0 %v1271, 48
    %v1344 = vpop.permute.xlu0 %1343
    %1345 = vrot.lane.b32.xlu0 %v1274, 48
    %v1346 = vpop.permute.xlu0 %1345
    %1347 = vrot.lane.b32.xlu0 %v1276, 48
    %v1348 = vpop.permute.xlu0 %1347
    %v1385 = vsel %vm697, %v63, %v954
    %v1386 = vsel %vm697, %v64, %v956
    %v1387 = vsel %vm697, %v65, %v958
    %v1388 = vsel %vm697, %v66, %v960
    %v1389 = vsel %vm697, %v67, %v962
    %v1390 = vsel %vm697, %v68, %v964
    %v1391 = vsel %vm697, %v69, %v966
    %v1392 = vsel %vm697, %v70, %v968
    %v1393 = vsel %vm697, %v71, %v970
    %v1394 = vsel %vm697, %v72, %v972
    %v1395 = vsel %vm697, %v73, %v974
    %v1396 = vsel %vm697, %v74, %v976
    %v1397 = vsel %vm697, %v75, %v978
    %v1398 = vsel %vm697, %v76, %v980
    %v1399 = vsel %vm697, %v77, %v982
    %v1400 = vsel %vm697, %v78, %v984
    %v1401 = vsel %vm697, %v79, %v986
    %v1402 = vsel %vm697, %v80, %v988
    %v1403 = vsel %vm697, %v158, %v990
    %v1404 = vsel %vm697, %v159, %v992
    %v1405 = vsel %vm697, %v160, %v994
    %v1406 = vsel %vm697, %v161, %v996
    %v1407 = vsel %vm697, %v162, %v998
    %v1408 = vsel %vm697, %v163, %v1000
    %v1409 = vsel %vm697, %v164, %v1002
    %v1410 = vsel %vm697, %v165, %v1004
    %v1411 = vsel %vm697, %v166, %v1006
    %v1412 = vsel %vm697, %v167, %v1008
    %v1413 = vsel %vm697, %v168, %v1010
    %v1414 = vsel %vm697, %v169, %v1012
    %v1415 = vsel %vm697, %v170, %v1014
    %v1416 = vsel %vm697, %v171, %v1016
    %v1417 = vsel %vm697, %v172, %v1018
    %v1418 = vsel %vm697, %v173, %v1020
    %v1419 = vsel %vm697, %v174, %v1022
    %v1420 = vsel %vm697, %v175, %v1024
    %v1421 = vsel %vm734, %v1385, %v1062
    %v1422 = vsel %vm734, %v1386, %v1064
    %v1423 = vsel %vm734, %v1387, %v1066
    %v1424 = vsel %vm734, %v1388, %v1068
    %v1425 = vsel %vm734, %v1389, %v1070
    %v1426 = vsel %vm734, %v1390, %v1072
    %v1427 = vsel %vm734, %v1391, %v1074
    %v1428 = vsel %vm734, %v1392, %v1076
    %v1429 = vsel %vm734, %v1393, %v1078
    %v1430 = vsel %vm734, %v1394, %v1080
    %v1431 = vsel %vm734, %v1395, %v1082
    %v1432 = vsel %vm734, %v1396, %v1084
    %v1433 = vsel %vm734, %v1397, %v1086
    %v1434 = vsel %vm734, %v1398, %v1088
    %v1435 = vsel %vm734, %v1399, %v1090
    %v1436 = vsel %vm734, %v1400, %v1092
    %v1437 = vsel %vm734, %v1401, %v1094
    %v1438 = vsel %vm734, %v1402, %v1096
    %v1439 = vsel %vm734, %v1403, %v1098
    %v1440 = vsel %vm734, %v1404, %v1100
    %v1441 = vsel %vm734, %v1405, %v1102
    %v1442 = vsel %vm734, %v1406, %v1104
    %v1443 = vsel %vm734, %v1407, %v1106
    %v1444 = vsel %vm734, %v1408, %v1108
    %v1445 = vsel %vm734, %v1409, %v1110
    %v1446 = vsel %vm734, %v1410, %v1112
    %v1447 = vsel %vm734, %v1411, %v1114
    %v1448 = vsel %vm734, %v1412, %v1116
    %v1449 = vsel %vm734, %v1413, %v1118
    %v1450 = vsel %vm734, %v1414, %v1120
    %v1451 = vsel %vm734, %v1415, %v1122
    %v1452 = vsel %vm734, %v1416, %v1124
    %v1453 = vsel %vm734, %v1417, %v1126
    %v1454 = vsel %vm734, %v1418, %v1128
    %v1455 = vsel %vm734, %v1419, %v1130
    %v1456 = vsel %vm734, %v1420, %v1132
    %v1457 = vsel %vm771, %v1421, %v1278
    %v1458 = vsel %vm771, %v1422, %v1280
    %v1459 = vsel %vm771, %v1423, %v1282
    %v1460 = vsel %vm771, %v1424, %v1284
    %v1461 = vsel %vm771, %v1425, %v1286
    %v1462 = vsel %vm771, %v1426, %v1288
    %v1463 = vsel %vm771, %v1427, %v1290
    %v1464 = vsel %vm771, %v1428, %v1292
    %v1465 = vsel %vm771, %v1429, %v1294
    %v1466 = vsel %vm771, %v1430, %v1296
    %v1467 = vsel %vm771, %v1431, %v1298
    %v1468 = vsel %vm771, %v1432, %v1300
    %v1469 = vsel %vm771, %v1433, %v1302
    %v1470 = vsel %vm771, %v1434, %v1304
    %v1471 = vsel %vm771, %v1435, %v1306
    %v1472 = vsel %vm771, %v1436, %v1308
    %v1473 = vsel %vm771, %v1437, %v1310
    %v1474 = vsel %vm771, %v1438, %v1312
    %v1475 = vsel %vm771, %v1439, %v1314
    %v1476 = vsel %vm771, %v1440, %v1316
    %v1477 = vsel %vm771, %v1441, %v1318
    %v1478 = vsel %vm771, %v1442, %v1320
    %v1479 = vsel %vm771, %v1443, %v1322
    %v1480 = vsel %vm771, %v1444, %v1324
    %v1481 = vsel %vm771, %v1445, %v1326
    %v1482 = vsel %vm771, %v1446, %v1328
    %v1483 = vsel %vm771, %v1447, %v1330
    %v1484 = vsel %vm771, %v1448, %v1332
    %v1485 = vsel %vm771, %v1449, %v1334
    %v1486 = vsel %vm771, %v1450, %v1336
    %v1487 = vsel %vm771, %v1451, %v1338
    %v1488 = vsel %vm771, %v1452, %v1340
    %v1489 = vsel %vm771, %v1453, %v1342
    %v1490 = vsel %vm771, %v1454, %v1344
    %v1491 = vsel %vm771, %v1455, %v1346
    %v1492 = vsel %vm771, %v1456, %v1348
    %1493 = vrot.lane.b32.xlu0 %v110, 16
    %v1494 = vpop.permute.xlu0 %1493
    %1495 = vrot.lane.b32.xlu0 %v111, 16
    %v1496 = vpop.permute.xlu0 %1495
    %1497 = vrot.lane.b32.xlu0 %v112, 16
    %v1498 = vpop.permute.xlu0 %1497
    %1499 = vrot.lane.b32.xlu0 %v113, 16
    %v1500 = vpop.permute.xlu0 %1499
    %1501 = vrot.lane.b32.xlu0 %v114, 16
    %v1502 = vpop.permute.xlu0 %1501
    %1503 = vrot.lane.b32.xlu0 %v115, 16
    %v1504 = vpop.permute.xlu0 %1503
    %1505 = vrot.lane.b32.xlu0 %v116, 16
    %v1506 = vpop.permute.xlu0 %1505
    %1507 = vrot.lane.b32.xlu0 %v117, 16
    %v1508 = vpop.permute.xlu0 %1507
    %1509 = vrot.lane.b32.xlu0 %v118, 16
    %v1510 = vpop.permute.xlu0 %1509
    %1511 = vrot.lane.b32.xlu0 %v119, 16
    %v1512 = vpop.permute.xlu0 %1511
    %1513 = vrot.lane.b32.xlu0 %v120, 16
    %v1514 = vpop.permute.xlu0 %1513
    %1515 = vrot.lane.b32.xlu0 %v121, 16
    %v1516 = vpop.permute.xlu0 %1515
    %1517 = vrot.lane.b32.xlu0 %v122, 16
    %v1518 = vpop.permute.xlu0 %1517
    %1519 = vrot.lane.b32.xlu0 %v123, 16
    %v1520 = vpop.permute.xlu0 %1519
    %1521 = vrot.lane.b32.xlu0 %v124, 16
    %v1522 = vpop.permute.xlu0 %1521
    %1523 = vrot.lane.b32.xlu0 %v125, 16
    %v1524 = vpop.permute.xlu0 %1523
    %1525 = vrot.lane.b32.xlu0 %v126, 16
    %v1526 = vpop.permute.xlu0 %1525
    %1527 = vrot.lane.b32.xlu0 %v127, 16
    %v1528 = vpop.permute.xlu0 %1527
    %1529 = vrot.lane.b32.xlu0 %v205, 16
    %v1530 = vpop.permute.xlu0 %1529
    %1531 = vrot.lane.b32.xlu0 %v206, 16
    %v1532 = vpop.permute.xlu0 %1531
    %1533 = vrot.lane.b32.xlu0 %v207, 16
    %v1534 = vpop.permute.xlu0 %1533
    %1535 = vrot.lane.b32.xlu0 %v208, 16
    %v1536 = vpop.permute.xlu0 %1535
    %1537 = vrot.lane.b32.xlu0 %v209, 16
    %v1538 = vpop.permute.xlu0 %1537
    %1539 = vrot.lane.b32.xlu0 %v210, 16
    %v1540 = vpop.permute.xlu0 %1539
    %1541 = vrot.lane.b32.xlu0 %v211, 16
    %v1542 = vpop.permute.xlu0 %1541
    %1543 = vrot.lane.b32.xlu0 %v212, 16
    %v1544 = vpop.permute.xlu0 %1543
    %1545 = vrot.lane.b32.xlu0 %v213, 16
    %v1546 = vpop.permute.xlu0 %1545
    %1547 = vrot.lane.b32.xlu0 %v214, 16
    %v1548 = vpop.permute.xlu0 %1547
    %1549 = vrot.lane.b32.xlu0 %v215, 16
    %v1550 = vpop.permute.xlu0 %1549
    %1551 = vrot.lane.b32.xlu0 %v216, 16
    %v1552 = vpop.permute.xlu0 %1551
    %1553 = vrot.lane.b32.xlu0 %v217, 16
    %v1554 = vpop.permute.xlu0 %1553
    %1555 = vrot.lane.b32.xlu0 %v218, 16
    %v1556 = vpop.permute.xlu0 %1555
    %1557 = vrot.lane.b32.xlu0 %v219, 16
    %v1558 = vpop.permute.xlu0 %1557
    %1559 = vrot.lane.b32.xlu0 %v220, 16
    %v1560 = vpop.permute.xlu0 %1559
    %1561 = vrot.lane.b32.xlu0 %v221, 16
    %v1562 = vpop.permute.xlu0 %1561
    %1563 = vrot.lane.b32.xlu0 %v222, 16
    %v1564 = vpop.permute.xlu0 %1563
    %1605 = vrot.lane.b32.xlu0 %v36, 32
    %v1606 = vpop.permute.xlu0 %1605
    %1607 = vrot.lane.b32.xlu0 %v37, 32
    %v1608 = vpop.permute.xlu0 %1607
    %1609 = vrot.lane.b32.xlu0 %v39, 32
    %v1610 = vpop.permute.xlu0 %1609
    %1611 = vrot.lane.b32.xlu0 %v40, 32
    %v1612 = vpop.permute.xlu0 %1611
    %1613 = vrot.lane.b32.xlu0 %v42, 32
    %v1614 = vpop.permute.xlu0 %1613
    %1615 = vrot.lane.b32.xlu0 %v43, 32
    %v1616 = vpop.permute.xlu0 %1615
    %1617 = vrot.lane.b32.xlu0 %v45, 32
    %v1618 = vpop.permute.xlu0 %1617
    %1619 = vrot.lane.b32.xlu0 %v46, 32
    %v1620 = vpop.permute.xlu0 %1619
    %1621 = vrot.lane.b32.xlu0 %v48, 32
    %v1622 = vpop.permute.xlu0 %1621
    %1623 = vrot.lane.b32.xlu0 %v49, 32
    %v1624 = vpop.permute.xlu0 %1623
    %1625 = vrot.lane.b32.xlu0 %v51, 32
    %v1626 = vpop.permute.xlu0 %1625
    %1627 = vrot.lane.b32.xlu0 %v52, 32
    %v1628 = vpop.permute.xlu0 %1627
    %1629 = vrot.lane.b32.xlu0 %v54, 32
    %v1630 = vpop.permute.xlu0 %1629
    %1631 = vrot.lane.b32.xlu0 %v55, 32
    %v1632 = vpop.permute.xlu0 %1631
    %1633 = vrot.lane.b32.xlu0 %v57, 32
    %v1634 = vpop.permute.xlu0 %1633
    %1635 = vrot.lane.b32.xlu0 %v58, 32
    %v1636 = vpop.permute.xlu0 %1635
    %1637 = vrot.lane.b32.xlu0 %v60, 32
    %v1638 = vpop.permute.xlu0 %1637
    %1639 = vrot.lane.b32.xlu0 %v61, 32
    %v1640 = vpop.permute.xlu0 %1639
    %1641 = vrot.lane.b32.xlu0 %v131, 32
    %v1642 = vpop.permute.xlu0 %1641
    %1643 = vrot.lane.b32.xlu0 %v132, 32
    %v1644 = vpop.permute.xlu0 %1643
    %1645 = vrot.lane.b32.xlu0 %v134, 32
    %v1646 = vpop.permute.xlu0 %1645
    %1647 = vrot.lane.b32.xlu0 %v135, 32
    %v1648 = vpop.permute.xlu0 %1647
    %1649 = vrot.lane.b32.xlu0 %v137, 32
    %v1650 = vpop.permute.xlu0 %1649
    %1651 = vrot.lane.b32.xlu0 %v138, 32
    %v1652 = vpop.permute.xlu0 %1651
    %1653 = vrot.lane.b32.xlu0 %v140, 32
    %v1654 = vpop.permute.xlu0 %1653
    %1655 = vrot.lane.b32.xlu0 %v141, 32
    %v1656 = vpop.permute.xlu0 %1655
    %1657 = vrot.lane.b32.xlu0 %v143, 32
    %v1658 = vpop.permute.xlu0 %1657
    %1659 = vrot.lane.b32.xlu0 %v144, 32
    %v1660 = vpop.permute.xlu0 %1659
    %1661 = vrot.lane.b32.xlu0 %v146, 32
    %v1662 = vpop.permute.xlu0 %1661
    %1663 = vrot.lane.b32.xlu0 %v147, 32
    %v1664 = vpop.permute.xlu0 %1663
    %1665 = vrot.lane.b32.xlu0 %v149, 32
    %v1666 = vpop.permute.xlu0 %1665
    %1667 = vrot.lane.b32.xlu0 %v150, 32
    %v1668 = vpop.permute.xlu0 %1667
    %1669 = vrot.lane.b32.xlu0 %v152, 32
    %v1670 = vpop.permute.xlu0 %1669
    %1671 = vrot.lane.b32.xlu0 %v153, 32
    %v1672 = vpop.permute.xlu0 %1671
    %1673 = vrot.lane.b32.xlu0 %v155, 32
    %v1674 = vpop.permute.xlu0 %1673
    %1675 = vrot.lane.b32.xlu0 %v156, 32
    %v1676 = vpop.permute.xlu0 %1675
    %1717 = vrot.lane.b32.xlu0 %v65, 48
    %v1718 = vpop.permute.xlu0 %1717
    %1719 = vrot.lane.b32.xlu0 %v66, 48
    %v1720 = vpop.permute.xlu0 %1719
    %1721 = vrot.lane.b32.xlu0 %v67, 48
    %v1722 = vpop.permute.xlu0 %1721
    %1723 = vrot.lane.b32.xlu0 %v68, 48
    %v1724 = vpop.permute.xlu0 %1723
    %1725 = vrot.lane.b32.xlu0 %v69, 48
    %v1726 = vpop.permute.xlu0 %1725
    %1727 = vrot.lane.b32.xlu0 %v70, 48
    %v1728 = vpop.permute.xlu0 %1727
    %1729 = vrot.lane.b32.xlu0 %v71, 48
    %v1730 = vpop.permute.xlu0 %1729
    %1731 = vrot.lane.b32.xlu0 %v72, 48
    %v1732 = vpop.permute.xlu0 %1731
    %1733 = vrot.lane.b32.xlu0 %v73, 48
    %v1734 = vpop.permute.xlu0 %1733
    %1735 = vrot.lane.b32.xlu0 %v74, 48
    %v1736 = vpop.permute.xlu0 %1735
    %1737 = vrot.lane.b32.xlu0 %v75, 48
    %v1738 = vpop.permute.xlu0 %1737
    %1739 = vrot.lane.b32.xlu0 %v76, 48
    %v1740 = vpop.permute.xlu0 %1739
    %1741 = vrot.lane.b32.xlu0 %v77, 48
    %v1742 = vpop.permute.xlu0 %1741
    %1743 = vrot.lane.b32.xlu0 %v78, 48
    %v1744 = vpop.permute.xlu0 %1743
    %1745 = vrot.lane.b32.xlu0 %v79, 48
    %v1746 = vpop.permute.xlu0 %1745
    %1747 = vrot.lane.b32.xlu0 %v80, 48
    %v1748 = vpop.permute.xlu0 %1747
    %1749 = vrot.lane.b32.xlu0 %v81, 48
    %v1750 = vpop.permute.xlu0 %1749
    %1751 = vrot.lane.b32.xlu0 %v82, 48
    %v1752 = vpop.permute.xlu0 %1751
    %1753 = vrot.lane.b32.xlu0 %v160, 48
    %v1754 = vpop.permute.xlu0 %1753
    %1755 = vrot.lane.b32.xlu0 %v161, 48
    %v1756 = vpop.permute.xlu0 %1755
    %1757 = vrot.lane.b32.xlu0 %v162, 48
    %v1758 = vpop.permute.xlu0 %1757
    %1759 = vrot.lane.b32.xlu0 %v163, 48
    %v1760 = vpop.permute.xlu0 %1759
    %1761 = vrot.lane.b32.xlu0 %v164, 48
    %v1762 = vpop.permute.xlu0 %1761
    %1763 = vrot.lane.b32.xlu0 %v165, 48
    %v1764 = vpop.permute.xlu0 %1763
    %1765 = vrot.lane.b32.xlu0 %v166, 48
    %v1766 = vpop.permute.xlu0 %1765
    %1767 = vrot.lane.b32.xlu0 %v167, 48
    %v1768 = vpop.permute.xlu0 %1767
    %1769 = vrot.lane.b32.xlu0 %v168, 48
    %v1770 = vpop.permute.xlu0 %1769
    %1771 = vrot.lane.b32.xlu0 %v169, 48
    %v1772 = vpop.permute.xlu0 %1771
    %1773 = vrot.lane.b32.xlu0 %v170, 48
    %v1774 = vpop.permute.xlu0 %1773
    %1775 = vrot.lane.b32.xlu0 %v171, 48
    %v1776 = vpop.permute.xlu0 %1775
    %1777 = vrot.lane.b32.xlu0 %v172, 48
    %v1778 = vpop.permute.xlu0 %1777
    %1779 = vrot.lane.b32.xlu0 %v173, 48
    %v1780 = vpop.permute.xlu0 %1779
    %1781 = vrot.lane.b32.xlu0 %v174, 48
    %v1782 = vpop.permute.xlu0 %1781
    %1783 = vrot.lane.b32.xlu0 %v175, 48
    %v1784 = vpop.permute.xlu0 %1783
    %1785 = vrot.lane.b32.xlu0 %v176, 48
    %v1786 = vpop.permute.xlu0 %1785
    %1787 = vrot.lane.b32.xlu0 %v177, 48
    %v1788 = vpop.permute.xlu0 %1787
    %v1825 = vsel %vm697, %v83, %v1494
    %v1826 = vsel %vm697, %v84, %v1496
    %v1827 = vsel %vm697, %v86, %v1498
    %v1828 = vsel %vm697, %v87, %v1500
    %v1829 = vsel %vm697, %v89, %v1502
    %v1830 = vsel %vm697, %v90, %v1504
    %v1831 = vsel %vm697, %v92, %v1506
    %v1832 = vsel %vm697, %v93, %v1508
    %v1833 = vsel %vm697, %v95, %v1510
    %v1834 = vsel %vm697, %v96, %v1512
    %v1835 = vsel %vm697, %v98, %v1514
    %v1836 = vsel %vm697, %v99, %v1516
    %v1837 = vsel %vm697, %v101, %v1518
    %v1838 = vsel %vm697, %v102, %v1520
    %v1839 = vsel %vm697, %v104, %v1522
    %v1840 = vsel %vm697, %v105, %v1524
    %v1841 = vsel %vm697, %v107, %v1526
    %v1842 = vsel %vm697, %v108, %v1528
    %v1843 = vsel %vm697, %v178, %v1530
    %v1844 = vsel %vm697, %v179, %v1532
    %v1845 = vsel %vm697, %v181, %v1534
    %v1846 = vsel %vm697, %v182, %v1536
    %v1847 = vsel %vm697, %v184, %v1538
    %v1848 = vsel %vm697, %v185, %v1540
    %v1849 = vsel %vm697, %v187, %v1542
    %v1850 = vsel %vm697, %v188, %v1544
    %v1851 = vsel %vm697, %v190, %v1546
    %v1852 = vsel %vm697, %v191, %v1548
    %v1853 = vsel %vm697, %v193, %v1550
    %v1854 = vsel %vm697, %v194, %v1552
    %v1855 = vsel %vm697, %v196, %v1554
    %v1856 = vsel %vm697, %v197, %v1556
    %v1857 = vsel %vm697, %v199, %v1558
    %v1858 = vsel %vm697, %v200, %v1560
    %v1859 = vsel %vm697, %v202, %v1562
    %v1860 = vsel %vm697, %v203, %v1564
    %v1861 = vsel %vm734, %v1825, %v1606
    %v1862 = vsel %vm734, %v1826, %v1608
    %v1863 = vsel %vm734, %v1827, %v1610
    %v1864 = vsel %vm734, %v1828, %v1612
    %v1865 = vsel %vm734, %v1829, %v1614
    %v1866 = vsel %vm734, %v1830, %v1616
    %v1867 = vsel %vm734, %v1831, %v1618
    %v1868 = vsel %vm734, %v1832, %v1620
    %v1869 = vsel %vm734, %v1833, %v1622
    %v1870 = vsel %vm734, %v1834, %v1624
    %v1871 = vsel %vm734, %v1835, %v1626
    %v1872 = vsel %vm734, %v1836, %v1628
    %v1873 = vsel %vm734, %v1837, %v1630
    %v1874 = vsel %vm734, %v1838, %v1632
    %v1875 = vsel %vm734, %v1839, %v1634
    %v1876 = vsel %vm734, %v1840, %v1636
    %v1877 = vsel %vm734, %v1841, %v1638
    %v1878 = vsel %vm734, %v1842, %v1640
    %v1879 = vsel %vm734, %v1843, %v1642
    %v1880 = vsel %vm734, %v1844, %v1644
    %v1881 = vsel %vm734, %v1845, %v1646
    %v1882 = vsel %vm734, %v1846, %v1648
    %v1883 = vsel %vm734, %v1847, %v1650
    %v1884 = vsel %vm734, %v1848, %v1652
    %v1885 = vsel %vm734, %v1849, %v1654
    %v1886 = vsel %vm734, %v1850, %v1656
    %v1887 = vsel %vm734, %v1851, %v1658
    %v1888 = vsel %vm734, %v1852, %v1660
    %v1889 = vsel %vm734, %v1853, %v1662
    %v1890 = vsel %vm734, %v1854, %v1664
    %v1891 = vsel %vm734, %v1855, %v1666
    %v1892 = vsel %vm734, %v1856, %v1668
    %v1893 = vsel %vm734, %v1857, %v1670
    %v1894 = vsel %vm734, %v1858, %v1672
    %v1895 = vsel %vm734, %v1859, %v1674
    %v1896 = vsel %vm734, %v1860, %v1676
    %v1897 = vsel %vm771, %v1861, %v1718
    %v1898 = vsel %vm771, %v1862, %v1720
    %v1899 = vsel %vm771, %v1863, %v1722
    %v1900 = vsel %vm771, %v1864, %v1724
    %v1901 = vsel %vm771, %v1865, %v1726
    %v1902 = vsel %vm771, %v1866, %v1728
    %v1903 = vsel %vm771, %v1867, %v1730
    %v1904 = vsel %vm771, %v1868, %v1732
    %v1905 = vsel %vm771, %v1869, %v1734
    %v1906 = vsel %vm771, %v1870, %v1736
    %v1907 = vsel %vm771, %v1871, %v1738
    %v1908 = vsel %vm771, %v1872, %v1740
    %v1909 = vsel %vm771, %v1873, %v1742
    %v1910 = vsel %vm771, %v1874, %v1744
    %v1911 = vsel %vm771, %v1875, %v1746
    %v1912 = vsel %vm771, %v1876, %v1748
    %v1913 = vsel %vm771, %v1877, %v1750
    %v1914 = vsel %vm771, %v1878, %v1752
    %v1915 = vsel %vm771, %v1879, %v1754
    %v1916 = vsel %vm771, %v1880, %v1756
    %v1917 = vsel %vm771, %v1881, %v1758
    %v1918 = vsel %vm771, %v1882, %v1760
    %v1919 = vsel %vm771, %v1883, %v1762
    %v1920 = vsel %vm771, %v1884, %v1764
    %v1921 = vsel %vm771, %v1885, %v1766
    %v1922 = vsel %vm771, %v1886, %v1768
    %v1923 = vsel %vm771, %v1887, %v1770
    %v1924 = vsel %vm771, %v1888, %v1772
    %v1925 = vsel %vm771, %v1889, %v1774
    %v1926 = vsel %vm771, %v1890, %v1776
    %v1927 = vsel %vm771, %v1891, %v1778
    %v1928 = vsel %vm771, %v1892, %v1780
    %v1929 = vsel %vm771, %v1893, %v1782
    %v1930 = vsel %vm771, %v1894, %v1784
    %v1931 = vsel %vm771, %v1895, %v1786
    %v1932 = vsel %vm771, %v1896, %v1788
    %1933 = vrot.lane.b32.xlu0 %v1189, 16
    %v1934 = vpop.permute.xlu0 %1933
    %1935 = vrot.lane.b32.xlu0 %v1191, 16
    %v1936 = vpop.permute.xlu0 %1935
    %1937 = vrot.lane.b32.xlu0 %v1194, 16
    %v1938 = vpop.permute.xlu0 %1937
    %1939 = vrot.lane.b32.xlu0 %v1196, 16
    %v1940 = vpop.permute.xlu0 %1939
    %1941 = vrot.lane.b32.xlu0 %v1199, 16
    %v1942 = vpop.permute.xlu0 %1941
    %1943 = vrot.lane.b32.xlu0 %v1201, 16
    %v1944 = vpop.permute.xlu0 %1943
    %1945 = vrot.lane.b32.xlu0 %v1204, 16
    %v1946 = vpop.permute.xlu0 %1945
    %1947 = vrot.lane.b32.xlu0 %v1206, 16
    %v1948 = vpop.permute.xlu0 %1947
    %1949 = vrot.lane.b32.xlu0 %v1209, 16
    %v1950 = vpop.permute.xlu0 %1949
    %1951 = vrot.lane.b32.xlu0 %v1211, 16
    %v1952 = vpop.permute.xlu0 %1951
    %1953 = vrot.lane.b32.xlu0 %v1214, 16
    %v1954 = vpop.permute.xlu0 %1953
    %1955 = vrot.lane.b32.xlu0 %v1216, 16
    %v1956 = vpop.permute.xlu0 %1955
    %1957 = vrot.lane.b32.xlu0 %v1219, 16
    %v1958 = vpop.permute.xlu0 %1957
    %1959 = vrot.lane.b32.xlu0 %v1221, 16
    %v1960 = vpop.permute.xlu0 %1959
    %1961 = vrot.lane.b32.xlu0 %v1224, 16
    %v1962 = vpop.permute.xlu0 %1961
    %1963 = vrot.lane.b32.xlu0 %v1226, 16
    %v1964 = vpop.permute.xlu0 %1963
    %1965 = vrot.lane.b32.xlu0 %v1229, 16
    %v1966 = vpop.permute.xlu0 %1965
    %1967 = vrot.lane.b32.xlu0 %v1231, 16
    %v1968 = vpop.permute.xlu0 %1967
    %1969 = vrot.lane.b32.xlu0 %v1234, 16
    %v1970 = vpop.permute.xlu0 %1969
    %1971 = vrot.lane.b32.xlu0 %v1236, 16
    %v1972 = vpop.permute.xlu0 %1971
    %1973 = vrot.lane.b32.xlu0 %v1239, 16
    %v1974 = vpop.permute.xlu0 %1973
    %1975 = vrot.lane.b32.xlu0 %v1241, 16
    %v1976 = vpop.permute.xlu0 %1975
    %1977 = vrot.lane.b32.xlu0 %v1244, 16
    %v1978 = vpop.permute.xlu0 %1977
    %1979 = vrot.lane.b32.xlu0 %v1246, 16
    %v1980 = vpop.permute.xlu0 %1979
    %1981 = vrot.lane.b32.xlu0 %v1249, 16
    %v1982 = vpop.permute.xlu0 %1981
    %1983 = vrot.lane.b32.xlu0 %v1251, 16
    %v1984 = vpop.permute.xlu0 %1983
    %1985 = vrot.lane.b32.xlu0 %v1254, 16
    %v1986 = vpop.permute.xlu0 %1985
    %1987 = vrot.lane.b32.xlu0 %v1256, 16
    %v1988 = vpop.permute.xlu0 %1987
    %1989 = vrot.lane.b32.xlu0 %v1259, 16
    %v1990 = vpop.permute.xlu0 %1989
    %1991 = vrot.lane.b32.xlu0 %v1261, 16
    %v1992 = vpop.permute.xlu0 %1991
    %1993 = vrot.lane.b32.xlu0 %v1264, 16
    %v1994 = vpop.permute.xlu0 %1993
    %1995 = vrot.lane.b32.xlu0 %v1266, 16
    %v1996 = vpop.permute.xlu0 %1995
    %1997 = vrot.lane.b32.xlu0 %v1269, 16
    %v1998 = vpop.permute.xlu0 %1997
    %1999 = vrot.lane.b32.xlu0 %v1271, 16
    %v2000 = vpop.permute.xlu0 %1999
    %2001 = vrot.lane.b32.xlu0 %v1274, 16
    %v2002 = vpop.permute.xlu0 %2001
    %2003 = vrot.lane.b32.xlu0 %v1276, 16
    %v2004 = vpop.permute.xlu0 %2003
    %2041 = vrot.lane.b32.xlu0 %v65, 32
    %v2042 = vpop.permute.xlu0 %2041
    %2043 = vrot.lane.b32.xlu0 %v66, 32
    %v2044 = vpop.permute.xlu0 %2043
    %2045 = vrot.lane.b32.xlu0 %v67, 32
    %v2046 = vpop.permute.xlu0 %2045
    %2047 = vrot.lane.b32.xlu0 %v68, 32
    %v2048 = vpop.permute.xlu0 %2047
    %2049 = vrot.lane.b32.xlu0 %v69, 32
    %v2050 = vpop.permute.xlu0 %2049
    %2051 = vrot.lane.b32.xlu0 %v70, 32
    %v2052 = vpop.permute.xlu0 %2051
    %2053 = vrot.lane.b32.xlu0 %v71, 32
    %v2054 = vpop.permute.xlu0 %2053
    %2055 = vrot.lane.b32.xlu0 %v72, 32
    %v2056 = vpop.permute.xlu0 %2055
    %2057 = vrot.lane.b32.xlu0 %v73, 32
    %v2058 = vpop.permute.xlu0 %2057
    %2059 = vrot.lane.b32.xlu0 %v74, 32
    %v2060 = vpop.permute.xlu0 %2059
    %2061 = vrot.lane.b32.xlu0 %v75, 32
    %v2062 = vpop.permute.xlu0 %2061
    %2063 = vrot.lane.b32.xlu0 %v76, 32
    %v2064 = vpop.permute.xlu0 %2063
    %2065 = vrot.lane.b32.xlu0 %v77, 32
    %v2066 = vpop.permute.xlu0 %2065
    %2067 = vrot.lane.b32.xlu0 %v78, 32
    %v2068 = vpop.permute.xlu0 %2067
    %2069 = vrot.lane.b32.xlu0 %v79, 32
    %v2070 = vpop.permute.xlu0 %2069
    %2071 = vrot.lane.b32.xlu0 %v80, 32
    %v2072 = vpop.permute.xlu0 %2071
    %2073 = vrot.lane.b32.xlu0 %v81, 32
    %v2074 = vpop.permute.xlu0 %2073
    %2075 = vrot.lane.b32.xlu0 %v82, 32
    %v2076 = vpop.permute.xlu0 %2075
    %2077 = vrot.lane.b32.xlu0 %v160, 32
    %v2078 = vpop.permute.xlu0 %2077
    %2079 = vrot.lane.b32.xlu0 %v161, 32
    %v2080 = vpop.permute.xlu0 %2079
    %2081 = vrot.lane.b32.xlu0 %v162, 32
    %v2082 = vpop.permute.xlu0 %2081
    %2083 = vrot.lane.b32.xlu0 %v163, 32
    %v2084 = vpop.permute.xlu0 %2083
    %2085 = vrot.lane.b32.xlu0 %v164, 32
    %v2086 = vpop.permute.xlu0 %2085
    %2087 = vrot.lane.b32.xlu0 %v165, 32
    %v2088 = vpop.permute.xlu0 %2087
    %2089 = vrot.lane.b32.xlu0 %v166, 32
    %v2090 = vpop.permute.xlu0 %2089
    %2091 = vrot.lane.b32.xlu0 %v167, 32
    %v2092 = vpop.permute.xlu0 %2091
    %2093 = vrot.lane.b32.xlu0 %v168, 32
    %v2094 = vpop.permute.xlu0 %2093
    %2095 = vrot.lane.b32.xlu0 %v169, 32
    %v2096 = vpop.permute.xlu0 %2095
    %2097 = vrot.lane.b32.xlu0 %v170, 32
    %v2098 = vpop.permute.xlu0 %2097
    %2099 = vrot.lane.b32.xlu0 %v171, 32
    %v2100 = vpop.permute.xlu0 %2099
    %2101 = vrot.lane.b32.xlu0 %v172, 32
    %v2102 = vpop.permute.xlu0 %2101
    %2103 = vrot.lane.b32.xlu0 %v173, 32
    %v2104 = vpop.permute.xlu0 %2103
    %2105 = vrot.lane.b32.xlu0 %v174, 32
    %v2106 = vpop.permute.xlu0 %2105
    %2107 = vrot.lane.b32.xlu0 %v175, 32
    %v2108 = vpop.permute.xlu0 %2107
    %2109 = vrot.lane.b32.xlu0 %v176, 32
    %v2110 = vpop.permute.xlu0 %2109
    %2111 = vrot.lane.b32.xlu0 %v177, 32
    %v2112 = vpop.permute.xlu0 %2111
    %v2151 = vrot.slane %v60, 1
    %v2152 = vrot.slane %v61, 1
    %v2153 = vsel %vm862, %v2151, %v2152
    %v2154 = vrot.slane %v62, 1
    %v2155 = vsel %vm862, %v2152, %v2154
    %v2156 = vrot.slane %v155, 1
    %v2157 = vrot.slane %v156, 1
    %v2158 = vsel %vm862, %v2156, %v2157
    %v2159 = vrot.slane %v157, 1
    %v2160 = vsel %vm862, %v2157, %v2159
    %2161 = vrot.lane.b32.xlu0 %v870, 48
    %v2162 = vpop.permute.xlu0 %2161
    %2163 = vrot.lane.b32.xlu0 %v872, 48
    %v2164 = vpop.permute.xlu0 %2163
    %2165 = vrot.lane.b32.xlu0 %v875, 48
    %v2166 = vpop.permute.xlu0 %2165
    %2167 = vrot.lane.b32.xlu0 %v877, 48
    %v2168 = vpop.permute.xlu0 %2167
    %2169 = vrot.lane.b32.xlu0 %v880, 48
    %v2170 = vpop.permute.xlu0 %2169
    %2171 = vrot.lane.b32.xlu0 %v882, 48
    %v2172 = vpop.permute.xlu0 %2171
    %2173 = vrot.lane.b32.xlu0 %v885, 48
    %v2174 = vpop.permute.xlu0 %2173
    %2175 = vrot.lane.b32.xlu0 %v887, 48
    %v2176 = vpop.permute.xlu0 %2175
    %2177 = vrot.lane.b32.xlu0 %v890, 48
    %v2178 = vpop.permute.xlu0 %2177
    %2179 = vrot.lane.b32.xlu0 %v892, 48
    %v2180 = vpop.permute.xlu0 %2179
    %2181 = vrot.lane.b32.xlu0 %v895, 48
    %v2182 = vpop.permute.xlu0 %2181
    %2183 = vrot.lane.b32.xlu0 %v897, 48
    %v2184 = vpop.permute.xlu0 %2183
    %2185 = vrot.lane.b32.xlu0 %v900, 48
    %v2186 = vpop.permute.xlu0 %2185
    %2187 = vrot.lane.b32.xlu0 %v902, 48
    %v2188 = vpop.permute.xlu0 %2187
    %2189 = vrot.lane.b32.xlu0 %v905, 48
    %v2190 = vpop.permute.xlu0 %2189
    %2191 = vrot.lane.b32.xlu0 %v907, 48
    %v2192 = vpop.permute.xlu0 %2191
    %2193 = vrot.lane.b32.xlu0 %v2153, 48
    %v2194 = vpop.permute.xlu0 %2193
    %2195 = vrot.lane.b32.xlu0 %v2155, 48
    %v2196 = vpop.permute.xlu0 %2195
    %2197 = vrot.lane.b32.xlu0 %v915, 48
    %v2198 = vpop.permute.xlu0 %2197
    %2199 = vrot.lane.b32.xlu0 %v917, 48
    %v2200 = vpop.permute.xlu0 %2199
    %2201 = vrot.lane.b32.xlu0 %v920, 48
    %v2202 = vpop.permute.xlu0 %2201
    %2203 = vrot.lane.b32.xlu0 %v922, 48
    %v2204 = vpop.permute.xlu0 %2203
    %2205 = vrot.lane.b32.xlu0 %v925, 48
    %v2206 = vpop.permute.xlu0 %2205
    %2207 = vrot.lane.b32.xlu0 %v927, 48
    %v2208 = vpop.permute.xlu0 %2207
    %2209 = vrot.lane.b32.xlu0 %v930, 48
    %v2210 = vpop.permute.xlu0 %2209
    %2211 = vrot.lane.b32.xlu0 %v932, 48
    %v2212 = vpop.permute.xlu0 %2211
    %2213 = vrot.lane.b32.xlu0 %v935, 48
    %v2214 = vpop.permute.xlu0 %2213
    %2215 = vrot.lane.b32.xlu0 %v937, 48
    %v2216 = vpop.permute.xlu0 %2215
    %2217 = vrot.lane.b32.xlu0 %v940, 48
    %v2218 = vpop.permute.xlu0 %2217
    %2219 = vrot.lane.b32.xlu0 %v942, 48
    %v2220 = vpop.permute.xlu0 %2219
    %2221 = vrot.lane.b32.xlu0 %v945, 48
    %v2222 = vpop.permute.xlu0 %2221
    %2223 = vrot.lane.b32.xlu0 %v947, 48
    %v2224 = vpop.permute.xlu0 %2223
    %2225 = vrot.lane.b32.xlu0 %v950, 48
    %v2226 = vpop.permute.xlu0 %2225
    %2227 = vrot.lane.b32.xlu0 %v952, 48
    %v2228 = vpop.permute.xlu0 %2227
    %2229 = vrot.lane.b32.xlu0 %v2158, 48
    %v2230 = vpop.permute.xlu0 %2229
    %2231 = vrot.lane.b32.xlu0 %v2160, 48
    %v2232 = vpop.permute.xlu0 %2231
    %v2269 = vsel %vm697, %v110, %v1934
    %v2270 = vsel %vm697, %v111, %v1936
    %v2271 = vsel %vm697, %v112, %v1938
    %v2272 = vsel %vm697, %v113, %v1940
    %v2273 = vsel %vm697, %v114, %v1942
    %v2274 = vsel %vm697, %v115, %v1944
    %v2275 = vsel %vm697, %v116, %v1946
    %v2276 = vsel %vm697, %v117, %v1948
    %v2277 = vsel %vm697, %v118, %v1950
    %v2278 = vsel %vm697, %v119, %v1952
    %v2279 = vsel %vm697, %v120, %v1954
    %v2280 = vsel %vm697, %v121, %v1956
    %v2281 = vsel %vm697, %v122, %v1958
    %v2282 = vsel %vm697, %v123, %v1960
    %v2283 = vsel %vm697, %v124, %v1962
    %v2284 = vsel %vm697, %v125, %v1964
    %v2285 = vsel %vm697, %v126, %v1966
    %v2286 = vsel %vm697, %v127, %v1968
    %v2287 = vsel %vm697, %v205, %v1970
    %v2288 = vsel %vm697, %v206, %v1972
    %v2289 = vsel %vm697, %v207, %v1974
    %v2290 = vsel %vm697, %v208, %v1976
    %v2291 = vsel %vm697, %v209, %v1978
    %v2292 = vsel %vm697, %v210, %v1980
    %v2293 = vsel %vm697, %v211, %v1982
    %v2294 = vsel %vm697, %v212, %v1984
    %v2295 = vsel %vm697, %v213, %v1986
    %v2296 = vsel %vm697, %v214, %v1988
    %v2297 = vsel %vm697, %v215, %v1990
    %v2298 = vsel %vm697, %v216, %v1992
    %v2299 = vsel %vm697, %v217, %v1994
    %v2300 = vsel %vm697, %v218, %v1996
    %v2301 = vsel %vm697, %v219, %v1998
    %v2302 = vsel %vm697, %v220, %v2000
    %v2303 = vsel %vm697, %v221, %v2002
    %v2304 = vsel %vm697, %v222, %v2004
    %v2305 = vsel %vm734, %v2269, %v2042
    %v2306 = vsel %vm734, %v2270, %v2044
    %v2307 = vsel %vm734, %v2271, %v2046
    %v2308 = vsel %vm734, %v2272, %v2048
    %v2309 = vsel %vm734, %v2273, %v2050
    %v2310 = vsel %vm734, %v2274, %v2052
    %v2311 = vsel %vm734, %v2275, %v2054
    %v2312 = vsel %vm734, %v2276, %v2056
    %v2313 = vsel %vm734, %v2277, %v2058
    %v2314 = vsel %vm734, %v2278, %v2060
    %v2315 = vsel %vm734, %v2279, %v2062
    %v2316 = vsel %vm734, %v2280, %v2064
    %v2317 = vsel %vm734, %v2281, %v2066
    %v2318 = vsel %vm734, %v2282, %v2068
    %v2319 = vsel %vm734, %v2283, %v2070
    %v2320 = vsel %vm734, %v2284, %v2072
    %v2321 = vsel %vm734, %v2285, %v2074
    %v2322 = vsel %vm734, %v2286, %v2076
    %v2323 = vsel %vm734, %v2287, %v2078
    %v2324 = vsel %vm734, %v2288, %v2080
    %v2325 = vsel %vm734, %v2289, %v2082
    %v2326 = vsel %vm734, %v2290, %v2084
    %v2327 = vsel %vm734, %v2291, %v2086
    %v2328 = vsel %vm734, %v2292, %v2088
    %v2329 = vsel %vm734, %v2293, %v2090
    %v2330 = vsel %vm734, %v2294, %v2092
    %v2331 = vsel %vm734, %v2295, %v2094
    %v2332 = vsel %vm734, %v2296, %v2096
    %v2333 = vsel %vm734, %v2297, %v2098
    %v2334 = vsel %vm734, %v2298, %v2100
    %v2335 = vsel %vm734, %v2299, %v2102
    %v2336 = vsel %vm734, %v2300, %v2104
    %v2337 = vsel %vm734, %v2301, %v2106
    %v2338 = vsel %vm734, %v2302, %v2108
    %v2339 = vsel %vm734, %v2303, %v2110
    %v2340 = vsel %vm734, %v2304, %v2112
    %v2341 = vsel %vm771, %v2305, %v2162
    %v2342 = vsel %vm771, %v2306, %v2164
    %v2343 = vsel %vm771, %v2307, %v2166
    %v2344 = vsel %vm771, %v2308, %v2168
    %v2345 = vsel %vm771, %v2309, %v2170
    %v2346 = vsel %vm771, %v2310, %v2172
    %v2347 = vsel %vm771, %v2311, %v2174
    %v2348 = vsel %vm771, %v2312, %v2176
    %v2349 = vsel %vm771, %v2313, %v2178
    %v2350 = vsel %vm771, %v2314, %v2180
    %v2351 = vsel %vm771, %v2315, %v2182
    %v2352 = vsel %vm771, %v2316, %v2184
    %v2353 = vsel %vm771, %v2317, %v2186
    %v2354 = vsel %vm771, %v2318, %v2188
    %v2355 = vsel %vm771, %v2319, %v2190
    %v2356 = vsel %vm771, %v2320, %v2192
    %v2357 = vsel %vm771, %v2321, %v2194
    %v2358 = vsel %vm771, %v2322, %v2196
    %v2359 = vsel %vm771, %v2323, %v2198
    %v2360 = vsel %vm771, %v2324, %v2200
    %v2361 = vsel %vm771, %v2325, %v2202
    %v2362 = vsel %vm771, %v2326, %v2204
    %v2363 = vsel %vm771, %v2327, %v2206
    %v2364 = vsel %vm771, %v2328, %v2208
    %v2365 = vsel %vm771, %v2329, %v2210
    %v2366 = vsel %vm771, %v2330, %v2212
    %v2367 = vsel %vm771, %v2331, %v2214
    %v2368 = vsel %vm771, %v2332, %v2216
    %v2369 = vsel %vm771, %v2333, %v2218
    %v2370 = vsel %vm771, %v2334, %v2220
    %v2371 = vsel %vm771, %v2335, %v2222
    %v2372 = vsel %vm771, %v2336, %v2224
    %v2373 = vsel %vm771, %v2337, %v2226
    %v2374 = vsel %vm771, %v2338, %v2228
    %v2375 = vsel %vm771, %v2339, %v2230
    %v2376 = vsel %vm771, %v2340, %v2232
    %v2378 = vlaneseq
    %v2379 = vshrl.u32 %v2378, 7
    %v2380 = vsub.s32 0, %v2379
    %v2381 = vrot.slane %v231, %v2380
    %vm2383 = vcmask 523264
    %v2385 = vsel %vm2383, %v772, 0
    %v2388 = vsel %vm2383, %v773, 0
    %v2391 = vsel %vm2383, %v774, 0
    %v2394 = vsel %vm2383, %v775, 0
    %v2397 = vsel %vm2383, %v776, 0
    %v2400 = vsel %vm2383, %v777, 0
    %v2403 = vsel %vm2383, %v778, 0
    %v2406 = vsel %vm2383, %v779, 0
    %v2409 = vsel %vm2383, %v780, 0
    %v2412 = vsel %vm2383, %v781, 0
    %v2415 = vsel %vm2383, %v782, 0
    %v2418 = vsel %vm2383, %v783, 0
    %v2421 = vsel %vm2383, %v784, 0
    %v2424 = vsel %vm2383, %v785, 0
    %v2427 = vsel %vm2383, %v786, 0
    %v2430 = vsel %vm2383, %v787, 0
    %v2433 = vsel %vm2383, %v788, 0
    %v2436 = vsel %vm2383, %v789, 0
    %v2439 = vsel %vm2383, %v790, 0
    %v2442 = vsel %vm2383, %v791, 0
    %v2445 = vsel %vm2383, %v792, 0
    %v2448 = vsel %vm2383, %v793, 0
    %v2451 = vsel %vm2383, %v794, 0
    %v2454 = vsel %vm2383, %v795, 0
    %v2457 = vsel %vm2383, %v796, 0
    %v2460 = vsel %vm2383, %v797, 0
    %v2463 = vsel %vm2383, %v798, 0
    %v2466 = vsel %vm2383, %v799, 0
    %v2469 = vsel %vm2383, %v800, 0
    %v2472 = vsel %vm2383, %v801, 0
    %v2475 = vsel %vm2383, %v802, 0
    %v2478 = vsel %vm2383, %v803, 0
    %v2481 = vsel %vm2383, %v804, 0
    %v2484 = vsel %vm2383, %v805, 0
    %v2487 = vsel %vm2383, %v806, 0
    %v2490 = vsel %vm2383, %v807, 0
    %v2493 = vsel %vm2383, %v1457, 0
    %v2496 = vsel %vm2383, %v1458, 0
    %v2499 = vsel %vm2383, %v1459, 0
    %v2502 = vsel %vm2383, %v1460, 0
    %v2505 = vsel %vm2383, %v1461, 0
    %v2508 = vsel %vm2383, %v1462, 0
    %v2511 = vsel %vm2383, %v1463, 0
    %v2514 = vsel %vm2383, %v1464, 0
    %v2517 = vsel %vm2383, %v1465, 0
    %v2520 = vsel %vm2383, %v1466, 0
    %v2523 = vsel %vm2383, %v1467, 0
    %v2526 = vsel %vm2383, %v1468, 0
    %v2529 = vsel %vm2383, %v1469, 0
    %v2532 = vsel %vm2383, %v1470, 0
    %v2535 = vsel %vm2383, %v1471, 0
    %v2538 = vsel %vm2383, %v1472, 0
    %v2541 = vsel %vm2383, %v1473, 0
    %v2544 = vsel %vm2383, %v1474, 0
    %v2547 = vsel %vm2383, %v1475, 0
    %v2550 = vsel %vm2383, %v1476, 0
    %v2553 = vsel %vm2383, %v1477, 0
    %v2556 = vsel %vm2383, %v1478, 0
    %v2559 = vsel %vm2383, %v1479, 0
    %v2562 = vsel %vm2383, %v1480, 0
    %v2565 = vsel %vm2383, %v1481, 0
    %v2568 = vsel %vm2383, %v1482, 0
    %v2571 = vsel %vm2383, %v1483, 0
    %v2574 = vsel %vm2383, %v1484, 0
    %v2577 = vsel %vm2383, %v1485, 0
    %v2580 = vsel %vm2383, %v1486, 0
    %v2583 = vsel %vm2383, %v1487, 0
    %v2586 = vsel %vm2383, %v1488, 0
    %v2589 = vsel %vm2383, %v1489, 0
    %v2592 = vsel %vm2383, %v1490, 0
    %v2595 = vsel %vm2383, %v1491, 0
    %v2598 = vsel %vm2383, %v1492, 0
    %v2601 = vsel %vm2383, %v1897, 0
    %v2604 = vsel %vm2383, %v1898, 0
    %v2607 = vsel %vm2383, %v1899, 0
    %v2610 = vsel %vm2383, %v1900, 0
    %v2613 = vsel %vm2383, %v1901, 0
    %v2616 = vsel %vm2383, %v1902, 0
    %v2619 = vsel %vm2383, %v1903, 0
    %v2622 = vsel %vm2383, %v1904, 0
    %v2625 = vsel %vm2383, %v1905, 0
    %v2628 = vsel %vm2383, %v1906, 0
    %v2631 = vsel %vm2383, %v1907, 0
    %v2634 = vsel %vm2383, %v1908, 0
    %v2637 = vsel %vm2383, %v1909, 0
    %v2640 = vsel %vm2383, %v1910, 0
    %v2643 = vsel %vm2383, %v1911, 0
    %v2646 = vsel %vm2383, %v1912, 0
    %v2649 = vsel %vm2383, %v1913, 0
    %v2652 = vsel %vm2383, %v1914, 0
    %v2655 = vsel %vm2383, %v1915, 0
    %v2658 = vsel %vm2383, %v1916, 0
    %v2661 = vsel %vm2383, %v1917, 0
    %v2664 = vsel %vm2383, %v1918, 0
    %v2667 = vsel %vm2383, %v1919, 0
    %v2670 = vsel %vm2383, %v1920, 0
    %v2673 = vsel %vm2383, %v1921, 0
    %v2676 = vsel %vm2383, %v1922, 0
    %v2679 = vsel %vm2383, %v1923, 0
    %v2682 = vsel %vm2383, %v1924, 0
    %v2685 = vsel %vm2383, %v1925, 0
    %v2688 = vsel %vm2383, %v1926, 0
    %v2691 = vsel %vm2383, %v1927, 0
    %v2694 = vsel %vm2383, %v1928, 0
    %v2697 = vsel %vm2383, %v1929, 0
    %v2700 = vsel %vm2383, %v1930, 0
    %v2703 = vsel %vm2383, %v1931, 0
    %v2706 = vsel %vm2383, %v1932, 0
    %v2709 = vsel %vm2383, %v2341, 0
    %v2712 = vsel %vm2383, %v2342, 0
    %v2715 = vsel %vm2383, %v2343, 0
    %v2718 = vsel %vm2383, %v2344, 0
    %v2721 = vsel %vm2383, %v2345, 0
    %v2724 = vsel %vm2383, %v2346, 0
    %v2727 = vsel %vm2383, %v2347, 0
    %v2730 = vsel %vm2383, %v2348, 0
    %v2733 = vsel %vm2383, %v2349, 0
    %v2736 = vsel %vm2383, %v2350, 0
    %v2739 = vsel %vm2383, %v2351, 0
    %v2742 = vsel %vm2383, %v2352, 0
    %v2745 = vsel %vm2383, %v2353, 0
    %v2748 = vsel %vm2383, %v2354, 0
    %v2751 = vsel %vm2383, %v2355, 0
    %v2754 = vsel %vm2383, %v2356, 0
    %v2757 = vsel %vm2383, %v2357, 0
    %v2760 = vsel %vm2383, %v2358, 0
    %v2763 = vsel %vm2383, %v2359, 0
    %v2766 = vsel %vm2383, %v2360, 0
    %v2769 = vsel %vm2383, %v2361, 0
    %v2772 = vsel %vm2383, %v2362, 0
    %v2775 = vsel %vm2383, %v2363, 0
    %v2778 = vsel %vm2383, %v2364, 0
    %v2781 = vsel %vm2383, %v2365, 0
    %v2784 = vsel %vm2383, %v2366, 0
    %v2787 = vsel %vm2383, %v2367, 0
    %v2790 = vsel %vm2383, %v2368, 0
    %v2793 = vsel %vm2383, %v2369, 0
    %v2796 = vsel %vm2383, %v2370, 0
    %v2799 = vsel %vm2383, %v2371, 0
    %v2802 = vsel %vm2383, %v2372, 0
    %v2805 = vsel %vm2383, %v2373, 0
    %v2808 = vsel %vm2383, %v2374, 0
    %v2811 = vsel %vm2383, %v2375, 0
    %v2814 = vsel %vm2383, %v2376, 0
    %2816 = vmatprep.subr.mxu0 0.0
    %2817 = vmatpush1.msra.mxu0 %v223
    %2818 = vmatprep.subr.mxu0 0.0
    %2819 = vmatpush1.msra.mxu0 %v224
    %2820 = vmatprep.subr.mxu0 0.0
    %2821 = vmatpush1.msra.mxu0 %v225
    %2822 = vmatprep.subr.mxu0 0.0
    %2823 = vmatpush1.msra.mxu0 %v226
    %2824 = vmatprep.subr.mxu0 0.0
    %2825 = vmatpush1.msra.mxu0 %v227
    %2826 = vmatprep.subr.mxu0 0.0
    %2827 = vmatpush1.msra.mxu0 %v228
    %2828 = vmatprep.subr.mxu0 0.0
    %2829 = vmatpush1.msra.mxu0 %v229
    %2830 = vmatprep.subr.mxu0 0.0
    %2831 = vmatpush1.msra.mxu0 %v230
    %2832 = vmatprep.subr.mxu0 0.0
    %2833 = vmatpush1.msra.mxu0 0.0
    %2834 = vmatprep.subr.mxu0 0.0
    %2835 = vmatpush1.msra.mxu0 0.0
    %2836 = vmatprep.subr.mxu0 0.0
    %2837 = vmatpush1.msra.mxu0 0.0
    %2838 = vmatprep.subr.mxu0 0.0
    %2839 = vmatpush1.msra.mxu0 0.0
    %2840 = vmatprep.subr.mxu0 0.0
    %2841 = vmatpush1.msra.mxu0 0.0
    %2842 = vmatprep.subr.mxu0 0.0
    %2843 = vmatpush1.msra.mxu0 0.0
    %2844 = vmatprep.subr.mxu0 0.0
    %2845 = vmatpush1.msra.mxu0 0.0
    %2846 = vmatprep.subr.mxu0 0.0
    %2847 = vmatpush1.msra.mxu0 0.0
    %2848 = vmatprep.subr.mxu0 0.0
    %2849 = vmatpush1.msra.mxu0 0.0
    %2850 = vmatprep.subr.mxu0 0.0
    %2851 = vmatpush1.msra.mxu0 0.0
    %2852 = vmatprep.subr.mxu0 0.0
    %2853 = vmatpush1.msra.mxu0 0.0
    %2854 = vmatprep.subr.mxu0 0.0
    %2855 = vmatpush1.msra.mxu0 0.0
    %2856 = vmatprep.subr.mxu0 0.0
    %2857 = vmatpush1.msra.mxu0 0.0
    %2858 = vmatprep.subr.mxu0 0.0
    %2859 = vmatpush1.msra.mxu0 0.0
    %2860 = vmatprep.subr.mxu0 0.0
    %2861 = vmatpush1.msra.mxu0 0.0
    %2862 = vmatprep.subr.mxu0 0.0
    %2863 = vmatpush1.msra.mxu0 0.0
    %2864 = vmatprep.subr.mxu0 0.0
    %2865 = vmatpush1.msra.mxu0 0.0
    %2866 = vmatprep.subr.mxu0 0.0
    %2867 = vmatpush1.msra.mxu0 0.0
    %2868 = vmatprep.subr.mxu0 0.0
    %2869 = vmatpush1.msra.mxu0 0.0
    %2870 = vmatprep.subr.mxu0 0.0
    %2871 = vmatpush1.msra.mxu0 0.0
    %2872 = vmatprep.subr.mxu0 0.0
    %2873 = vmatpush1.msra.mxu0 0.0
    %2874 = vmatprep.subr.mxu0 0.0
    %2875 = vmatpush1.msra.mxu0 0.0
    %2876 = vmatprep.subr.mxu0 0.0
    %2877 = vmatpush1.msra.mxu0 0.0
    %2878 = vmatprep.subr.mxu0 0.0
    %2879 = vmatpush1.msra.mxu0 0.0
    %2880 = vmatprep.mubr.f32.mxu0 0.0
    %2881 = vmatmul.mubr.f32.gmra.mrb[0].mxu0 %v2385
    %v2882 = vpop.f32.mrb[0].mxu0
    %v2883 = vadd.f32 %v2381, %v2882
    %v2884 = vpop.f32.mrb[0].mxu0
    %2885 = vmatprep.mubr.f32.mxu0 0.0
    %2886 = vmatmul.mubr.f32.gmra.mrb[0].mxu0 %v2388
    %v2887 = vpop.f32.mrb[0].mxu0
    %v2888 = vadd.f32 %v2381, %v2887
    %v2889 = vpop.f32.mrb[0].mxu0
    %2890 = vmatprep.mubr.f32.mxu0 0.0
    %2891 = vmatmul.mubr.f32.gmra.mrb[0].mxu0 %v2391
    %v2892 = vpop.f32.mrb[0].mxu0
    %v2893 = vadd.f32 %v2381, %v2892
    %v2894 = vpop.f32.mrb[0].mxu0
    %2895 = vmatprep.mubr.f32.mxu0 0.0
    %2896 = vmatmul.mubr.f32.gmra.mrb[0].mxu0 %v2394
    %v2897 = vpop.f32.mrb[0].mxu0
    %v2898 = vadd.f32 %v2381, %v2897
    %v2899 = vpop.f32.mrb[0].mxu0
    %2900 = vmatprep.mubr.f32.mxu0 0.0
    %2901 = vmatmul.mubr.f32.gmra.mrb[0].mxu0 %v2397
    %v2902 = vpop.f32.mrb[0].mxu0
    %v2903 = vadd.f32 %v2381, %v2902
    %v2904 = vpop.f32.mrb[0].mxu0
    %2905 = vmatprep.mubr.f32.mxu0 0.0
    %2906 = vmatmul.mubr.f32.gmra.mrb[0].mxu0 %v2400
    %v2907 = vpop.f32.mrb[0].mxu0
    %v2908 = vadd.f32 %v2381, %v2907
    %v2909 = vpop.f32.mrb[0].mxu0
    %2910 = vmatprep.mubr.f32.mxu0 0.0
    %2911 = vmatmul.mubr.f32.gmra.mrb[0].mxu0 %v2403
    %v2912 = vpop.f32.mrb[0].mxu0
    %v2913 = vadd.f32 %v2381, %v2912
    %v2914 = vpop.f32.mrb[0].mxu0
    %2915 = vmatprep.mubr.f32.mxu0 0.0
    %2916 = vmatmul.mubr.f32.gmra.mrb[0].mxu0 %v2406
    %v2917 = vpop.f32.mrb[0].mxu0
    %v2918 = vadd.f32 %v2381, %v2917
    %v2919 = vpop.f32.mrb[0].mxu0
    %2920 = vmatprep.mubr.f32.mxu0 0.0
    %2921 = vmatmul.mubr.f32.gmra.mrb[0].mxu0 %v2409
    %v2922 = vpop.f32.mrb[0].mxu0
    %v2923 = vadd.f32 %v2381, %v2922
    %v2924 = vpop.f32.mrb[0].mxu0
    %2925 = vmatprep.mubr.f32.mxu0 0.0
    %2926 = vmatmul.mubr.f32.gmra.mrb[0].mxu0 %v2412
    %v2927 = vpop.f32.mrb[0].mxu0
    %v2928 = vadd.f32 %v2381, %v2927
    %v2929 = vpop.f32.mrb[0].mxu0
    %2930 = vmatprep.mubr.f32.mxu0 0.0
    %2931 = vmatmul.mubr.f32.gmra.mrb[0].mxu0 %v2415
    %v2932 = vpop.f32.mrb[0].mxu0
    %v2933 = vadd.f32 %v2381, %v2932
    %v2934 = vpop.f32.mrb[0].mxu0
    %2935 = vmatprep.mubr.f32.mxu0 0.0
    %2936 = vmatmul.mubr.f32.gmra.mrb[0].mxu0 %v2418
    %v2937 = vpop.f32.mrb[0].mxu0
    %v2938 = vadd.f32 %v2381, %v2937
    %v2939 = vpop.f32.mrb[0].mxu0
    %2940 = vmatprep.mubr.f32.mxu0 0.0
    %2941 = vmatmul.mubr.f32.gmra.mrb[0].mxu0 %v2421
    %v2942 = vpop.f32.mrb[0].mxu0
    %v2943 = vadd.f32 %v2381, %v2942
    %v2944 = vpop.f32.mrb[0].mxu0
    %2945 = vmatprep.mubr.f32.mxu0 0.0
    %2946 = vmatmul.mubr.f32.gmra.mrb[0].mxu0 %v2424
    %v2947 = vpop.f32.mrb[0].mxu0
    %v2948 = vadd.f32 %v2381, %v2947
    %v2949 = vpop.f32.mrb[0].mxu0
    %2950 = vmatprep.mubr.f32.mxu0 0.0
    %2951 = vmatmul.mubr.f32.gmra.mrb[0].mxu0 %v2427
    %v2952 = vpop.f32.mrb[0].mxu0
    %v2953 = vadd.f32 %v2381, %v2952
    %v2954 = vpop.f32.mrb[0].mxu0
    %2955 = vmatprep.mubr.f32.mxu0 0.0
    %2956 = vmatmul.mubr.f32.gmra.mrb[0].mxu0 %v2430
    %v2957 = vpop.f32.mrb[0].mxu0
    %v2958 = vadd.f32 %v2381, %v2957
    %v2959 = vpop.f32.mrb[0].mxu0
    %2960 = vmatprep.mubr.f32.mxu0 0.0
    %2961 = vmatmul.mubr.f32.gmra.mrb[0].mxu0 %v2433
    %v2962 = vpop.f32.mrb[0].mxu0
    %v2963 = vadd.f32 %v2381, %v2962
    %v2964 = vpop.f32.mrb[0].mxu0
    %2965 = vmatprep.mubr.f32.mxu0 0.0
    %2966 = vmatmul.mubr.f32.gmra.mrb[0].mxu0 %v2436
    %v2967 = vpop.f32.mrb[0].mxu0
    %v2968 = vadd.f32 %v2381, %v2967
    %v2969 = vpop.f32.mrb[0].mxu0
    %2970 = vmatprep.mubr.f32.mxu0 0.0
    %2971 = vmatmul.mubr.f32.gmra.mrb[0].mxu0 %v2439
    %v2972 = vpop.f32.mrb[0].mxu0
    %v2973 = vadd.f32 %v2381, %v2972
    %v2974 = vpop.f32.mrb[0].mxu0
    %2975 = vmatprep.mubr.f32.mxu0 0.0
    %2976 = vmatmul.mubr.f32.gmra.mrb[0].mxu0 %v2442
    %v2977 = vpop.f32.mrb[0].mxu0
    %v2978 = vadd.f32 %v2381, %v2977
    %v2979 = vpop.f32.mrb[0].mxu0
    %2980 = vmatprep.mubr.f32.mxu0 0.0
    %2981 = vmatmul.mubr.f32.gmra.mrb[0].mxu0 %v2445
    %v2982 = vpop.f32.mrb[0].mxu0
    %v2983 = vadd.f32 %v2381, %v2982
    %v2984 = vpop.f32.mrb[0].mxu0
    %2985 = vmatprep.mubr.f32.mxu0 0.0
    %2986 = vmatmul.mubr.f32.gmra.mrb[0].mxu0 %v2448
    %v2987 = vpop.f32.mrb[0].mxu0
    %v2988 = vadd.f32 %v2381, %v2987
    %v2989 = vpop.f32.mrb[0].mxu0
    %2990 = vmatprep.mubr.f32.mxu0 0.0
    %2991 = vmatmul.mubr.f32.gmra.mrb[0].mxu0 %v2451
    %v2992 = vpop.f32.mrb[0].mxu0
    %v2993 = vadd.f32 %v2381, %v2992
    %v2994 = vpop.f32.mrb[0].mxu0
    %2995 = vmatprep.mubr.f32.mxu0 0.0
    %2996 = vmatmul.mubr.f32.gmra.mrb[0].mxu0 %v2454
    %v2997 = vpop.f32.mrb[0].mxu0
    %v2998 = vadd.f32 %v2381, %v2997
    %v2999 = vpop.f32.mrb[0].mxu0
    %3000 = vmatprep.mubr.f32.mxu0 0.0
    %3001 = vmatmul.mubr.f32.gmra.mrb[0].mxu0 %v2457
    %v3002 = vpop.f32.mrb[0].mxu0
    %v3003 = vadd.f32 %v2381, %v3002
    %v3004 = vpop.f32.mrb[0].mxu0
    %3005 = vmatprep.mubr.f32.mxu0 0.0
    %3006 = vmatmul.mubr.f32.gmra.mrb[0].mxu0 %v2460
    %v3007 = vpop.f32.mrb[0].mxu0
    %v3008 = vadd.f32 %v2381, %v3007
    %v3009 = vpop.f32.mrb[0].mxu0
    %3010 = vmatprep.mubr.f32.mxu0 0.0
    %3011 = vmatmul.mubr.f32.gmra.mrb[0].mxu0 %v2463
    %v3012 = vpop.f32.mrb[0].mxu0
    %v3013 = vadd.f32 %v2381, %v3012
    %v3014 = vpop.f32.mrb[0].mxu0
    %3015 = vmatprep.mubr.f32.mxu0 0.0
    %3016 = vmatmul.mubr.f32.gmra.mrb[0].mxu0 %v2466
    %v3017 = vpop.f32.mrb[0].mxu0
    %v3018 = vadd.f32 %v2381, %v3017
    %v3019 = vpop.f32.mrb[0].mxu0
    %3020 = vmatprep.mubr.f32.mxu0 0.0
    %3021 = vmatmul.mubr.f32.gmra.mrb[0].mxu0 %v2469
    %v3022 = vpop.f32.mrb[0].mxu0
    %v3023 = vadd.f32 %v2381, %v3022
    %v3024 = vpop.f32.mrb[0].mxu0
    %3025 = vmatprep.mubr.f32.mxu0 0.0
    %3026 = vmatmul.mubr.f32.gmra.mrb[0].mxu0 %v2472
    %v3027 = vpop.f32.mrb[0].mxu0
    %v3028 = vadd.f32 %v2381, %v3027
    %v3029 = vpop.f32.mrb[0].mxu0
    %3030 = vmatprep.mubr.f32.mxu0 0.0
    %3031 = vmatmul.mubr.f32.gmra.mrb[0].mxu0 %v2475
    %v3032 = vpop.f32.mrb[0].mxu0
    %v3033 = vadd.f32 %v2381, %v3032
    %v3034 = vpop.f32.mrb[0].mxu0
    %3035 = vmatprep.mubr.f32.mxu0 0.0
    %3036 = vmatmul.mubr.f32.gmra.mrb[0].mxu0 %v2478
    %v3037 = vpop.f32.mrb[0].mxu0
    %v3038 = vadd.f32 %v2381, %v3037
    %v3039 = vpop.f32.mrb[0].mxu0
    %3040 = vmatprep.mubr.f32.mxu0 0.0
    %3041 = vmatmul.mubr.f32.gmra.mrb[0].mxu0 %v2481
    %v3042 = vpop.f32.mrb[0].mxu0
    %v3043 = vadd.f32 %v2381, %v3042
    %v3044 = vpop.f32.mrb[0].mxu0
    %3045 = vmatprep.mubr.f32.mxu0 0.0
    %3046 = vmatmul.mubr.f32.gmra.mrb[0].mxu0 %v2484
    %v3047 = vpop.f32.mrb[0].mxu0
    %v3048 = vadd.f32 %v2381, %v3047
    %v3049 = vpop.f32.mrb[0].mxu0
    %3050 = vmatprep.mubr.f32.mxu0 0.0
    %3051 = vmatmul.mubr.f32.gmra.mrb[0].mxu0 %v2487
    %v3052 = vpop.f32.mrb[0].mxu0
    %v3053 = vadd.f32 %v2381, %v3052
    %v3054 = vpop.f32.mrb[0].mxu0
    %3055 = vmatprep.mubr.f32.mxu0 0.0
    %3056 = vmatmul.mubr.f32.gmra.mrb[0].mxu0 %v2490
    %v3057 = vpop.f32.mrb[0].mxu0
    %v3058 = vadd.f32 %v2381, %v3057
    %v3059 = vpop.f32.mrb[0].mxu0
    %3060 = vmatprep.mubr.f32.mxu0 0.0
    %3061 = vmatmul.mubr.f32.gmra.mrb[0].mxu0 %v2493
    %v3062 = vpop.f32.mrb[0].mxu0
    %v3063 = vadd.f32 %v2381, %v3062
    %v3064 = vpop.f32.mrb[0].mxu0
    %3065 = vmatprep.mubr.f32.mxu0 0.0
    %3066 = vmatmul.mubr.f32.gmra.mrb[0].mxu0 %v2496
    %v3067 = vpop.f32.mrb[0].mxu0
    %v3068 = vadd.f32 %v2381, %v3067
    %v3069 = vpop.f32.mrb[0].mxu0
    %3070 = vmatprep.mubr.f32.mxu0 0.0
    %3071 = vmatmul.mubr.f32.gmra.mrb[0].mxu0 %v2499
    %v3072 = vpop.f32.mrb[0].mxu0
    %v3073 = vadd.f32 %v2381, %v3072
    %v3074 = vpop.f32.mrb[0].mxu0
    %3075 = vmatprep.mubr.f32.mxu0 0.0
    %3076 = vmatmul.mubr.f32.gmra.mrb[0].mxu0 %v2502
    %v3077 = vpop.f32.mrb[0].mxu0
    %v3078 = vadd.f32 %v2381, %v3077
    %v3079 = vpop.f32.mrb[0].mxu0
    %3080 = vmatprep.mubr.f32.mxu0 0.0
    %3081 = vmatmul.mubr.f32.gmra.mrb[0].mxu0 %v2505
    %v3082 = vpop.f32.mrb[0].mxu0
    %v3083 = vadd.f32 %v2381, %v3082
    %v3084 = vpop.f32.mrb[0].mxu0
    %3085 = vmatprep.mubr.f32.mxu0 0.0
    %3086 = vmatmul.mubr.f32.gmra.mrb[0].mxu0 %v2508
    %v3087 = vpop.f32.mrb[0].mxu0
    %v3088 = vadd.f32 %v2381, %v3087
    %v3089 = vpop.f32.mrb[0].mxu0
    %3090 = vmatprep.mubr.f32.mxu0 0.0
    %3091 = vmatmul.mubr.f32.gmra.mrb[0].mxu0 %v2511
    %v3092 = vpop.f32.mrb[0].mxu0
    %v3093 = vadd.f32 %v2381, %v3092
    %v3094 = vpop.f32.mrb[0].mxu0
    %3095 = vmatprep.mubr.f32.mxu0 0.0
    %3096 = vmatmul.mubr.f32.gmra.mrb[0].mxu0 %v2514
    %v3097 = vpop.f32.mrb[0].mxu0
    %v3098 = vadd.f32 %v2381, %v3097
    %v3099 = vpop.f32.mrb[0].mxu0
    %3100 = vmatprep.mubr.f32.mxu0 0.0
    %3101 = vmatmul.mubr.f32.gmra.mrb[0].mxu0 %v2517
    %v3102 = vpop.f32.mrb[0].mxu0
    %v3103 = vadd.f32 %v2381, %v3102
    %v3104 = vpop.f32.mrb[0].mxu0
    %3105 = vmatprep.mubr.f32.mxu0 0.0
    %3106 = vmatmul.mubr.f32.gmra.mrb[0].mxu0 %v2520
    %v3107 = vpop.f32.mrb[0].mxu0
    %v3108 = vadd.f32 %v2381, %v3107
    %v3109 = vpop.f32.mrb[0].mxu0
    %3110 = vmatprep.mubr.f32.mxu0 0.0
    %3111 = vmatmul.mubr.f32.gmra.mrb[0].mxu0 %v2523
    %v3112 = vpop.f32.mrb[0].mxu0
    %v3113 = vadd.f32 %v2381, %v3112
    %v3114 = vpop.f32.mrb[0].mxu0
    %3115 = vmatprep.mubr.f32.mxu0 0.0
    %3116 = vmatmul.mubr.f32.gmra.mrb[0].mxu0 %v2526
    %v3117 = vpop.f32.mrb[0].mxu0
    %v3118 = vadd.f32 %v2381, %v3117
    %v3119 = vpop.f32.mrb[0].mxu0
    %3120 = vmatprep.mubr.f32.mxu0 0.0
    %3121 = vmatmul.mubr.f32.gmra.mrb[0].mxu0 %v2529
    %v3122 = vpop.f32.mrb[0].mxu0
    %v3123 = vadd.f32 %v2381, %v3122
    %v3124 = vpop.f32.mrb[0].mxu0
    %3125 = vmatprep.mubr.f32.mxu0 0.0
    %3126 = vmatmul.mubr.f32.gmra.mrb[0].mxu0 %v2532
    %v3127 = vpop.f32.mrb[0].mxu0
    %v3128 = vadd.f32 %v2381, %v3127
    %v3129 = vpop.f32.mrb[0].mxu0
    %3130 = vmatprep.mubr.f32.mxu0 0.0
    %3131 = vmatmul.mubr.f32.gmra.mrb[0].mxu0 %v2535
    %v3132 = vpop.f32.mrb[0].mxu0
    %v3133 = vadd.f32 %v2381, %v3132
    %v3134 = vpop.f32.mrb[0].mxu0
    %3135 = vmatprep.mubr.f32.mxu0 0.0
    %3136 = vmatmul.mubr.f32.gmra.mrb[0].mxu0 %v2538
    %v3137 = vpop.f32.mrb[0].mxu0
    %v3138 = vadd.f32 %v2381, %v3137
    %v3139 = vpop.f32.mrb[0].mxu0
    %3140 = vmatprep.mubr.f32.mxu0 0.0
    %3141 = vmatmul.mubr.f32.gmra.mrb[0].mxu0 %v2541
    %v3142 = vpop.f32.mrb[0].mxu0
    %v3143 = vadd.f32 %v2381, %v3142
    %v3144 = vpop.f32.mrb[0].mxu0
    %3145 = vmatprep.mubr.f32.mxu0 0.0
    %3146 = vmatmul.mubr.f32.gmra.mrb[0].mxu0 %v2544
    %v3147 = vpop.f32.mrb[0].mxu0
    %v3148 = vadd.f32 %v2381, %v3147
    %v3149 = vpop.f32.mrb[0].mxu0
    %3150 = vmatprep.mubr.f32.mxu0 0.0
    %3151 = vmatmul.mubr.f32.gmra.mrb[0].mxu0 %v2547
    %v3152 = vpop.f32.mrb[0].mxu0
    %v3153 = vadd.f32 %v2381, %v3152
    %v3154 = vpop.f32.mrb[0].mxu0
    %3155 = vmatprep.mubr.f32.mxu0 0.0
    %3156 = vmatmul.mubr.f32.gmra.mrb[0].mxu0 %v2550
    %v3157 = vpop.f32.mrb[0].mxu0
    %v3158 = vadd.f32 %v2381, %v3157
    %v3159 = vpop.f32.mrb[0].mxu0
    %3160 = vmatprep.mubr.f32.mxu0 0.0
    %3161 = vmatmul.mubr.f32.gmra.mrb[0].mxu0 %v2553
    %v3162 = vpop.f32.mrb[0].mxu0
    %v3163 = vadd.f32 %v2381, %v3162
    %v3164 = vpop.f32.mrb[0].mxu0
    %3165 = vmatprep.mubr.f32.mxu0 0.0
    %3166 = vmatmul.mubr.f32.gmra.mrb[0].mxu0 %v2556
    %v3167 = vpop.f32.mrb[0].mxu0
    %v3168 = vadd.f32 %v2381, %v3167
    %v3169 = vpop.f32.mrb[0].mxu0
    %3170 = vmatprep.mubr.f32.mxu0 0.0
    %3171 = vmatmul.mubr.f32.gmra.mrb[0].mxu0 %v2559
    %v3172 = vpop.f32.mrb[0].mxu0
    %v3173 = vadd.f32 %v2381, %v3172
    %v3174 = vpop.f32.mrb[0].mxu0
    %3175 = vmatprep.mubr.f32.mxu0 0.0
    %3176 = vmatmul.mubr.f32.gmra.mrb[0].mxu0 %v2562
    %v3177 = vpop.f32.mrb[0].mxu0
    %v3178 = vadd.f32 %v2381, %v3177
    %v3179 = vpop.f32.mrb[0].mxu0
    %3180 = vmatprep.mubr.f32.mxu0 0.0
    %3181 = vmatmul.mubr.f32.gmra.mrb[0].mxu0 %v2565
    %v3182 = vpop.f32.mrb[0].mxu0
    %v3183 = vadd.f32 %v2381, %v3182
    %v3184 = vpop.f32.mrb[0].mxu0
    %3185 = vmatprep.mubr.f32.mxu0 0.0
    %3186 = vmatmul.mubr.f32.gmra.mrb[0].mxu0 %v2568
    %v3187 = vpop.f32.mrb[0].mxu0
    %v3188 = vadd.f32 %v2381, %v3187
    %v3189 = vpop.f32.mrb[0].mxu0
    %3190 = vmatprep.mubr.f32.mxu0 0.0
    %3191 = vmatmul.mubr.f32.gmra.mrb[0].mxu0 %v2571
    %v3192 = vpop.f32.mrb[0].mxu0
    %v3193 = vadd.f32 %v2381, %v3192
    %v3194 = vpop.f32.mrb[0].mxu0
    %3195 = vmatprep.mubr.f32.mxu0 0.0
    %3196 = vmatmul.mubr.f32.gmra.mrb[0].mxu0 %v2574
    %v3197 = vpop.f32.mrb[0].mxu0
    %v3198 = vadd.f32 %v2381, %v3197
    %v3199 = vpop.f32.mrb[0].mxu0
    %3200 = vmatprep.mubr.f32.mxu0 0.0
    %3201 = vmatmul.mubr.f32.gmra.mrb[0].mxu0 %v2577
    %v3202 = vpop.f32.mrb[0].mxu0
    %v3203 = vadd.f32 %v2381, %v3202
    %v3204 = vpop.f32.mrb[0].mxu0
    %3205 = vmatprep.mubr.f32.mxu0 0.0
    %3206 = vmatmul.mubr.f32.gmra.mrb[0].mxu0 %v2580
    %v3207 = vpop.f32.mrb[0].mxu0
    %v3208 = vadd.f32 %v2381, %v3207
    %v3209 = vpop.f32.mrb[0].mxu0
    %3210 = vmatprep.mubr.f32.mxu0 0.0
    %3211 = vmatmul.mubr.f32.gmra.mrb[0].mxu0 %v2583
    %v3212 = vpop.f32.mrb[0].mxu0
    %v3213 = vadd.f32 %v2381, %v3212
    %v3214 = vpop.f32.mrb[0].mxu0
    %3215 = vmatprep.mubr.f32.mxu0 0.0
    %3216 = vmatmul.mubr.f32.gmra.mrb[0].mxu0 %v2586
    %v3217 = vpop.f32.mrb[0].mxu0
    %v3218 = vadd.f32 %v2381, %v3217
    %v3219 = vpop.f32.mrb[0].mxu0
    %3220 = vmatprep.mubr.f32.mxu0 0.0
    %3221 = vmatmul.mubr.f32.gmra.mrb[0].mxu0 %v2589
    %v3222 = vpop.f32.mrb[0].mxu0
    %v3223 = vadd.f32 %v2381, %v3222
    %v3224 = vpop.f32.mrb[0].mxu0
    %3225 = vmatprep.mubr.f32.mxu0 0.0
    %3226 = vmatmul.mubr.f32.gmra.mrb[0].mxu0 %v2592
    %v3227 = vpop.f32.mrb[0].mxu0
    %v3228 = vadd.f32 %v2381, %v3227
    %v3229 = vpop.f32.mrb[0].mxu0
    %3230 = vmatprep.mubr.f32.mxu0 0.0
    %3231 = vmatmul.mubr.f32.gmra.mrb[0].mxu0 %v2595
    %v3232 = vpop.f32.mrb[0].mxu0
    %v3233 = vadd.f32 %v2381, %v3232
    %v3234 = vpop.f32.mrb[0].mxu0
    %3235 = vmatprep.mubr.f32.mxu0 0.0
    %3236 = vmatmul.mubr.f32.gmra.mrb[0].mxu0 %v2598
    %v3237 = vpop.f32.mrb[0].mxu0
    %v3238 = vadd.f32 %v2381, %v3237
    %v3239 = vpop.f32.mrb[0].mxu0
    %3240 = vmatprep.mubr.f32.mxu0 0.0
    %3241 = vmatmul.mubr.f32.gmra.mrb[0].mxu0 %v2601
    %v3242 = vpop.f32.mrb[0].mxu0
    %v3243 = vadd.f32 %v2381, %v3242
    %v3244 = vpop.f32.mrb[0].mxu0
    %3245 = vmatprep.mubr.f32.mxu0 0.0
    %3246 = vmatmul.mubr.f32.gmra.mrb[0].mxu0 %v2604
    %v3247 = vpop.f32.mrb[0].mxu0
    %v3248 = vadd.f32 %v2381, %v3247
    %v3249 = vpop.f32.mrb[0].mxu0
    %3250 = vmatprep.mubr.f32.mxu0 0.0
    %3251 = vmatmul.mubr.f32.gmra.mrb[0].mxu0 %v2607
    %v3252 = vpop.f32.mrb[0].mxu0
    %v3253 = vadd.f32 %v2381, %v3252
    %v3254 = vpop.f32.mrb[0].mxu0
    %3255 = vmatprep.mubr.f32.mxu0 0.0
    %3256 = vmatmul.mubr.f32.gmra.mrb[0].mxu0 %v2610
    %v3257 = vpop.f32.mrb[0].mxu0
    %v3258 = vadd.f32 %v2381, %v3257
    %v3259 = vpop.f32.mrb[0].mxu0
    %3260 = vmatprep.mubr.f32.mxu0 0.0
    %3261 = vmatmul.mubr.f32.gmra.mrb[0].mxu0 %v2613
    %v3262 = vpop.f32.mrb[0].mxu0
    %v3263 = vadd.f32 %v2381, %v3262
    %v3264 = vpop.f32.mrb[0].mxu0
    %3265 = vmatprep.mubr.f32.mxu0 0.0
    %3266 = vmatmul.mubr.f32.gmra.mrb[0].mxu0 %v2616
    %v3267 = vpop.f32.mrb[0].mxu0
    %v3268 = vadd.f32 %v2381, %v3267
    %v3269 = vpop.f32.mrb[0].mxu0
    %3270 = vmatprep.mubr.f32.mxu0 0.0
    %3271 = vmatmul.mubr.f32.gmra.mrb[0].mxu0 %v2619
    %v3272 = vpop.f32.mrb[0].mxu0
    %v3273 = vadd.f32 %v2381, %v3272
    %v3274 = vpop.f32.mrb[0].mxu0
    %3275 = vmatprep.mubr.f32.mxu0 0.0
    %3276 = vmatmul.mubr.f32.gmra.mrb[0].mxu0 %v2622
    %v3277 = vpop.f32.mrb[0].mxu0
    %v3278 = vadd.f32 %v2381, %v3277
    %v3279 = vpop.f32.mrb[0].mxu0
    %3280 = vmatprep.mubr.f32.mxu0 0.0
    %3281 = vmatmul.mubr.f32.gmra.mrb[0].mxu0 %v2625
    %v3282 = vpop.f32.mrb[0].mxu0
    %v3283 = vadd.f32 %v2381, %v3282
    %v3284 = vpop.f32.mrb[0].mxu0
    %3285 = vmatprep.mubr.f32.mxu0 0.0
    %3286 = vmatmul.mubr.f32.gmra.mrb[0].mxu0 %v2628
    %v3287 = vpop.f32.mrb[0].mxu0
    %v3288 = vadd.f32 %v2381, %v3287
    %v3289 = vpop.f32.mrb[0].mxu0
    %3290 = vmatprep.mubr.f32.mxu0 0.0
    %3291 = vmatmul.mubr.f32.gmra.mrb[0].mxu0 %v2631
    %v3292 = vpop.f32.mrb[0].mxu0
    %v3293 = vadd.f32 %v2381, %v3292
    %v3294 = vpop.f32.mrb[0].mxu0
    %3295 = vmatprep.mubr.f32.mxu0 0.0
    %3296 = vmatmul.mubr.f32.gmra.mrb[0].mxu0 %v2634
    %v3297 = vpop.f32.mrb[0].mxu0
    %v3298 = vadd.f32 %v2381, %v3297
    %v3299 = vpop.f32.mrb[0].mxu0
    %3300 = vmatprep.mubr.f32.mxu0 0.0
    %3301 = vmatmul.mubr.f32.gmra.mrb[0].mxu0 %v2637
    %v3302 = vpop.f32.mrb[0].mxu0
    %v3303 = vadd.f32 %v2381, %v3302
    %v3304 = vpop.f32.mrb[0].mxu0
    %3305 = vmatprep.mubr.f32.mxu0 0.0
    %3306 = vmatmul.mubr.f32.gmra.mrb[0].mxu0 %v2640
    %v3307 = vpop.f32.mrb[0].mxu0
    %v3308 = vadd.f32 %v2381, %v3307
    %v3309 = vpop.f32.mrb[0].mxu0
    %3310 = vmatprep.mubr.f32.mxu0 0.0
    %3311 = vmatmul.mubr.f32.gmra.mrb[0].mxu0 %v2643
    %v3312 = vpop.f32.mrb[0].mxu0
    %v3313 = vadd.f32 %v2381, %v3312
    %v3314 = vpop.f32.mrb[0].mxu0
    %3315 = vmatprep.mubr.f32.mxu0 0.0
    %3316 = vmatmul.mubr.f32.gmra.mrb[0].mxu0 %v2646
    %v3317 = vpop.f32.mrb[0].mxu0
    %v3318 = vadd.f32 %v2381, %v3317
    %v3319 = vpop.f32.mrb[0].mxu0
    %3320 = vmatprep.mubr.f32.mxu0 0.0
    %3321 = vmatmul.mubr.f32.gmra.mrb[0].mxu0 %v2649
    %v3322 = vpop.f32.mrb[0].mxu0
    %v3323 = vadd.f32 %v2381, %v3322
    %v3324 = vpop.f32.mrb[0].mxu0
    %3325 = vmatprep.mubr.f32.mxu0 0.0
    %3326 = vmatmul.mubr.f32.gmra.mrb[0].mxu0 %v2652
    %v3327 = vpop.f32.mrb[0].mxu0
    %v3328 = vadd.f32 %v2381, %v3327
    %v3329 = vpop.f32.mrb[0].mxu0
    %3330 = vmatprep.mubr.f32.mxu0 0.0
    %3331 = vmatmul.mubr.f32.gmra.mrb[0].mxu0 %v2655
    %v3332 = vpop.f32.mrb[0].mxu0
    %v3333 = vadd.f32 %v2381, %v3332
    %v3334 = vpop.f32.mrb[0].mxu0
    %3335 = vmatprep.mubr.f32.mxu0 0.0
    %3336 = vmatmul.mubr.f32.gmra.mrb[0].mxu0 %v2658
    %v3337 = vpop.f32.mrb[0].mxu0
    %v3338 = vadd.f32 %v2381, %v3337
    %v3339 = vpop.f32.mrb[0].mxu0
    %3340 = vmatprep.mubr.f32.mxu0 0.0
    %3341 = vmatmul.mubr.f32.gmra.mrb[0].mxu0 %v2661
    %v3342 = vpop.f32.mrb[0].mxu0
    %v3343 = vadd.f32 %v2381, %v3342
    %v3344 = vpop.f32.mrb[0].mxu0
    %3345 = vmatprep.mubr.f32.mxu0 0.0
    %3346 = vmatmul.mubr.f32.gmra.mrb[0].mxu0 %v2664
    %v3347 = vpop.f32.mrb[0].mxu0
    %v3348 = vadd.f32 %v2381, %v3347
    %v3349 = vpop.f32.mrb[0].mxu0
    %3350 = vmatprep.mubr.f32.mxu0 0.0
    %3351 = vmatmul.mubr.f32.gmra.mrb[0].mxu0 %v2667
    %v3352 = vpop.f32.mrb[0].mxu0
    %v3353 = vadd.f32 %v2381, %v3352
    %v3354 = vpop.f32.mrb[0].mxu0
    %3355 = vmatprep.mubr.f32.mxu0 0.0
    %3356 = vmatmul.mubr.f32.gmra.mrb[0].mxu0 %v2670
    %v3357 = vpop.f32.mrb[0].mxu0
    %v3358 = vadd.f32 %v2381, %v3357
    %v3359 = vpop.f32.mrb[0].mxu0
    %3360 = vmatprep.mubr.f32.mxu0 0.0
    %3361 = vmatmul.mubr.f32.gmra.mrb[0].mxu0 %v2673
    %v3362 = vpop.f32.mrb[0].mxu0
    %v3363 = vadd.f32 %v2381, %v3362
    %v3364 = vpop.f32.mrb[0].mxu0
    %3365 = vmatprep.mubr.f32.mxu0 0.0
    %3366 = vmatmul.mubr.f32.gmra.mrb[0].mxu0 %v2676
    %v3367 = vpop.f32.mrb[0].mxu0
    %v3368 = vadd.f32 %v2381, %v3367
    %v3369 = vpop.f32.mrb[0].mxu0
    %3370 = vmatprep.mubr.f32.mxu0 0.0
    %3371 = vmatmul.mubr.f32.gmra.mrb[0].mxu0 %v2679
    %v3372 = vpop.f32.mrb[0].mxu0
    %v3373 = vadd.f32 %v2381, %v3372
    %v3374 = vpop.f32.mrb[0].mxu0
    %3375 = vmatprep.mubr.f32.mxu0 0.0
    %3376 = vmatmul.mubr.f32.gmra.mrb[0].mxu0 %v2682
    %v3377 = vpop.f32.mrb[0].mxu0
    %v3378 = vadd.f32 %v2381, %v3377
    %v3379 = vpop.f32.mrb[0].mxu0
    %3380 = vmatprep.mubr.f32.mxu0 0.0
    %3381 = vmatmul.mubr.f32.gmra.mrb[0].mxu0 %v2685
    %v3382 = vpop.f32.mrb[0].mxu0
    %v3383 = vadd.f32 %v2381, %v3382
    %v3384 = vpop.f32.mrb[0].mxu0
    %3385 = vmatprep.mubr.f32.mxu0 0.0
    %3386 = vmatmul.mubr.f32.gmra.mrb[0].mxu0 %v2688
    %v3387 = vpop.f32.mrb[0].mxu0
    %v3388 = vadd.f32 %v2381, %v3387
    %v3389 = vpop.f32.mrb[0].mxu0
    %3390 = vmatprep.mubr.f32.mxu0 0.0
    %3391 = vmatmul.mubr.f32.gmra.mrb[0].mxu0 %v2691
    %v3392 = vpop.f32.mrb[0].mxu0
    %v3393 = vadd.f32 %v2381, %v3392
    %v3394 = vpop.f32.mrb[0].mxu0
    %3395 = vmatprep.mubr.f32.mxu0 0.0
    %3396 = vmatmul.mubr.f32.gmra.mrb[0].mxu0 %v2694
    %v3397 = vpop.f32.mrb[0].mxu0
    %v3398 = vadd.f32 %v2381, %v3397
    %v3399 = vpop.f32.mrb[0].mxu0
    %3400 = vmatprep.mubr.f32.mxu0 0.0
    %3401 = vmatmul.mubr.f32.gmra.mrb[0].mxu0 %v2697
    %v3402 = vpop.f32.mrb[0].mxu0
    %v3403 = vadd.f32 %v2381, %v3402
    %v3404 = vpop.f32.mrb[0].mxu0
    %3405 = vmatprep.mubr.f32.mxu0 0.0
    %3406 = vmatmul.mubr.f32.gmra.mrb[0].mxu0 %v2700
    %v3407 = vpop.f32.mrb[0].mxu0
    %v3408 = vadd.f32 %v2381, %v3407
    %v3409 = vpop.f32.mrb[0].mxu0
    %3410 = vmatprep.mubr.f32.mxu0 0.0
    %3411 = vmatmul.mubr.f32.gmra.mrb[0].mxu0 %v2703
    %v3412 = vpop.f32.mrb[0].mxu0
    %v3413 = vadd.f32 %v2381, %v3412
    %v3414 = vpop.f32.mrb[0].mxu0
    %3415 = vmatprep.mubr.f32.mxu0 0.0
    %3416 = vmatmul.mubr.f32.gmra.mrb[0].mxu0 %v2706
    %v3417 = vpop.f32.mrb[0].mxu0
    %v3418 = vadd.f32 %v2381, %v3417
    %v3419 = vpop.f32.mrb[0].mxu0
    %3420 = vmatprep.mubr.f32.mxu0 0.0
    %3421 = vmatmul.mubr.f32.gmra.mrb[0].mxu0 %v2709
    %v3422 = vpop.f32.mrb[0].mxu0
    %v3423 = vadd.f32 %v2381, %v3422
    %v3424 = vpop.f32.mrb[0].mxu0
    %3425 = vmatprep.mubr.f32.mxu0 0.0
    %3426 = vmatmul.mubr.f32.gmra.mrb[0].mxu0 %v2712
    %v3427 = vpop.f32.mrb[0].mxu0
    %v3428 = vadd.f32 %v2381, %v3427
    %v3429 = vpop.f32.mrb[0].mxu0
    %3430 = vmatprep.mubr.f32.mxu0 0.0
    %3431 = vmatmul.mubr.f32.gmra.mrb[0].mxu0 %v2715
    %v3432 = vpop.f32.mrb[0].mxu0
    %v3433 = vadd.f32 %v2381, %v3432
    %v3434 = vpop.f32.mrb[0].mxu0
    %3435 = vmatprep.mubr.f32.mxu0 0.0
    %3436 = vmatmul.mubr.f32.gmra.mrb[0].mxu0 %v2718
    %v3437 = vpop.f32.mrb[0].mxu0
    %v3438 = vadd.f32 %v2381, %v3437
    %v3439 = vpop.f32.mrb[0].mxu0
    %3440 = vmatprep.mubr.f32.mxu0 0.0
    %3441 = vmatmul.mubr.f32.gmra.mrb[0].mxu0 %v2721
    %v3442 = vpop.f32.mrb[0].mxu0
    %v3443 = vadd.f32 %v2381, %v3442
    %v3444 = vpop.f32.mrb[0].mxu0
    %3445 = vmatprep.mubr.f32.mxu0 0.0
    %3446 = vmatmul.mubr.f32.gmra.mrb[0].mxu0 %v2724
    %v3447 = vpop.f32.mrb[0].mxu0
    %v3448 = vadd.f32 %v2381, %v3447
    %v3449 = vpop.f32.mrb[0].mxu0
    %3450 = vmatprep.mubr.f32.mxu0 0.0
    %3451 = vmatmul.mubr.f32.gmra.mrb[0].mxu0 %v2727
    %v3452 = vpop.f32.mrb[0].mxu0
    %v3453 = vadd.f32 %v2381, %v3452
    %v3454 = vpop.f32.mrb[0].mxu0
    %3455 = vmatprep.mubr.f32.mxu0 0.0
    %3456 = vmatmul.mubr.f32.gmra.mrb[0].mxu0 %v2730
    %v3457 = vpop.f32.mrb[0].mxu0
    %v3458 = vadd.f32 %v2381, %v3457
    %v3459 = vpop.f32.mrb[0].mxu0
    %3460 = vmatprep.mubr.f32.mxu0 0.0
    %3461 = vmatmul.mubr.f32.gmra.mrb[0].mxu0 %v2733
    %v3462 = vpop.f32.mrb[0].mxu0
    %v3463 = vadd.f32 %v2381, %v3462
    %v3464 = vpop.f32.mrb[0].mxu0
    %3465 = vmatprep.mubr.f32.mxu0 0.0
    %3466 = vmatmul.mubr.f32.gmra.mrb[0].mxu0 %v2736
    %v3467 = vpop.f32.mrb[0].mxu0
    %v3468 = vadd.f32 %v2381, %v3467
    %v3469 = vpop.f32.mrb[0].mxu0
    %3470 = vmatprep.mubr.f32.mxu0 0.0
    %3471 = vmatmul.mubr.f32.gmra.mrb[0].mxu0 %v2739
    %v3472 = vpop.f32.mrb[0].mxu0
    %v3473 = vadd.f32 %v2381, %v3472
    %v3474 = vpop.f32.mrb[0].mxu0
    %3475 = vmatprep.mubr.f32.mxu0 0.0
    %3476 = vmatmul.mubr.f32.gmra.mrb[0].mxu0 %v2742
    %v3477 = vpop.f32.mrb[0].mxu0
    %v3478 = vadd.f32 %v2381, %v3477
    %v3479 = vpop.f32.mrb[0].mxu0
    %3480 = vmatprep.mubr.f32.mxu0 0.0
    %3481 = vmatmul.mubr.f32.gmra.mrb[0].mxu0 %v2745
    %v3482 = vpop.f32.mrb[0].mxu0
    %v3483 = vadd.f32 %v2381, %v3482
    %v3484 = vpop.f32.mrb[0].mxu0
    %3485 = vmatprep.mubr.f32.mxu0 0.0
    %3486 = vmatmul.mubr.f32.gmra.mrb[0].mxu0 %v2748
    %v3487 = vpop.f32.mrb[0].mxu0
    %v3488 = vadd.f32 %v2381, %v3487
    %v3489 = vpop.f32.mrb[0].mxu0
    %3490 = vmatprep.mubr.f32.mxu0 0.0
    %3491 = vmatmul.mubr.f32.gmra.mrb[0].mxu0 %v2751
    %v3492 = vpop.f32.mrb[0].mxu0
    %v3493 = vadd.f32 %v2381, %v3492
    %v3494 = vpop.f32.mrb[0].mxu0
    %3495 = vmatprep.mubr.f32.mxu0 0.0
    %3496 = vmatmul.mubr.f32.gmra.mrb[0].mxu0 %v2754
    %v3497 = vpop.f32.mrb[0].mxu0
    %v3498 = vadd.f32 %v2381, %v3497
    %v3499 = vpop.f32.mrb[0].mxu0
    %3500 = vmatprep.mubr.f32.mxu0 0.0
    %3501 = vmatmul.mubr.f32.gmra.mrb[0].mxu0 %v2757
    %v3502 = vpop.f32.mrb[0].mxu0
    %v3503 = vadd.f32 %v2381, %v3502
    %v3504 = vpop.f32.mrb[0].mxu0
    %3505 = vmatprep.mubr.f32.mxu0 0.0
    %3506 = vmatmul.mubr.f32.gmra.mrb[0].mxu0 %v2760
    %v3507 = vpop.f32.mrb[0].mxu0
    %v3508 = vadd.f32 %v2381, %v3507
    %v3509 = vpop.f32.mrb[0].mxu0
    %3510 = vmatprep.mubr.f32.mxu0 0.0
    %3511 = vmatmul.mubr.f32.gmra.mrb[0].mxu0 %v2763
    %v3512 = vpop.f32.mrb[0].mxu0
    %v3513 = vadd.f32 %v2381, %v3512
    %v3514 = vpop.f32.mrb[0].mxu0
    %3515 = vmatprep.mubr.f32.mxu0 0.0
    %3516 = vmatmul.mubr.f32.gmra.mrb[0].mxu0 %v2766
    %v3517 = vpop.f32.mrb[0].mxu0
    %v3518 = vadd.f32 %v2381, %v3517
    %v3519 = vpop.f32.mrb[0].mxu0
    %3520 = vmatprep.mubr.f32.mxu0 0.0
    %3521 = vmatmul.mubr.f32.gmra.mrb[0].mxu0 %v2769
    %v3522 = vpop.f32.mrb[0].mxu0
    %v3523 = vadd.f32 %v2381, %v3522
    %v3524 = vpop.f32.mrb[0].mxu0
    %3525 = vmatprep.mubr.f32.mxu0 0.0
    %3526 = vmatmul.mubr.f32.gmra.mrb[0].mxu0 %v2772
    %v3527 = vpop.f32.mrb[0].mxu0
    %v3528 = vadd.f32 %v2381, %v3527
    %v3529 = vpop.f32.mrb[0].mxu0
    %3530 = vmatprep.mubr.f32.mxu0 0.0
    %3531 = vmatmul.mubr.f32.gmra.mrb[0].mxu0 %v2775
    %v3532 = vpop.f32.mrb[0].mxu0
    %v3533 = vadd.f32 %v2381, %v3532
    %v3534 = vpop.f32.mrb[0].mxu0
    %3535 = vmatprep.mubr.f32.mxu0 0.0
    %3536 = vmatmul.mubr.f32.gmra.mrb[0].mxu0 %v2778
    %v3537 = vpop.f32.mrb[0].mxu0
    %v3538 = vadd.f32 %v2381, %v3537
    %v3539 = vpop.f32.mrb[0].mxu0
    %3540 = vmatprep.mubr.f32.mxu0 0.0
    %3541 = vmatmul.mubr.f32.gmra.mrb[0].mxu0 %v2781
    %v3542 = vpop.f32.mrb[0].mxu0
    %v3543 = vadd.f32 %v2381, %v3542
    %v3544 = vpop.f32.mrb[0].mxu0
    %3545 = vmatprep.mubr.f32.mxu0 0.0
    %3546 = vmatmul.mubr.f32.gmra.mrb[0].mxu0 %v2784
    %v3547 = vpop.f32.mrb[0].mxu0
    %v3548 = vadd.f32 %v2381, %v3547
    %v3549 = vpop.f32.mrb[0].mxu0
    %3550 = vmatprep.mubr.f32.mxu0 0.0
    %3551 = vmatmul.mubr.f32.gmra.mrb[0].mxu0 %v2787
    %v3552 = vpop.f32.mrb[0].mxu0
    %v3553 = vadd.f32 %v2381, %v3552
    %v3554 = vpop.f32.mrb[0].mxu0
    %3555 = vmatprep.mubr.f32.mxu0 0.0
    %3556 = vmatmul.mubr.f32.gmra.mrb[0].mxu0 %v2790
    %v3557 = vpop.f32.mrb[0].mxu0
    %v3558 = vadd.f32 %v2381, %v3557
    %v3559 = vpop.f32.mrb[0].mxu0
    %3560 = vmatprep.mubr.f32.mxu0 0.0
    %3561 = vmatmul.mubr.f32.gmra.mrb[0].mxu0 %v2793
    %v3562 = vpop.f32.mrb[0].mxu0
    %v3563 = vadd.f32 %v2381, %v3562
    %v3564 = vpop.f32.mrb[0].mxu0
    %3565 = vmatprep.mubr.f32.mxu0 0.0
    %3566 = vmatmul.mubr.f32.gmra.mrb[0].mxu0 %v2796
    %v3567 = vpop.f32.mrb[0].mxu0
    %v3568 = vadd.f32 %v2381, %v3567
    %v3569 = vpop.f32.mrb[0].mxu0
    %3570 = vmatprep.mubr.f32.mxu0 0.0
    %3571 = vmatmul.mubr.f32.gmra.mrb[0].mxu0 %v2799
    %v3572 = vpop.f32.mrb[0].mxu0
    %v3573 = vadd.f32 %v2381, %v3572
    %v3574 = vpop.f32.mrb[0].mxu0
    %3575 = vmatprep.mubr.f32.mxu0 0.0
    %3576 = vmatmul.mubr.f32.gmra.mrb[0].mxu0 %v2802
    %v3577 = vpop.f32.mrb[0].mxu0
    %v3578 = vadd.f32 %v2381, %v3577
    %v3579 = vpop.f32.mrb[0].mxu0
    %3580 = vmatprep.mubr.f32.mxu0 0.0
    %3581 = vmatmul.mubr.f32.gmra.mrb[0].mxu0 %v2805
    %v3582 = vpop.f32.mrb[0].mxu0
    %v3583 = vadd.f32 %v2381, %v3582
    %v3584 = vpop.f32.mrb[0].mxu0
    %3585 = vmatprep.mubr.f32.mxu0 0.0
    %3586 = vmatmul.mubr.f32.gmra.mrb[0].mxu0 %v2808
    %v3587 = vpop.f32.mrb[0].mxu0
    %v3588 = vadd.f32 %v2381, %v3587
    %v3589 = vpop.f32.mrb[0].mxu0
    %3590 = vmatprep.mubr.f32.mxu0 0.0
    %3591 = vmatmul.mubr.f32.gmra.mrb[0].mxu0 %v2811
    %v3592 = vpop.f32.mrb[0].mxu0
    %v3593 = vadd.f32 %v2381, %v3592
    %v3594 = vpop.f32.mrb[0].mxu0
    %3595 = vmatprep.mubr.f32.mxu0 0.0
    %3596 = vmatmul.mubr.f32.gmra.mrb[0].mxu0 %v2814
    %v3597 = vpop.f32.mrb[0].mxu0
    %v3598 = vadd.f32 %v2381, %v3597
    %v3599 = vpop.f32.mrb[0].mxu0
    %3600 = vdwg.mxu0
    %v3601 = vmax.f32 %v2883, 0.0
    %v3602 = vmax.f32 %v2888, 0.0
    %v3603 = vmax.f32 %v2893, 0.0
    %v3604 = vmax.f32 %v2898, 0.0
    %v3605 = vmax.f32 %v2903, 0.0
    %v3606 = vmax.f32 %v2908, 0.0
    %v3607 = vmax.f32 %v2913, 0.0
    %v3608 = vmax.f32 %v2918, 0.0
    %v3609 = vmax.f32 %v2923, 0.0
    %v3610 = vmax.f32 %v2928, 0.0
    %v3611 = vmax.f32 %v2933, 0.0
    %v3612 = vmax.f32 %v2938, 0.0
    %v3613 = vmax.f32 %v2943, 0.0
    %v3614 = vmax.f32 %v2948, 0.0
    %v3615 = vmax.f32 %v2953, 0.0
    %v3616 = vmax.f32 %v2958, 0.0
    %v3617 = vmax.f32 %v2963, 0.0
    %v3618 = vmax.f32 %v2968, 0.0
    %v3619 = vmax.f32 %v2973, 0.0
    %v3620 = vmax.f32 %v2978, 0.0
    %v3621 = vmax.f32 %v2983, 0.0
    %v3622 = vmax.f32 %v2988, 0.0
    %v3623 = vmax.f32 %v2993, 0.0
    %v3624 = vmax.f32 %v2998, 0.0
    %v3625 = vmax.f32 %v3003, 0.0
    %v3626 = vmax.f32 %v3008, 0.0
    %v3627 = vmax.f32 %v3013, 0.0
    %v3628 = vmax.f32 %v3018, 0.0
    %v3629 = vmax.f32 %v3023, 0.0
    %v3630 = vmax.f32 %v3028, 0.0
    %v3631 = vmax.f32 %v3033, 0.0
    %v3632 = vmax.f32 %v3038, 0.0
    %v3633 = vmax.f32 %v3043, 0.0
    %v3634 = vmax.f32 %v3048, 0.0
    %v3635 = vmax.f32 %v3053, 0.0
    %v3636 = vmax.f32 %v3058, 0.0
    %v3637 = vmax.f32 %v3063, 0.0
    %v3638 = vmax.f32 %v3068, 0.0
    %v3639 = vmax.f32 %v3073, 0.0
    %v3640 = vmax.f32 %v3078, 0.0
    %v3641 = vmax.f32 %v3083, 0.0
    %v3642 = vmax.f32 %v3088, 0.0
    %v3643 = vmax.f32 %v3093, 0.0
    %v3644 = vmax.f32 %v3098, 0.0
    %v3645 = vmax.f32 %v3103, 0.0
    %v3646 = vmax.f32 %v3108, 0.0
    %v3647 = vmax.f32 %v3113, 0.0
    %v3648 = vmax.f32 %v3118, 0.0
    %v3649 = vmax.f32 %v3123, 0.0
    %v3650 = vmax.f32 %v3128, 0.0
    %v3651 = vmax.f32 %v3133, 0.0
    %v3652 = vmax.f32 %v3138, 0.0
    %v3653 = vmax.f32 %v3143, 0.0
    %v3654 = vmax.f32 %v3148, 0.0
    %v3655 = vmax.f32 %v3153, 0.0
    %v3656 = vmax.f32 %v3158, 0.0
    %v3657 = vmax.f32 %v3163, 0.0
    %v3658 = vmax.f32 %v3168, 0.0
    %v3659 = vmax.f32 %v3173, 0.0
    %v3660 = vmax.f32 %v3178, 0.0
    %v3661 = vmax.f32 %v3183, 0.0
    %v3662 = vmax.f32 %v3188, 0.0
    %v3663 = vmax.f32 %v3193, 0.0
    %v3664 = vmax.f32 %v3198, 0.0
    %v3665 = vmax.f32 %v3203, 0.0
    %v3666 = vmax.f32 %v3208, 0.0
    %v3667 = vmax.f32 %v3213, 0.0
    %v3668 = vmax.f32 %v3218, 0.0
    %v3669 = vmax.f32 %v3223, 0.0
    %v3670 = vmax.f32 %v3228, 0.0
    %v3671 = vmax.f32 %v3233, 0.0
    %v3672 = vmax.f32 %v3238, 0.0
    %v3673 = vmax.f32 %v3243, 0.0
    %v3674 = vmax.f32 %v3248, 0.0
    %v3675 = vmax.f32 %v3253, 0.0
    %v3676 = vmax.f32 %v3258, 0.0
    %v3677 = vmax.f32 %v3263, 0.0
    %v3678 = vmax.f32 %v3268, 0.0
    %v3679 = vmax.f32 %v3273, 0.0
    %v3680 = vmax.f32 %v3278, 0.0
    %v3681 = vmax.f32 %v3283, 0.0
    %v3682 = vmax.f32 %v3288, 0.0
    %v3683 = vmax.f32 %v3293, 0.0
    %v3684 = vmax.f32 %v3298, 0.0
    %v3685 = vmax.f32 %v3303, 0.0
    %v3686 = vmax.f32 %v3308, 0.0
    %v3687 = vmax.f32 %v3313, 0.0
    %v3688 = vmax.f32 %v3318, 0.0
    %v3689 = vmax.f32 %v3323, 0.0
    %v3690 = vmax.f32 %v3328, 0.0
    %v3691 = vmax.f32 %v3333, 0.0
    %v3692 = vmax.f32 %v3338, 0.0
    %v3693 = vmax.f32 %v3343, 0.0
    %v3694 = vmax.f32 %v3348, 0.0
    %v3695 = vmax.f32 %v3353, 0.0
    %v3696 = vmax.f32 %v3358, 0.0
    %v3697 = vmax.f32 %v3363, 0.0
    %v3698 = vmax.f32 %v3368, 0.0
    %v3699 = vmax.f32 %v3373, 0.0
    %v3700 = vmax.f32 %v3378, 0.0
    %v3701 = vmax.f32 %v3383, 0.0
    %v3702 = vmax.f32 %v3388, 0.0
    %v3703 = vmax.f32 %v3393, 0.0
    %v3704 = vmax.f32 %v3398, 0.0
    %v3705 = vmax.f32 %v3403, 0.0
    %v3706 = vmax.f32 %v3408, 0.0
    %v3707 = vmax.f32 %v3413, 0.0
    %v3708 = vmax.f32 %v3418, 0.0
    %v3709 = vmax.f32 %v3423, 0.0
    %v3710 = vmax.f32 %v3428, 0.0
    %v3711 = vmax.f32 %v3433, 0.0
    %v3712 = vmax.f32 %v3438, 0.0
    %v3713 = vmax.f32 %v3443, 0.0
    %v3714 = vmax.f32 %v3448, 0.0
    %v3715 = vmax.f32 %v3453, 0.0
    %v3716 = vmax.f32 %v3458, 0.0
    %v3717 = vmax.f32 %v3463, 0.0
    %v3718 = vmax.f32 %v3468, 0.0
    %v3719 = vmax.f32 %v3473, 0.0
    %v3720 = vmax.f32 %v3478, 0.0
    %v3721 = vmax.f32 %v3483, 0.0
    %v3722 = vmax.f32 %v3488, 0.0
    %v3723 = vmax.f32 %v3493, 0.0
    %v3724 = vmax.f32 %v3498, 0.0
    %v3725 = vmax.f32 %v3503, 0.0
    %v3726 = vmax.f32 %v3508, 0.0
    %v3727 = vmax.f32 %v3513, 0.0
    %v3728 = vmax.f32 %v3518, 0.0
    %v3729 = vmax.f32 %v3523, 0.0
    %v3730 = vmax.f32 %v3528, 0.0
    %v3731 = vmax.f32 %v3533, 0.0
    %v3732 = vmax.f32 %v3538, 0.0
    %v3733 = vmax.f32 %v3543, 0.0
    %v3734 = vmax.f32 %v3548, 0.0
    %v3735 = vmax.f32 %v3553, 0.0
    %v3736 = vmax.f32 %v3558, 0.0
    %v3737 = vmax.f32 %v3563, 0.0
    %v3738 = vmax.f32 %v3568, 0.0
    %v3739 = vmax.f32 %v3573, 0.0
    %v3740 = vmax.f32 %v3578, 0.0
    %v3741 = vmax.f32 %v3583, 0.0
    %v3742 = vmax.f32 %v3588, 0.0
    %v3743 = vmax.f32 %v3593, 0.0
    %v3744 = vmax.f32 %v3598, 0.0
    %3761 = vrot.lane.b32.xlu0 %v3637, 16
    %v3762 = vpop.permute.xlu0 %3761
    %3763 = vrot.lane.b32.xlu0 %v3639, 16
    %v3764 = vpop.permute.xlu0 %3763
    %3765 = vrot.lane.b32.xlu0 %v3641, 16
    %v3766 = vpop.permute.xlu0 %3765
    %3767 = vrot.lane.b32.xlu0 %v3643, 16
    %v3768 = vpop.permute.xlu0 %3767
    %3769 = vrot.lane.b32.xlu0 %v3645, 16
    %v3770 = vpop.permute.xlu0 %3769
    %3771 = vrot.lane.b32.xlu0 %v3647, 16
    %v3772 = vpop.permute.xlu0 %3771
    %3773 = vrot.lane.b32.xlu0 %v3649, 16
    %v3774 = vpop.permute.xlu0 %3773
    %3775 = vrot.lane.b32.xlu0 %v3651, 16
    %v3776 = vpop.permute.xlu0 %3775
    %3777 = vrot.lane.b32.xlu0 %v3655, 16
    %v3778 = vpop.permute.xlu0 %3777
    %3779 = vrot.lane.b32.xlu0 %v3657, 16
    %v3780 = vpop.permute.xlu0 %3779
    %3781 = vrot.lane.b32.xlu0 %v3659, 16
    %v3782 = vpop.permute.xlu0 %3781
    %3783 = vrot.lane.b32.xlu0 %v3661, 16
    %v3784 = vpop.permute.xlu0 %3783
    %3785 = vrot.lane.b32.xlu0 %v3663, 16
    %v3786 = vpop.permute.xlu0 %3785
    %3787 = vrot.lane.b32.xlu0 %v3665, 16
    %v3788 = vpop.permute.xlu0 %3787
    %3789 = vrot.lane.b32.xlu0 %v3667, 16
    %v3790 = vpop.permute.xlu0 %3789
    %3791 = vrot.lane.b32.xlu0 %v3669, 16
    %v3792 = vpop.permute.xlu0 %3791
    %v3841 = vrot.slane %v3601, 1
    %v3842 = vrot.slane %v3602, 1
    %v3843 = vsel %vm862, %v3841, %v3842
    %v3844 = vrot.slane %v3603, 1
    %v3845 = vrot.slane %v3604, 1
    %v3846 = vsel %vm862, %v3844, %v3845
    %v3847 = vrot.slane %v3605, 1
    %v3848 = vrot.slane %v3606, 1
    %v3849 = vsel %vm862, %v3847, %v3848
    %v3850 = vrot.slane %v3607, 1
    %v3851 = vrot.slane %v3608, 1
    %v3852 = vsel %vm862, %v3850, %v3851
    %v3853 = vrot.slane %v3609, 1
    %v3854 = vrot.slane %v3610, 1
    %v3855 = vsel %vm862, %v3853, %v3854
    %v3856 = vrot.slane %v3611, 1
    %v3857 = vrot.slane %v3612, 1
    %v3858 = vsel %vm862, %v3856, %v3857
    %v3859 = vrot.slane %v3613, 1
    %v3860 = vrot.slane %v3614, 1
    %v3861 = vsel %vm862, %v3859, %v3860
    %v3862 = vrot.slane %v3615, 1
    %v3863 = vrot.slane %v3616, 1
    %v3864 = vsel %vm862, %v3862, %v3863
    %v3865 = vrot.slane %v3619, 1
    %v3866 = vrot.slane %v3620, 1
    %v3867 = vsel %vm862, %v3865, %v3866
    %v3868 = vrot.slane %v3621, 1
    %v3869 = vrot.slane %v3622, 1
    %v3870 = vsel %vm862, %v3868, %v3869
    %v3871 = vrot.slane %v3623, 1
    %v3872 = vrot.slane %v3624, 1
    %v3873 = vsel %vm862, %v3871, %v3872
    %v3874 = vrot.slane %v3625, 1
    %v3875 = vrot.slane %v3626, 1
    %v3876 = vsel %vm862, %v3874, %v3875
    %v3877 = vrot.slane %v3627, 1
    %v3878 = vrot.slane %v3628, 1
    %v3879 = vsel %vm862, %v3877, %v3878
    %v3880 = vrot.slane %v3629, 1
    %v3881 = vrot.slane %v3630, 1
    %v3882 = vsel %vm862, %v3880, %v3881
    %v3883 = vrot.slane %v3631, 1
    %v3884 = vrot.slane %v3632, 1
    %v3885 = vsel %vm862, %v3883, %v3884
    %v3886 = vrot.slane %v3633, 1
    %v3887 = vrot.slane %v3634, 1
    %v3888 = vsel %vm862, %v3886, %v3887
    %3889 = vrot.lane.b32.xlu0 %v3843, 32
    %v3890 = vpop.permute.xlu0 %3889
    %3891 = vrot.lane.b32.xlu0 %v3846, 32
    %v3892 = vpop.permute.xlu0 %3891
    %3893 = vrot.lane.b32.xlu0 %v3849, 32
    %v3894 = vpop.permute.xlu0 %3893
    %3895 = vrot.lane.b32.xlu0 %v3852, 32
    %v3896 = vpop.permute.xlu0 %3895
    %3897 = vrot.lane.b32.xlu0 %v3855, 32
    %v3898 = vpop.permute.xlu0 %3897
    %3899 = vrot.lane.b32.xlu0 %v3858, 32
    %v3900 = vpop.permute.xlu0 %3899
    %3901 = vrot.lane.b32.xlu0 %v3861, 32
    %v3902 = vpop.permute.xlu0 %3901
    %3903 = vrot.lane.b32.xlu0 %v3864, 32
    %v3904 = vpop.permute.xlu0 %3903
    %3905 = vrot.lane.b32.xlu0 %v3867, 32
    %v3906 = vpop.permute.xlu0 %3905
    %3907 = vrot.lane.b32.xlu0 %v3870, 32
    %v3908 = vpop.permute.xlu0 %3907
    %3909 = vrot.lane.b32.xlu0 %v3873, 32
    %v3910 = vpop.permute.xlu0 %3909
    %3911 = vrot.lane.b32.xlu0 %v3876, 32
    %v3912 = vpop.permute.xlu0 %3911
    %3913 = vrot.lane.b32.xlu0 %v3879, 32
    %v3914 = vpop.permute.xlu0 %3913
    %3915 = vrot.lane.b32.xlu0 %v3882, 32
    %v3916 = vpop.permute.xlu0 %3915
    %3917 = vrot.lane.b32.xlu0 %v3885, 32
    %v3918 = vpop.permute.xlu0 %3917
    %3919 = vrot.lane.b32.xlu0 %v3888, 32
    %v3920 = vpop.permute.xlu0 %3919
    %v3953 = vrot.slane %v3637, 1
    %v3954 = vrot.slane %v3638, 1
    %v3955 = vsel %vm862, %v3953, %v3954
    %v3956 = vrot.slane %v3639, 1
    %v3957 = vrot.slane %v3640, 1
    %v3958 = vsel %vm862, %v3956, %v3957
    %v3959 = vrot.slane %v3641, 1
    %v3960 = vrot.slane %v3642, 1
    %v3961 = vsel %vm862, %v3959, %v3960
    %v3962 = vrot.slane %v3643, 1
    %v3963 = vrot.slane %v3644, 1
    %v3964 = vsel %vm862, %v3962, %v3963
    %v3965 = vrot.slane %v3645, 1
    %v3966 = vrot.slane %v3646, 1
    %v3967 = vsel %vm862, %v3965, %v3966
    %v3968 = vrot.slane %v3647, 1
    %v3969 = vrot.slane %v3648, 1
    %v3970 = vsel %vm862, %v3968, %v3969
    %v3971 = vrot.slane %v3649, 1
    %v3972 = vrot.slane %v3650, 1
    %v3973 = vsel %vm862, %v3971, %v3972
    %v3974 = vrot.slane %v3651, 1
    %v3975 = vrot.slane %v3652, 1
    %v3976 = vsel %vm862, %v3974, %v3975
    %v3977 = vrot.slane %v3655, 1
    %v3978 = vrot.slane %v3656, 1
    %v3979 = vsel %vm862, %v3977, %v3978
    %v3980 = vrot.slane %v3657, 1
    %v3981 = vrot.slane %v3658, 1
    %v3982 = vsel %vm862, %v3980, %v3981
    %v3983 = vrot.slane %v3659, 1
    %v3984 = vrot.slane %v3660, 1
    %v3985 = vsel %vm862, %v3983, %v3984
    %v3986 = vrot.slane %v3661, 1
    %v3987 = vrot.slane %v3662, 1
    %v3988 = vsel %vm862, %v3986, %v3987
    %v3989 = vrot.slane %v3663, 1
    %v3990 = vrot.slane %v3664, 1
    %v3991 = vsel %vm862, %v3989, %v3990
    %v3992 = vrot.slane %v3665, 1
    %v3993 = vrot.slane %v3666, 1
    %v3994 = vsel %vm862, %v3992, %v3993
    %v3995 = vrot.slane %v3667, 1
    %v3996 = vrot.slane %v3668, 1
    %v3997 = vsel %vm862, %v3995, %v3996
    %v3998 = vrot.slane %v3669, 1
    %v3999 = vrot.slane %v3670, 1
    %v4000 = vsel %vm862, %v3998, %v3999
    %4001 = vrot.lane.b32.xlu0 %v3955, 48
    %v4002 = vpop.permute.xlu0 %4001
    %4003 = vrot.lane.b32.xlu0 %v3958, 48
    %v4004 = vpop.permute.xlu0 %4003
    %4005 = vrot.lane.b32.xlu0 %v3961, 48
    %v4006 = vpop.permute.xlu0 %4005
    %4007 = vrot.lane.b32.xlu0 %v3964, 48
    %v4008 = vpop.permute.xlu0 %4007
    %4009 = vrot.lane.b32.xlu0 %v3967, 48
    %v4010 = vpop.permute.xlu0 %4009
    %4011 = vrot.lane.b32.xlu0 %v3970, 48
    %v4012 = vpop.permute.xlu0 %4011
    %4013 = vrot.lane.b32.xlu0 %v3973, 48
    %v4014 = vpop.permute.xlu0 %4013
    %4015 = vrot.lane.b32.xlu0 %v3976, 48
    %v4016 = vpop.permute.xlu0 %4015
    %4017 = vrot.lane.b32.xlu0 %v3979, 48
    %v4018 = vpop.permute.xlu0 %4017
    %4019 = vrot.lane.b32.xlu0 %v3982, 48
    %v4020 = vpop.permute.xlu0 %4019
    %4021 = vrot.lane.b32.xlu0 %v3985, 48
    %v4022 = vpop.permute.xlu0 %4021
    %4023 = vrot.lane.b32.xlu0 %v3988, 48
    %v4024 = vpop.permute.xlu0 %4023
    %4025 = vrot.lane.b32.xlu0 %v3991, 48
    %v4026 = vpop.permute.xlu0 %4025
    %4027 = vrot.lane.b32.xlu0 %v3994, 48
    %v4028 = vpop.permute.xlu0 %4027
    %4029 = vrot.lane.b32.xlu0 %v3997, 48
    %v4030 = vpop.permute.xlu0 %4029
    %4031 = vrot.lane.b32.xlu0 %v4000, 48
    %v4032 = vpop.permute.xlu0 %4031
    %4065 = vrot.lane.b32.xlu0 %v3673, 64
    %v4066 = vpop.permute.xlu0 %4065
    %4067 = vrot.lane.b32.xlu0 %v3675, 64
    %v4068 = vpop.permute.xlu0 %4067
    %4069 = vrot.lane.b32.xlu0 %v3677, 64
    %v4070 = vpop.permute.xlu0 %4069
    %4071 = vrot.lane.b32.xlu0 %v3679, 64
    %v4072 = vpop.permute.xlu0 %4071
    %4073 = vrot.lane.b32.xlu0 %v3681, 64
    %v4074 = vpop.permute.xlu0 %4073
    %4075 = vrot.lane.b32.xlu0 %v3683, 64
    %v4076 = vpop.permute.xlu0 %4075
    %4077 = vrot.lane.b32.xlu0 %v3685, 64
    %v4078 = vpop.permute.xlu0 %4077
    %4079 = vrot.lane.b32.xlu0 %v3687, 64
    %v4080 = vpop.permute.xlu0 %4079
    %4081 = vrot.lane.b32.xlu0 %v3691, 64
    %v4082 = vpop.permute.xlu0 %4081
    %4083 = vrot.lane.b32.xlu0 %v3693, 64
    %v4084 = vpop.permute.xlu0 %4083
    %4085 = vrot.lane.b32.xlu0 %v3695, 64
    %v4086 = vpop.permute.xlu0 %4085
    %4087 = vrot.lane.b32.xlu0 %v3697, 64
    %v4088 = vpop.permute.xlu0 %4087
    %4089 = vrot.lane.b32.xlu0 %v3699, 64
    %v4090 = vpop.permute.xlu0 %4089
    %4091 = vrot.lane.b32.xlu0 %v3701, 64
    %v4092 = vpop.permute.xlu0 %4091
    %4093 = vrot.lane.b32.xlu0 %v3703, 64
    %v4094 = vpop.permute.xlu0 %4093
    %4095 = vrot.lane.b32.xlu0 %v3705, 64
    %v4096 = vpop.permute.xlu0 %4095
    %4129 = vrot.lane.b32.xlu0 %v3709, 80
    %v4130 = vpop.permute.xlu0 %4129
    %4131 = vrot.lane.b32.xlu0 %v3711, 80
    %v4132 = vpop.permute.xlu0 %4131
    %4133 = vrot.lane.b32.xlu0 %v3713, 80
    %v4134 = vpop.permute.xlu0 %4133
    %4135 = vrot.lane.b32.xlu0 %v3715, 80
    %v4136 = vpop.permute.xlu0 %4135
    %4137 = vrot.lane.b32.xlu0 %v3717, 80
    %v4138 = vpop.permute.xlu0 %4137
    %4139 = vrot.lane.b32.xlu0 %v3719, 80
    %v4140 = vpop.permute.xlu0 %4139
    %4141 = vrot.lane.b32.xlu0 %v3721, 80
    %v4142 = vpop.permute.xlu0 %4141
    %4143 = vrot.lane.b32.xlu0 %v3723, 80
    %v4144 = vpop.permute.xlu0 %4143
    %4145 = vrot.lane.b32.xlu0 %v3727, 80
    %v4146 = vpop.permute.xlu0 %4145
    %4147 = vrot.lane.b32.xlu0 %v3729, 80
    %v4148 = vpop.permute.xlu0 %4147
    %4149 = vrot.lane.b32.xlu0 %v3731, 80
    %v4150 = vpop.permute.xlu0 %4149
    %4151 = vrot.lane.b32.xlu0 %v3733, 80
    %v4152 = vpop.permute.xlu0 %4151
    %4153 = vrot.lane.b32.xlu0 %v3735, 80
    %v4154 = vpop.permute.xlu0 %4153
    %4155 = vrot.lane.b32.xlu0 %v3737, 80
    %v4156 = vpop.permute.xlu0 %4155
    %4157 = vrot.lane.b32.xlu0 %v3739, 80
    %v4158 = vpop.permute.xlu0 %4157
    %4159 = vrot.lane.b32.xlu0 %v3741, 80
    %v4160 = vpop.permute.xlu0 %4159
    %v4193 = vrot.slane %v3673, 1
    %v4194 = vrot.slane %v3674, 1
    %v4195 = vsel %vm862, %v4193, %v4194
    %v4196 = vrot.slane %v3675, 1
    %v4197 = vrot.slane %v3676, 1
    %v4198 = vsel %vm862, %v4196, %v4197
    %v4199 = vrot.slane %v3677, 1
    %v4200 = vrot.slane %v3678, 1
    %v4201 = vsel %vm862, %v4199, %v4200
    %v4202 = vrot.slane %v3679, 1
    %v4203 = vrot.slane %v3680, 1
    %v4204 = vsel %vm862, %v4202, %v4203
    %v4205 = vrot.slane %v3681, 1
    %v4206 = vrot.slane %v3682, 1
    %v4207 = vsel %vm862, %v4205, %v4206
    %v4208 = vrot.slane %v3683, 1
    %v4209 = vrot.slane %v3684, 1
    %v4210 = vsel %vm862, %v4208, %v4209
    %v4211 = vrot.slane %v3685, 1
    %v4212 = vrot.slane %v3686, 1
    %v4213 = vsel %vm862, %v4211, %v4212
    %v4214 = vrot.slane %v3687, 1
    %v4215 = vrot.slane %v3688, 1
    %v4216 = vsel %vm862, %v4214, %v4215
    %v4217 = vrot.slane %v3691, 1
    %v4218 = vrot.slane %v3692, 1
    %v4219 = vsel %vm862, %v4217, %v4218
    %v4220 = vrot.slane %v3693, 1
    %v4221 = vrot.slane %v3694, 1
    %v4222 = vsel %vm862, %v4220, %v4221
    %v4223 = vrot.slane %v3695, 1
    %v4224 = vrot.slane %v3696, 1
    %v4225 = vsel %vm862, %v4223, %v4224
    %v4226 = vrot.slane %v3697, 1
    %v4227 = vrot.slane %v3698, 1
    %v4228 = vsel %vm862, %v4226, %v4227
    %v4229 = vrot.slane %v3699, 1
    %v4230 = vrot.slane %v3700, 1
    %v4231 = vsel %vm862, %v4229, %v4230
    %v4232 = vrot.slane %v3701, 1
    %v4233 = vrot.slane %v3702, 1
    %v4234 = vsel %vm862, %v4232, %v4233
    %v4235 = vrot.slane %v3703, 1
    %v4236 = vrot.slane %v3704, 1
    %v4237 = vsel %vm862, %v4235, %v4236
    %v4238 = vrot.slane %v3705, 1
    %v4239 = vrot.slane %v3706, 1
    %v4240 = vsel %vm862, %v4238, %v4239
    %4241 = vrot.lane.b32.xlu0 %v4195, 96
    %v4242 = vpop.permute.xlu0 %4241
    %4243 = vrot.lane.b32.xlu0 %v4198, 96
    %v4244 = vpop.permute.xlu0 %4243
    %4245 = vrot.lane.b32.xlu0 %v4201, 96
    %v4246 = vpop.permute.xlu0 %4245
    %4247 = vrot.lane.b32.xlu0 %v4204, 96
    %v4248 = vpop.permute.xlu0 %4247
    %4249 = vrot.lane.b32.xlu0 %v4207, 96
    %v4250 = vpop.permute.xlu0 %4249
    %4251 = vrot.lane.b32.xlu0 %v4210, 96
    %v4252 = vpop.permute.xlu0 %4251
    %4253 = vrot.lane.b32.xlu0 %v4213, 96
    %v4254 = vpop.permute.xlu0 %4253
    %4255 = vrot.lane.b32.xlu0 %v4216, 96
    %v4256 = vpop.permute.xlu0 %4255
    %4257 = vrot.lane.b32.xlu0 %v4219, 96
    %v4258 = vpop.permute.xlu0 %4257
    %4259 = vrot.lane.b32.xlu0 %v4222, 96
    %v4260 = vpop.permute.xlu0 %4259
    %4261 = vrot.lane.b32.xlu0 %v4225, 96
    %v4262 = vpop.permute.xlu0 %4261
    %4263 = vrot.lane.b32.xlu0 %v4228, 96
    %v4264 = vpop.permute.xlu0 %4263
    %4265 = vrot.lane.b32.xlu0 %v4231, 96
    %v4266 = vpop.permute.xlu0 %4265
    %4267 = vrot.lane.b32.xlu0 %v4234, 96
    %v4268 = vpop.permute.xlu0 %4267
    %4269 = vrot.lane.b32.xlu0 %v4237, 96
    %v4270 = vpop.permute.xlu0 %4269
    %4271 = vrot.lane.b32.xlu0 %v4240, 96
    %v4272 = vpop.permute.xlu0 %4271
    %v4305 = vrot.slane %v3709, 1
    %v4306 = vrot.slane %v3710, 1
    %v4307 = vsel %vm862, %v4305, %v4306
    %v4308 = vrot.slane %v3711, 1
    %v4309 = vrot.slane %v3712, 1
    %v4310 = vsel %vm862, %v4308, %v4309
    %v4311 = vrot.slane %v3713, 1
    %v4312 = vrot.slane %v3714, 1
    %v4313 = vsel %vm862, %v4311, %v4312
    %v4314 = vrot.slane %v3715, 1
    %v4315 = vrot.slane %v3716, 1
    %v4316 = vsel %vm862, %v4314, %v4315
    %v4317 = vrot.slane %v3717, 1
    %v4318 = vrot.slane %v3718, 1
    %v4319 = vsel %vm862, %v4317, %v4318
    %v4320 = vrot.slane %v3719, 1
    %v4321 = vrot.slane %v3720, 1
    %v4322 = vsel %vm862, %v4320, %v4321
    %v4323 = vrot.slane %v3721, 1
    %v4324 = vrot.slane %v3722, 1
    %v4325 = vsel %vm862, %v4323, %v4324
    %v4326 = vrot.slane %v3723, 1
    %v4327 = vrot.slane %v3724, 1
    %v4328 = vsel %vm862, %v4326, %v4327
    %v4329 = vrot.slane %v3727, 1
    %v4330 = vrot.slane %v3728, 1
    %v4331 = vsel %vm862, %v4329, %v4330
    %v4332 = vrot.slane %v3729, 1
    %v4333 = vrot.slane %v3730, 1
    %v4334 = vsel %vm862, %v4332, %v4333
    %v4335 = vrot.slane %v3731, 1
    %v4336 = vrot.slane %v3732, 1
    %v4337 = vsel %vm862, %v4335, %v4336
    %v4338 = vrot.slane %v3733, 1
    %v4339 = vrot.slane %v3734, 1
    %v4340 = vsel %vm862, %v4338, %v4339
    %v4341 = vrot.slane %v3735, 1
    %v4342 = vrot.slane %v3736, 1
    %v4343 = vsel %vm862, %v4341, %v4342
    %v4344 = vrot.slane %v3737, 1
    %v4345 = vrot.slane %v3738, 1
    %v4346 = vsel %vm862, %v4344, %v4345
    %v4347 = vrot.slane %v3739, 1
    %v4348 = vrot.slane %v3740, 1
    %v4349 = vsel %vm862, %v4347, %v4348
    %v4350 = vrot.slane %v3741, 1
    %v4351 = vrot.slane %v3742, 1
    %v4352 = vsel %vm862, %v4350, %v4351
    %4353 = vrot.lane.b32.xlu0 %v4307, 112
    %v4354 = vpop.permute.xlu0 %4353
    %4355 = vrot.lane.b32.xlu0 %v4310, 112
    %v4356 = vpop.permute.xlu0 %4355
    %4357 = vrot.lane.b32.xlu0 %v4313, 112
    %v4358 = vpop.permute.xlu0 %4357
    %4359 = vrot.lane.b32.xlu0 %v4316, 112
    %v4360 = vpop.permute.xlu0 %4359
    %4361 = vrot.lane.b32.xlu0 %v4319, 112
    %v4362 = vpop.permute.xlu0 %4361
    %4363 = vrot.lane.b32.xlu0 %v4322, 112
    %v4364 = vpop.permute.xlu0 %4363
    %4365 = vrot.lane.b32.xlu0 %v4325, 112
    %v4366 = vpop.permute.xlu0 %4365
    %4367 = vrot.lane.b32.xlu0 %v4328, 112
    %v4368 = vpop.permute.xlu0 %4367
    %4369 = vrot.lane.b32.xlu0 %v4331, 112
    %v4370 = vpop.permute.xlu0 %4369
    %4371 = vrot.lane.b32.xlu0 %v4334, 112
    %v4372 = vpop.permute.xlu0 %4371
    %4373 = vrot.lane.b32.xlu0 %v4337, 112
    %v4374 = vpop.permute.xlu0 %4373
    %4375 = vrot.lane.b32.xlu0 %v4340, 112
    %v4376 = vpop.permute.xlu0 %4375
    %4377 = vrot.lane.b32.xlu0 %v4343, 112
    %v4378 = vpop.permute.xlu0 %4377
    %4379 = vrot.lane.b32.xlu0 %v4346, 112
    %v4380 = vpop.permute.xlu0 %4379
    %4381 = vrot.lane.b32.xlu0 %v4349, 112
    %v4382 = vpop.permute.xlu0 %4381
    %4383 = vrot.lane.b32.xlu0 %v4352, 112
    %v4384 = vpop.permute.xlu0 %4383
    %4403 = vrot.lane.b32.xlu0 %v3653, 16
    %v4404 = vpop.permute.xlu0 %4403
    %4405 = vrot.lane.b32.xlu0 %v3671, 16
    %v4406 = vpop.permute.xlu0 %4405
    %v4413 = vrot.slane %v3617, 1
    %v4414 = vrot.slane %v3618, 1
    %v4415 = vsel %vm862, %v4413, %v4414
    %v4416 = vrot.slane %v3635, 1
    %v4417 = vrot.slane %v3636, 1
    %v4418 = vsel %vm862, %v4416, %v4417
    %4419 = vrot.lane.b32.xlu0 %v4415, 32
    %v4420 = vpop.permute.xlu0 %4419
    %4421 = vrot.lane.b32.xlu0 %v4418, 32
    %v4422 = vpop.permute.xlu0 %4421
    %v4427 = vrot.slane %v3653, 1
    %v4428 = vrot.slane %v3654, 1
    %v4429 = vsel %vm862, %v4427, %v4428
    %v4430 = vrot.slane %v3671, 1
    %v4431 = vrot.slane %v3672, 1
    %v4432 = vsel %vm862, %v4430, %v4431
    %4433 = vrot.lane.b32.xlu0 %v4429, 48
    %v4434 = vpop.permute.xlu0 %4433
    %4435 = vrot.lane.b32.xlu0 %v4432, 48
    %v4436 = vpop.permute.xlu0 %4435
    %4441 = vrot.lane.b32.xlu0 %v3689, 64
    %v4442 = vpop.permute.xlu0 %4441
    %4443 = vrot.lane.b32.xlu0 %v3707, 64
    %v4444 = vpop.permute.xlu0 %4443
    %4449 = vrot.lane.b32.xlu0 %v3725, 80
    %v4450 = vpop.permute.xlu0 %4449
    %4451 = vrot.lane.b32.xlu0 %v3743, 80
    %v4452 = vpop.permute.xlu0 %4451
    %v4457 = vrot.slane %v3689, 1
    %v4458 = vrot.slane %v3690, 1
    %v4459 = vsel %vm862, %v4457, %v4458
    %v4460 = vrot.slane %v3707, 1
    %v4461 = vrot.slane %v3708, 1
    %v4462 = vsel %vm862, %v4460, %v4461
    %4463 = vrot.lane.b32.xlu0 %v4459, 96
    %v4464 = vpop.permute.xlu0 %4463
    %4465 = vrot.lane.b32.xlu0 %v4462, 96
    %v4466 = vpop.permute.xlu0 %4465
    %v4471 = vrot.slane %v3725, 1
    %v4472 = vrot.slane %v3726, 1
    %v4473 = vsel %vm862, %v4471, %v4472
    %v4474 = vrot.slane %v3743, 1
    %v4475 = vrot.slane %v3744, 1
    %v4476 = vsel %vm862, %v4474, %v4475
    %4477 = vrot.lane.b32.xlu0 %v4473, 112
    %v4478 = vpop.permute.xlu0 %4477
    %4479 = vrot.lane.b32.xlu0 %v4476, 112
    %v4480 = vpop.permute.xlu0 %4479
    %v4483 = vsel %vm697, %v3601, %v3762
    %v4484 = vsel %vm697, %v3603, %v3764
    %v4485 = vsel %vm697, %v3605, %v3766
    %v4486 = vsel %vm697, %v3607, %v3768
    %v4487 = vsel %vm697, %v3609, %v3770
    %v4488 = vsel %vm697, %v3611, %v3772
    %v4489 = vsel %vm697, %v3613, %v3774
    %v4490 = vsel %vm697, %v3615, %v3776
    %v4491 = vsel %vm697, %v3619, %v3778
    %v4492 = vsel %vm697, %v3621, %v3780
    %v4493 = vsel %vm697, %v3623, %v3782
    %v4494 = vsel %vm697, %v3625, %v3784
    %v4495 = vsel %vm697, %v3627, %v3786
    %v4496 = vsel %vm697, %v3629, %v3788
    %v4497 = vsel %vm697, %v3631, %v3790
    %v4498 = vsel %vm697, %v3633, %v3792
    %v4499 = vsel %vm734, %v4483, %v3890
    %v4500 = vsel %vm734, %v4484, %v3892
    %v4501 = vsel %vm734, %v4485, %v3894
    %v4502 = vsel %vm734, %v4486, %v3896
    %v4503 = vsel %vm734, %v4487, %v3898
    %v4504 = vsel %vm734, %v4488, %v3900
    %v4505 = vsel %vm734, %v4489, %v3902
    %v4506 = vsel %vm734, %v4490, %v3904
    %v4507 = vsel %vm734, %v4491, %v3906
    %v4508 = vsel %vm734, %v4492, %v3908
    %v4509 = vsel %vm734, %v4493, %v3910
    %v4510 = vsel %vm734, %v4494, %v3912
    %v4511 = vsel %vm734, %v4495, %v3914
    %v4512 = vsel %vm734, %v4496, %v3916
    %v4513 = vsel %vm734, %v4497, %v3918
    %v4514 = vsel %vm734, %v4498, %v3920
    %v4515 = vsel %vm771, %v4499, %v4002
    %v4516 = vsel %vm771, %v4500, %v4004
    %v4517 = vsel %vm771, %v4501, %v4006
    %v4518 = vsel %vm771, %v4502, %v4008
    %v4519 = vsel %vm771, %v4503, %v4010
    %v4520 = vsel %vm771, %v4504, %v4012
    %v4521 = vsel %vm771, %v4505, %v4014
    %v4522 = vsel %vm771, %v4506, %v4016
    %v4523 = vsel %vm771, %v4507, %v4018
    %v4524 = vsel %vm771, %v4508, %v4020
    %v4525 = vsel %vm771, %v4509, %v4022
    %v4526 = vsel %vm771, %v4510, %v4024
    %v4527 = vsel %vm771, %v4511, %v4026
    %v4528 = vsel %vm771, %v4512, %v4028
    %v4529 = vsel %vm771, %v4513, %v4030
    %v4530 = vsel %vm771, %v4514, %v4032
    %v4531 = vsel %vm2383, %v4515, %v4066
    %v4532 = vsel %vm2383, %v4516, %v4068
    %v4533 = vsel %vm2383, %v4517, %v4070
    %v4534 = vsel %vm2383, %v4518, %v4072
    %v4535 = vsel %vm2383, %v4519, %v4074
    %v4536 = vsel %vm2383, %v4520, %v4076
    %v4537 = vsel %vm2383, %v4521, %v4078
    %v4538 = vsel %vm2383, %v4522, %v4080
    %v4539 = vsel %vm2383, %v4523, %v4082
    %v4540 = vsel %vm2383, %v4524, %v4084
    %v4541 = vsel %vm2383, %v4525, %v4086
    %v4542 = vsel %vm2383, %v4526, %v4088
    %v4543 = vsel %vm2383, %v4527, %v4090
    %v4544 = vsel %vm2383, %v4528, %v4092
    %v4545 = vsel %vm2383, %v4529, %v4094
    %v4546 = vsel %vm2383, %v4530, %v4096
    %vm4547 = vcmask 654336
    %v4548 = vsel %vm4547, %v4531, %v4130
    %v4549 = vsel %vm4547, %v4532, %v4132
    %v4550 = vsel %vm4547, %v4533, %v4134
    %v4551 = vsel %vm4547, %v4534, %v4136
    %v4552 = vsel %vm4547, %v4535, %v4138
    %v4553 = vsel %vm4547, %v4536, %v4140
    %v4554 = vsel %vm4547, %v4537, %v4142
    %v4555 = vsel %vm4547, %v4538, %v4144
    %v4556 = vsel %vm4547, %v4539, %v4146
    %v4557 = vsel %vm4547, %v4540, %v4148
    %v4558 = vsel %vm4547, %v4541, %v4150
    %v4559 = vsel %vm4547, %v4542, %v4152
    %v4560 = vsel %vm4547, %v4543, %v4154
    %v4561 = vsel %vm4547, %v4544, %v4156
    %v4562 = vsel %vm4547, %v4545, %v4158
    %v4563 = vsel %vm4547, %v4546, %v4160
    %vm4564 = vcmask 785408
    %v4565 = vsel %vm4564, %v4548, %v4242
    %v4566 = vsel %vm4564, %v4549, %v4244
    %v4567 = vsel %vm4564, %v4550, %v4246
    %v4568 = vsel %vm4564, %v4551, %v4248
    %v4569 = vsel %vm4564, %v4552, %v4250
    %v4570 = vsel %vm4564, %v4553, %v4252
    %v4571 = vsel %vm4564, %v4554, %v4254
    %v4572 = vsel %vm4564, %v4555, %v4256
    %v4573 = vsel %vm4564, %v4556, %v4258
    %v4574 = vsel %vm4564, %v4557, %v4260
    %v4575 = vsel %vm4564, %v4558, %v4262
    %v4576 = vsel %vm4564, %v4559, %v4264
    %v4577 = vsel %vm4564, %v4560, %v4266
    %v4578 = vsel %vm4564, %v4561, %v4268
    %v4579 = vsel %vm4564, %v4562, %v4270
    %v4580 = vsel %vm4564, %v4563, %v4272
    %vm4581 = vcmask 916480
    %v4582 = vsel %vm4581, %v4565, %v4354
    %v4583 = vsel %vm4581, %v4566, %v4356
    %v4584 = vsel %vm4581, %v4567, %v4358
    %v4585 = vsel %vm4581, %v4568, %v4360
    %v4586 = vsel %vm4581, %v4569, %v4362
    %v4587 = vsel %vm4581, %v4570, %v4364
    %v4588 = vsel %vm4581, %v4571, %v4366
    %v4589 = vsel %vm4581, %v4572, %v4368
    %v4590 = vsel %vm4581, %v4573, %v4370
    %v4591 = vsel %vm4581, %v4574, %v4372
    %v4592 = vsel %vm4581, %v4575, %v4374
    %v4593 = vsel %vm4581, %v4576, %v4376
    %v4594 = vsel %vm4581, %v4577, %v4378
    %v4595 = vsel %vm4581, %v4578, %v4380
    %v4596 = vsel %vm4581, %v4579, %v4382
    %v4597 = vsel %vm4581, %v4580, %v4384
    %v4598 = vsel %vm697, %v3617, %v4404
    %v4599 = vsel %vm697, %v3635, %v4406
    %v4600 = vsel %vm734, %v4598, %v4420
    %v4601 = vsel %vm734, %v4599, %v4422
    %v4602 = vsel %vm771, %v4600, %v4434
    %v4603 = vsel %vm771, %v4601, %v4436
    %v4604 = vsel %vm2383, %v4602, %v4442
    %v4605 = vsel %vm2383, %v4603, %v4444
    %v4606 = vsel %vm4547, %v4604, %v4450
    %v4607 = vsel %vm4547, %v4605, %v4452
    %v4608 = vsel %vm4564, %v4606, %v4464
    %v4609 = vsel %vm4564, %v4607, %v4466
    %v4610 = vsel %vm4581, %v4608, %v4478
    %v4611 = vsel %vm4581, %v4609, %v4480
    %v4613 = vlaneseq
    %v4614 = vshrl.u32 %v4613, 7
    %v4615 = vsub.s32 0, %v4614
    %v4616 = vrot.slane %v264, %v4615
    %4618 = vmatprep.subr.mxu0 0.0
    %4619 = vmatpush1.msra.mxu0 %v232
    %4620 = vmatprep.subr.mxu0 0.0
    %4621 = vmatpush1.msra.mxu0 %v233
    %4622 = vmatprep.subr.mxu0 0.0
    %4623 = vmatpush1.msra.mxu0 %v234
    %4624 = vmatprep.subr.mxu0 0.0
    %4625 = vmatpush1.msra.mxu0 %v235
    %4626 = vmatprep.subr.mxu0 0.0
    %4627 = vmatpush1.msra.mxu0 %v236
    %4628 = vmatprep.subr.mxu0 0.0
    %4629 = vmatpush1.msra.mxu0 %v237
    %4630 = vmatprep.subr.mxu0 0.0
    %4631 = vmatpush1.msra.mxu0 %v238
    %4632 = vmatprep.subr.mxu0 0.0
    %4633 = vmatpush1.msra.mxu0 %v239
    %4634 = vmatprep.subr.mxu0 0.0
    %4635 = vmatpush1.msra.mxu0 %v240
    %4636 = vmatprep.subr.mxu0 0.0
    %4637 = vmatpush1.msra.mxu0 %v241
    %4638 = vmatprep.subr.mxu0 0.0
    %4639 = vmatpush1.msra.mxu0 %v242
    %4640 = vmatprep.subr.mxu0 0.0
    %4641 = vmatpush1.msra.mxu0 %v243
    %4642 = vmatprep.subr.mxu0 0.0
    %4643 = vmatpush1.msra.mxu0 %v244
    %4644 = vmatprep.subr.mxu0 0.0
    %4645 = vmatpush1.msra.mxu0 %v245
    %4646 = vmatprep.subr.mxu0 0.0
    %4647 = vmatpush1.msra.mxu0 %v246
    %4648 = vmatprep.subr.mxu0 0.0
    %4649 = vmatpush1.msra.mxu0 %v247
    %4650 = vmatprep.subr.mxu0 0.0
    %4651 = vmatpush1.msra.mxu0 %v248
    %4652 = vmatprep.subr.mxu0 0.0
    %4653 = vmatpush1.msra.mxu0 %v249
    %4654 = vmatprep.subr.mxu0 0.0
    %4655 = vmatpush1.msra.mxu0 %v250
    %4656 = vmatprep.subr.mxu0 0.0
    %4657 = vmatpush1.msra.mxu0 %v251
    %4658 = vmatprep.subr.mxu0 0.0
    %4659 = vmatpush1.msra.mxu0 %v252
    %4660 = vmatprep.subr.mxu0 0.0
    %4661 = vmatpush1.msra.mxu0 %v253
    %4662 = vmatprep.subr.mxu0 0.0
    %4663 = vmatpush1.msra.mxu0 %v254
    %4664 = vmatprep.subr.mxu0 0.0
    %4665 = vmatpush1.msra.mxu0 %v255
    %4666 = vmatprep.subr.mxu0 0.0
    %4667 = vmatpush1.msra.mxu0 %v256
    %4668 = vmatprep.subr.mxu0 0.0
    %4669 = vmatpush1.msra.mxu0 %v257
    %4670 = vmatprep.subr.mxu0 0.0
    %4671 = vmatpush1.msra.mxu0 %v258
    %4672 = vmatprep.subr.mxu0 0.0
    %4673 = vmatpush1.msra.mxu0 %v259
    %4674 = vmatprep.subr.mxu0 0.0
    %4675 = vmatpush1.msra.mxu0 %v260
    %4676 = vmatprep.subr.mxu0 0.0
    %4677 = vmatpush1.msra.mxu0 %v261
    %4678 = vmatprep.subr.mxu0 0.0
    %4679 = vmatpush1.msra.mxu0 %v262
    %4680 = vmatprep.subr.mxu0 0.0
    %4681 = vmatpush1.msra.mxu0 %v263
    %4682 = vmatprep.mubr.f32.mxu0 %v4583
    %4683 = vmatmul.mubr.f32.gmra.mrb[0].mxu0 %v4582
    %v4684 = vpop.f32.mrb[0].mxu0
    %v4685 = vadd.f32 %v4616, %v4684
    %v4686 = vpop.f32.mrb[0].mxu0
    %4687 = vmatprep.mubr.f32.mxu0 %v4584
    %4688 = vmatmul.mubr.f32.gmra.mrb[0].mxu0 %v4583
    %v4689 = vpop.f32.mrb[0].mxu0
    %v4690 = vadd.f32 %v4616, %v4689
    %v4691 = vpop.f32.mrb[0].mxu0
    %4692 = vmatprep.mubr.f32.mxu0 %v4585
    %4693 = vmatmul.mubr.f32.gmra.mrb[0].mxu0 %v4584
    %v4694 = vpop.f32.mrb[0].mxu0
    %v4695 = vadd.f32 %v4616, %v4694
    %v4696 = vpop.f32.mrb[0].mxu0
    %4697 = vmatprep.mubr.f32.mxu0 %v4586
    %4698 = vmatmul.mubr.f32.gmra.mrb[0].mxu0 %v4585
    %v4699 = vpop.f32.mrb[0].mxu0
    %v4700 = vadd.f32 %v4616, %v4699
    %v4701 = vpop.f32.mrb[0].mxu0
    %4702 = vmatprep.mubr.f32.mxu0 %v4587
    %4703 = vmatmul.mubr.f32.gmra.mrb[0].mxu0 %v4586
    %v4704 = vpop.f32.mrb[0].mxu0
    %v4705 = vadd.f32 %v4616, %v4704
    %v4706 = vpop.f32.mrb[0].mxu0
    %4707 = vmatprep.mubr.f32.mxu0 %v4588
    %4708 = vmatmul.mubr.f32.gmra.mrb[0].mxu0 %v4587
    %v4709 = vpop.f32.mrb[0].mxu0
    %v4710 = vadd.f32 %v4616, %v4709
    %v4711 = vpop.f32.mrb[0].mxu0
    %4712 = vmatprep.mubr.f32.mxu0 %v4589
    %4713 = vmatmul.mubr.f32.gmra.mrb[0].mxu0 %v4588
    %v4714 = vpop.f32.mrb[0].mxu0
    %v4715 = vadd.f32 %v4616, %v4714
    %v4716 = vpop.f32.mrb[0].mxu0
    %4717 = vmatprep.mubr.f32.mxu0 %v4610
    %4718 = vmatmul.mubr.f32.gmra.mrb[0].mxu0 %v4589
    %v4719 = vpop.f32.mrb[0].mxu0
    %v4720 = vadd.f32 %v4616, %v4719
    %v4721 = vpop.f32.mrb[0].mxu0
    %4722 = vmatprep.mubr.f32.mxu0 %v4591
    %4723 = vmatmul.mubr.f32.gmra.mrb[0].mxu0 %v4590
    %v4724 = vpop.f32.mrb[0].mxu0
    %v4725 = vadd.f32 %v4616, %v4724
    %v4726 = vpop.f32.mrb[0].mxu0
    %4727 = vmatprep.mubr.f32.mxu0 %v4592
    %4728 = vmatmul.mubr.f32.gmra.mrb[0].mxu0 %v4591
    %v4729 = vpop.f32.mrb[0].mxu0
    %v4730 = vadd.f32 %v4616, %v4729
    %v4731 = vpop.f32.mrb[0].mxu0
    %4732 = vmatprep.mubr.f32.mxu0 %v4593
    %4733 = vmatmul.mubr.f32.gmra.mrb[0].mxu0 %v4592
    %v4734 = vpop.f32.mrb[0].mxu0
    %v4735 = vadd.f32 %v4616, %v4734
    %v4736 = vpop.f32.mrb[0].mxu0
    %4737 = vmatprep.mubr.f32.mxu0 %v4594
    %4738 = vmatmul.mubr.f32.gmra.mrb[0].mxu0 %v4593
    %v4739 = vpop.f32.mrb[0].mxu0
    %v4740 = vadd.f32 %v4616, %v4739
    %v4741 = vpop.f32.mrb[0].mxu0
    %4742 = vmatprep.mubr.f32.mxu0 %v4595
    %4743 = vmatmul.mubr.f32.gmra.mrb[0].mxu0 %v4594
    %v4744 = vpop.f32.mrb[0].mxu0
    %v4745 = vadd.f32 %v4616, %v4744
    %v4746 = vpop.f32.mrb[0].mxu0
    %4747 = vmatprep.mubr.f32.mxu0 %v4596
    %4748 = vmatmul.mubr.f32.gmra.mrb[0].mxu0 %v4595
    %v4749 = vpop.f32.mrb[0].mxu0
    %v4750 = vadd.f32 %v4616, %v4749
    %v4751 = vpop.f32.mrb[0].mxu0
    %4752 = vmatprep.mubr.f32.mxu0 %v4597
    %4753 = vmatmul.mubr.f32.gmra.mrb[0].mxu0 %v4596
    %v4754 = vpop.f32.mrb[0].mxu0
    %v4755 = vadd.f32 %v4616, %v4754
    %v4756 = vpop.f32.mrb[0].mxu0
    %4757 = vmatprep.mubr.f32.mxu0 %v4611
    %4758 = vmatmul.mubr.f32.gmra.mrb[0].mxu0 %v4597
    %v4759 = vpop.f32.mrb[0].mxu0
    %v4760 = vadd.f32 %v4616, %v4759
    %v4761 = vpop.f32.mrb[0].mxu0
    %4762 = vdwg.mxu0
    %v4763 = vmax.f32 %v4685, 0.0
    %v4764 = vmax.f32 %v4690, 0.0
    %v4765 = vmax.f32 %v4695, 0.0
    %v4766 = vmax.f32 %v4700, 0.0
    %v4767 = vmax.f32 %v4705, 0.0
    %v4768 = vmax.f32 %v4710, 0.0
    %v4769 = vmax.f32 %v4715, 0.0
    %v4770 = vmax.f32 %v4720, 0.0
    %v4771 = vmax.f32 %v4725, 0.0
    %v4772 = vmax.f32 %v4730, 0.0
    %v4773 = vmax.f32 %v4735, 0.0
    %v4774 = vmax.f32 %v4740, 0.0
    %v4775 = vmax.f32 %v4745, 0.0
    %v4776 = vmax.f32 %v4750, 0.0
    %v4777 = vmax.f32 %v4755, 0.0
    %v4778 = vmax.f32 %v4760, 0.0
    %v4795 = vrot.slane %v4764, 7
    %vm4796 = vcmask 1041409
    %v4797 = vsel %vm4796, %v4795, %v4763
    %v4798 = vrot.slane %v4765, 6
    %vm4799 = vcmask 1042434
    %v4800 = vsel %vm4799, %v4798, %v4797
    %v4801 = vrot.slane %v4766, 5
    %vm4802 = vcmask 1043459
    %v4803 = vsel %vm4802, %v4801, %v4800
    %v4804 = vrot.slane %v4767, 4
    %vm4805 = vcmask 1044484
    %v4806 = vsel %vm4805, %v4804, %v4803
    %v4807 = vrot.slane %v4768, 3
    %vm4808 = vcmask 1045509
    %v4809 = vsel %vm4808, %v4807, %v4806
    %v4810 = vrot.slane %v4769, 2
    %vm4811 = vcmask 1046534
    %v4812 = vsel %vm4811, %v4810, %v4809
    %v4813 = vrot.slane %v4770, 1
    %vm4814 = vcmask 1047559
    %v4815 = vsel %vm4814, %v4813, %v4812
    %v4816 = vrot.slane %v4772, 7
    %v4817 = vsel %vm4796, %v4816, %v4771
    %v4818 = vrot.slane %v4773, 6
    %v4819 = vsel %vm4799, %v4818, %v4817
    %v4820 = vrot.slane %v4774, 5
    %v4821 = vsel %vm4802, %v4820, %v4819
    %v4822 = vrot.slane %v4775, 4
    %v4823 = vsel %vm4805, %v4822, %v4821
    %v4824 = vrot.slane %v4776, 3
    %v4825 = vsel %vm4808, %v4824, %v4823
    %v4826 = vrot.slane %v4777, 2
    %v4827 = vsel %vm4811, %v4826, %v4825
    %v4828 = vrot.slane %v4778, 1
    %v4829 = vsel %vm4814, %v4828, %v4827
    %v4832 = vrot.slane %v4763, 1
    %v4833 = vsel %vm4796, %v4764, %v4832
    %v4834 = vrot.slane %v4765, 7
    %v4835 = vsel %vm4799, %v4834, %v4833
    %v4836 = vrot.slane %v4766, 6
    %v4837 = vsel %vm4802, %v4836, %v4835
    %v4838 = vrot.slane %v4767, 5
    %v4839 = vsel %vm4805, %v4838, %v4837
    %v4840 = vrot.slane %v4768, 4
    %v4841 = vsel %vm4808, %v4840, %v4839
    %v4842 = vrot.slane %v4769, 3
    %v4843 = vsel %vm4811, %v4842, %v4841
    %v4844 = vrot.slane %v4770, 2
    %v4845 = vsel %vm4814, %v4844, %v4843
    %v4846 = vrot.slane %v4771, 1
    %v4847 = vsel %vm4796, %v4772, %v4846
    %v4848 = vrot.slane %v4773, 7
    %v4849 = vsel %vm4799, %v4848, %v4847
    %v4850 = vrot.slane %v4774, 6
    %v4851 = vsel %vm4802, %v4850, %v4849
    %v4852 = vrot.slane %v4775, 5
    %v4853 = vsel %vm4805, %v4852, %v4851
    %v4854 = vrot.slane %v4776, 4
    %v4855 = vsel %vm4808, %v4854, %v4853
    %v4856 = vrot.slane %v4777, 3
    %v4857 = vsel %vm4811, %v4856, %v4855
    %v4858 = vrot.slane %v4778, 2
    %v4859 = vsel %vm4814, %v4858, %v4857
    %4860 = vrot.lane.b32.xlu0 %v4845, 32
    %v4861 = vpop.permute.xlu0 %4860
    %4862 = vrot.lane.b32.xlu0 %v4859, 32
    %v4863 = vpop.permute.xlu0 %4862
    %v4866 = vrot.slane %v4763, 2
    %v4867 = vrot.slane %v4764, 1
    %v4868 = vsel %vm4796, %v4867, %v4866
    %v4869 = vsel %vm4799, %v4765, %v4868
    %v4870 = vrot.slane %v4766, 7
    %v4871 = vsel %vm4802, %v4870, %v4869
    %v4872 = vrot.slane %v4767, 6
    %v4873 = vsel %vm4805, %v4872, %v4871
    %v4874 = vrot.slane %v4768, 5
    %v4875 = vsel %vm4808, %v4874, %v4873
    %v4876 = vrot.slane %v4769, 4
    %v4877 = vsel %vm4811, %v4876, %v4875
    %v4878 = vrot.slane %v4770, 3
    %v4879 = vsel %vm4814, %v4878, %v4877
    %v4880 = vrot.slane %v4771, 2
    %v4881 = vrot.slane %v4772, 1
    %v4882 = vsel %vm4796, %v4881, %v4880
    %v4883 = vsel %vm4799, %v4773, %v4882
    %v4884 = vrot.slane %v4774, 7
    %v4885 = vsel %vm4802, %v4884, %v4883
    %v4886 = vrot.slane %v4775, 6
    %v4887 = vsel %vm4805, %v4886, %v4885
    %v4888 = vrot.slane %v4776, 5
    %v4889 = vsel %vm4808, %v4888, %v4887
    %v4890 = vrot.slane %v4777, 4
    %v4891 = vsel %vm4811, %v4890, %v4889
    %v4892 = vrot.slane %v4778, 3
    %v4893 = vsel %vm4814, %v4892, %v4891
    %4894 = vrot.lane.b32.xlu0 %v4879, 64
    %v4895 = vpop.permute.xlu0 %4894
    %4896 = vrot.lane.b32.xlu0 %v4893, 64
    %v4897 = vpop.permute.xlu0 %4896
    %v4900 = vrot.slane %v4763, 3
    %v4901 = vrot.slane %v4764, 2
    %v4902 = vsel %vm4796, %v4901, %v4900
    %v4903 = vrot.slane %v4765, 1
    %v4904 = vsel %vm4799, %v4903, %v4902
    %v4905 = vsel %vm4802, %v4766, %v4904
    %v4906 = vrot.slane %v4767, 7
    %v4907 = vsel %vm4805, %v4906, %v4905
    %v4908 = vrot.slane %v4768, 6
    %v4909 = vsel %vm4808, %v4908, %v4907
    %v4910 = vrot.slane %v4769, 5
    %v4911 = vsel %vm4811, %v4910, %v4909
    %v4912 = vrot.slane %v4770, 4
    %v4913 = vsel %vm4814, %v4912, %v4911
    %v4914 = vrot.slane %v4771, 3
    %v4915 = vrot.slane %v4772, 2
    %v4916 = vsel %vm4796, %v4915, %v4914
    %v4917 = vrot.slane %v4773, 1
    %v4918 = vsel %vm4799, %v4917, %v4916
    %v4919 = vsel %vm4802, %v4774, %v4918
    %v4920 = vrot.slane %v4775, 7
    %v4921 = vsel %vm4805, %v4920, %v4919
    %v4922 = vrot.slane %v4776, 6
    %v4923 = vsel %vm4808, %v4922, %v4921
    %v4924 = vrot.slane %v4777, 5
    %v4925 = vsel %vm4811, %v4924, %v4923
    %v4926 = vrot.slane %v4778, 4
    %v4927 = vsel %vm4814, %v4926, %v4925
    %4928 = vrot.lane.b32.xlu0 %v4913, 96
    %v4929 = vpop.permute.xlu0 %4928
    %4930 = vrot.lane.b32.xlu0 %v4927, 96
    %v4931 = vpop.permute.xlu0 %4930
    %v4934 = vrot.slane %v4763, 4
    %v4935 = vrot.slane %v4764, 3
    %v4936 = vsel %vm4796, %v4935, %v4934
    %v4937 = vrot.slane %v4765, 2
    %v4938 = vsel %vm4799, %v4937, %v4936
    %v4939 = vrot.slane %v4766, 1
    %v4940 = vsel %vm4802, %v4939, %v4938
    %v4941 = vsel %vm4805, %v4767, %v4940
    %v4942 = vrot.slane %v4768, 7
    %v4943 = vsel %vm4808, %v4942, %v4941
    %v4944 = vrot.slane %v4769, 6
    %v4945 = vsel %vm4811, %v4944, %v4943
    %v4946 = vrot.slane %v4770, 5
    %v4947 = vsel %vm4814, %v4946, %v4945
    %v4948 = vrot.slane %v4771, 4
    %v4949 = vrot.slane %v4772, 3
    %v4950 = vsel %vm4796, %v4949, %v4948
    %v4951 = vrot.slane %v4773, 2
    %v4952 = vsel %vm4799, %v4951, %v4950
    %v4953 = vrot.slane %v4774, 1
    %v4954 = vsel %vm4802, %v4953, %v4952
    %v4955 = vsel %vm4805, %v4775, %v4954
    %v4956 = vrot.slane %v4776, 7
    %v4957 = vsel %vm4808, %v4956, %v4955
    %v4958 = vrot.slane %v4777, 6
    %v4959 = vsel %vm4811, %v4958, %v4957
    %v4960 = vrot.slane %v4778, 5
    %v4961 = vsel %vm4814, %v4960, %v4959
    %v4964 = vrot.slane %v4763, 5
    %v4965 = vrot.slane %v4764, 4
    %v4966 = vsel %vm4796, %v4965, %v4964
    %v4967 = vrot.slane %v4765, 3
    %v4968 = vsel %vm4799, %v4967, %v4966
    %v4969 = vrot.slane %v4766, 2
    %v4970 = vsel %vm4802, %v4969, %v4968
    %v4971 = vrot.slane %v4767, 1
    %v4972 = vsel %vm4805, %v4971, %v4970
    %v4973 = vsel %vm4808, %v4768, %v4972
    %v4974 = vrot.slane %v4769, 7
    %v4975 = vsel %vm4811, %v4974, %v4973
    %v4976 = vrot.slane %v4770, 6
    %v4977 = vsel %vm4814, %v4976, %v4975
    %v4978 = vrot.slane %v4771, 5
    %v4979 = vrot.slane %v4772, 4
    %v4980 = vsel %vm4796, %v4979, %v4978
    %v4981 = vrot.slane %v4773, 3
    %v4982 = vsel %vm4799, %v4981, %v4980
    %v4983 = vrot.slane %v4774, 2
    %v4984 = vsel %vm4802, %v4983, %v4982
    %v4985 = vrot.slane %v4775, 1
    %v4986 = vsel %vm4805, %v4985, %v4984
    %v4987 = vsel %vm4808, %v4776, %v4986
    %v4988 = vrot.slane %v4777, 7
    %v4989 = vsel %vm4811, %v4988, %v4987
    %v4990 = vrot.slane %v4778, 6
    %v4991 = vsel %vm4814, %v4990, %v4989
    %4992 = vrot.lane.b32.xlu0 %v4977, 32
    %v4993 = vpop.permute.xlu0 %4992
    %4994 = vrot.lane.b32.xlu0 %v4991, 32
    %v4995 = vpop.permute.xlu0 %4994
    %v4998 = vrot.slane %v4763, 6
    %v4999 = vrot.slane %v4764, 5
    %v5000 = vsel %vm4796, %v4999, %v4998
    %v5001 = vrot.slane %v4765, 4
    %v5002 = vsel %vm4799, %v5001, %v5000
    %v5003 = vrot.slane %v4766, 3
    %v5004 = vsel %vm4802, %v5003, %v5002
    %v5005 = vrot.slane %v4767, 2
    %v5006 = vsel %vm4805, %v5005, %v5004
    %v5007 = vrot.slane %v4768, 1
    %v5008 = vsel %vm4808, %v5007, %v5006
    %v5009 = vsel %vm4811, %v4769, %v5008
    %v5010 = vrot.slane %v4770, 7
    %v5011 = vsel %vm4814, %v5010, %v5009
    %v5012 = vrot.slane %v4771, 6
    %v5013 = vrot.slane %v4772, 5
    %v5014 = vsel %vm4796, %v5013, %v5012
    %v5015 = vrot.slane %v4773, 4
    %v5016 = vsel %vm4799, %v5015, %v5014
    %v5017 = vrot.slane %v4774, 3
    %v5018 = vsel %vm4802, %v5017, %v5016
    %v5019 = vrot.slane %v4775, 2
    %v5020 = vsel %vm4805, %v5019, %v5018
    %v5021 = vrot.slane %v4776, 1
    %v5022 = vsel %vm4808, %v5021, %v5020
    %v5023 = vsel %vm4811, %v4777, %v5022
    %v5024 = vrot.slane %v4778, 7
    %v5025 = vsel %vm4814, %v5024, %v5023
    %5026 = vrot.lane.b32.xlu0 %v5011, 64
    %v5027 = vpop.permute.xlu0 %5026
    %5028 = vrot.lane.b32.xlu0 %v5025, 64
    %v5029 = vpop.permute.xlu0 %5028
    %v5032 = vrot.slane %v4763, 7
    %v5033 = vrot.slane %v4764, 6
    %v5034 = vsel %vm4796, %v5033, %v5032
    %v5035 = vrot.slane %v4765, 5
    %v5036 = vsel %vm4799, %v5035, %v5034
    %v5037 = vrot.slane %v4766, 4
    %v5038 = vsel %vm4802, %v5037, %v5036
    %v5039 = vrot.slane %v4767, 3
    %v5040 = vsel %vm4805, %v5039, %v5038
    %v5041 = vrot.slane %v4768, 2
    %v5042 = vsel %vm4808, %v5041, %v5040
    %v5043 = vrot.slane %v4769, 1
    %v5044 = vsel %vm4811, %v5043, %v5042
    %v5045 = vsel %vm4814, %v4770, %v5044
    %v5046 = vrot.slane %v4771, 7
    %v5047 = vrot.slane %v4772, 6
    %v5048 = vsel %vm4796, %v5047, %v5046
    %v5049 = vrot.slane %v4773, 5
    %v5050 = vsel %vm4799, %v5049, %v5048
    %v5051 = vrot.slane %v4774, 4
    %v5052 = vsel %vm4802, %v5051, %v5050
    %v5053 = vrot.slane %v4775, 3
    %v5054 = vsel %vm4805, %v5053, %v5052
    %v5055 = vrot.slane %v4776, 2
    %v5056 = vsel %vm4808, %v5055, %v5054
    %v5057 = vrot.slane %v4777, 1
    %v5058 = vsel %vm4811, %v5057, %v5056
    %v5059 = vsel %vm4814, %v4778, %v5058
    %5060 = vrot.lane.b32.xlu0 %v5045, 96
    %v5061 = vpop.permute.xlu0 %5060
    %5062 = vrot.lane.b32.xlu0 %v5059, 96
    %v5063 = vpop.permute.xlu0 %5062
    %v5066 = vsel %vm734, %v4815, %v4861
    %v5067 = vsel %vm734, %v4829, %v4863
    %v5068 = vsel %vm2383, %v5066, %v4895
    %v5069 = vsel %vm2383, %v5067, %v4897
    %v5070 = vsel %vm4564, %v5068, %v4929
    %v5071 = vsel %vm4564, %v5069, %v4931
    %v5072 = vsel %vm734, %v4947, %v4993
    %v5073 = vsel %vm734, %v4961, %v4995
    %v5074 = vsel %vm2383, %v5072, %v5027
    %v5075 = vsel %vm2383, %v5073, %v5029
    %v5076 = vsel %vm4564, %v5074, %v5061
    %v5077 = vsel %vm4564, %v5075, %v5063
    %v5082 = vrot.slane %v5071, 7
    %v5083 = vsel %vm4796, %v5082, %v5070
    %v5084 = vrot.slane %v5077, 7
    %v5085 = vsel %vm4796, %v5084, %v5076
    %v5088 = vrot.slane %v5070, 1
    %v5089 = vsel %vm4796, %v5071, %v5088
    %v5090 = vrot.slane %v5076, 1
    %v5091 = vsel %vm4796, %v5077, %v5090
    %v5094 = vrot.slane %v5070, 2
    %v5095 = vrot.slane %v5071, 1
    %v5096 = vsel %vm4796, %v5095, %v5094
    %v5097 = vrot.slane %v5076, 2
    %v5098 = vrot.slane %v5077, 1
    %v5099 = vsel %vm4796, %v5098, %v5097
    %v5102 = vrot.slane %v5070, 3
    %v5103 = vrot.slane %v5071, 2
    %v5104 = vsel %vm4796, %v5103, %v5102
    %v5105 = vrot.slane %v5076, 3
    %v5106 = vrot.slane %v5077, 2
    %v5107 = vsel %vm4796, %v5106, %v5105
    %v5110 = vrot.slane %v5070, 4
    %v5111 = vrot.slane %v5071, 3
    %v5112 = vsel %vm4796, %v5111, %v5110
    %v5113 = vrot.slane %v5076, 4
    %v5114 = vrot.slane %v5077, 3
    %v5115 = vsel %vm4796, %v5114, %v5113
    %v5118 = vrot.slane %v5070, 5
    %v5119 = vrot.slane %v5071, 4
    %v5120 = vsel %vm4796, %v5119, %v5118
    %v5121 = vrot.slane %v5076, 5
    %v5122 = vrot.slane %v5077, 4
    %v5123 = vsel %vm4796, %v5122, %v5121
    %v5126 = vrot.slane %v5070, 6
    %v5127 = vrot.slane %v5071, 5
    %v5128 = vsel %vm4796, %v5127, %v5126
    %v5129 = vrot.slane %v5076, 6
    %v5130 = vrot.slane %v5077, 5
    %v5131 = vsel %vm4796, %v5130, %v5129
    %v5134 = vrot.slane %v5070, 7
    %v5135 = vrot.slane %v5071, 6
    %v5136 = vsel %vm4796, %v5135, %v5134
    %v5137 = vrot.slane %v5076, 7
    %v5138 = vrot.slane %v5077, 6
    %v5139 = vsel %vm4796, %v5138, %v5137
    %v5142 = vld [vmem:[%s5] sm:$0xff]
    %v5143 = vld [vmem:[%s5 + $0x8] sm:$0xff]
    %v5144 = vld [vmem:[%s5 + $0x10] sm:$0xff]
    %v5145 = vld [vmem:[%s5 + $0x18] sm:$0xff]
    %v5146 = vld [vmem:[%s5 + $0x20] sm:$0xff]
    %v5147 = vld [vmem:[%s5 + $0x28] sm:$0xff]
    %v5148 = vld [vmem:[%s5 + $0x30] sm:$0xff]
    %v5149 = vld [vmem:[%s5 + $0x38] sm:$0xff]
    %v5150 = vld [vmem:[%s5 + $0x40] sm:$0xff]
    %v5151 = vld [vmem:[%s5 + $0x48] sm:$0xff]
    %v5152 = vld [vmem:[%s5 + $0x50] sm:$0xff]
    %v5153 = vld [vmem:[%s5 + $0x58] sm:$0xff]
    %v5154 = vld [vmem:[%s5 + $0x60] sm:$0xff]
    %v5155 = vld [vmem:[%s5 + $0x68] sm:$0xff]
    %v5156 = vld [vmem:[%s5 + $0x70] sm:$0xff]
    %v5157 = vld [vmem:[%s5 + $0x78] sm:$0xff]
    %v5158 = vld [vmem:[%s5 + $0x80] sm:$0xff]
    %v5159 = vld [vmem:[%s5 + $0x88] sm:$0xff]
    %v5160 = vld [vmem:[%s5 + $0x90] sm:$0xff]
    %v5161 = vld [vmem:[%s5 + $0x98] sm:$0xff]
    %v5162 = vld [vmem:[%s5 + $0xa0] sm:$0xff]
    %v5163 = vld [vmem:[%s5 + $0xa8] sm:$0xff]
    %v5164 = vld [vmem:[%s5 + $0xb0] sm:$0xff]
    %v5165 = vld [vmem:[%s5 + $0xb8] sm:$0xff]
    %v5166 = vld [vmem:[%s5 + $0xc0] sm:$0xff]
    %v5167 = vld [vmem:[%s5 + $0xc8] sm:$0xff]
    %v5168 = vld [vmem:[%s5 + $0xd0] sm:$0xff]
    %v5169 = vld [vmem:[%s5 + $0xd8] sm:$0xff]
    %v5170 = vld [vmem:[%s5 + $0xe0] sm:$0xff]
    %v5171 = vld [vmem:[%s5 + $0xe8] sm:$0xff]
    %v5172 = vld [vmem:[%s5 + $0xf0] sm:$0xff]
    %v5173 = vld [vmem:[%s5 + $0xf8] sm:$0xff]
    %v5174 = vld [vmem:[%s5 + $0x100] sm:$0xff]
    %v5175 = vld [vmem:[%s5 + $0x108] sm:$0xff]
    %v5176 = vld [vmem:[%s5 + $0x110] sm:$0xff]
    %v5177 = vld [vmem:[%s5 + $0x118] sm:$0xff]
    %v5178 = vld [vmem:[%s5 + $0x120] sm:$0xff]
    %v5179 = vld [vmem:[%s5 + $0x128] sm:$0xff]
    %v5180 = vld [vmem:[%s5 + $0x130] sm:$0xff]
    %v5181 = vld [vmem:[%s5 + $0x138] sm:$0xff]
    %v5182 = vld [vmem:[%s5 + $0x140] sm:$0xff]
    %v5183 = vld [vmem:[%s5 + $0x148] sm:$0xff]
    %v5184 = vld [vmem:[%s5 + $0x150] sm:$0xff]
    %v5185 = vld [vmem:[%s5 + $0x158] sm:$0xff]
    %v5186 = vld [vmem:[%s5 + $0x160] sm:$0xff]
    %v5187 = vld [vmem:[%s5 + $0x168] sm:$0xff]
    %v5188 = vld [vmem:[%s5 + $0x170] sm:$0xff]
    %v5189 = vld [vmem:[%s5 + $0x178] sm:$0xff]
    %v5190 = vld [vmem:[%s5 + $0x180] sm:$0xff]
    %v5191 = vld [vmem:[%s5 + $0x188] sm:$0xff]
    %v5192 = vld [vmem:[%s5 + $0x190] sm:$0xff]
    %v5193 = vld [vmem:[%s5 + $0x198] sm:$0xff]
    %v5194 = vld [vmem:[%s5 + $0x1a0] sm:$0xff]
    %v5195 = vld [vmem:[%s5 + $0x1a8] sm:$0xff]
    %v5196 = vld [vmem:[%s5 + $0x1b0] sm:$0xff]
    %v5197 = vld [vmem:[%s5 + $0x1b8] sm:$0xff]
    %v5198 = vld [vmem:[%s5 + $0x1c0] sm:$0xff]
    %v5199 = vld [vmem:[%s5 + $0x1c8] sm:$0xff]
    %v5200 = vld [vmem:[%s5 + $0x1d0] sm:$0xff]
    %v5201 = vld [vmem:[%s5 + $0x1d8] sm:$0xff]
    %v5202 = vld [vmem:[%s5 + $0x1e0] sm:$0xff]
    %v5203 = vld [vmem:[%s5 + $0x1e8] sm:$0xff]
    %v5204 = vld [vmem:[%s5 + $0x1f0] sm:$0xff]
    %v5205 = vld [vmem:[%s5 + $0x1f8] sm:$0xff]
    %v5206 = vld [vmem:[%s5 + $0x200] sm:$0xff]
    %v5207 = vld [vmem:[%s5 + $0x208] sm:$0xff]
    %v5208 = vld [vmem:[%s5 + $0x210] sm:$0xff]
    %v5209 = vld [vmem:[%s5 + $0x218] sm:$0xff]
    %v5210 = vld [vmem:[%s5 + $0x220] sm:$0xff]
    %v5211 = vld [vmem:[%s5 + $0x228] sm:$0xff]
    %v5212 = vld [vmem:[%s5 + $0x230] sm:$0xff]
    %v5213 = vld [vmem:[%s5 + $0x238] sm:$0xff]
    %v5214 = vld [vmem:[%s5 + $0x240] sm:$0xff]
    %v5215 = vld [vmem:[%s5 + $0x248] sm:$0xff]
    %v5216 = vld [vmem:[%s5 + $0x250] sm:$0xff]
    %v5217 = vld [vmem:[%s5 + $0x258] sm:$0xff]
    %v5218 = vld [vmem:[%s5 + $0x260] sm:$0xff]
    %v5219 = vld [vmem:[%s5 + $0x268] sm:$0xff]
    %v5220 = vld [vmem:[%s5 + $0x270] sm:$0xff]
    %v5221 = vld [vmem:[%s5 + $0x278] sm:$0xff]
    %v5222 = vld [vmem:[%s5 + $0x280] sm:$0xff]
    %v5223 = vld [vmem:[%s5 + $0x288] sm:$0xff]
    %v5224 = vld [vmem:[%s5 + $0x290] sm:$0xff]
    %v5225 = vld [vmem:[%s5 + $0x298] sm:$0xff]
    %v5226 = vld [vmem:[%s5 + $0x2a0] sm:$0xff]
    %v5227 = vld [vmem:[%s5 + $0x2a8] sm:$0xff]
    %v5228 = vld [vmem:[%s5 + $0x2b0] sm:$0xff]
    %v5229 = vld [vmem:[%s5 + $0x2b8] sm:$0xff]
    %v5230 = vld [vmem:[%s5 + $0x2c0] sm:$0xff]
    %v5231 = vld [vmem:[%s5 + $0x2c8] sm:$0xff]
    %v5232 = vld [vmem:[%s5 + $0x2d0] sm:$0xff]
    %v5233 = vld [vmem:[%s5 + $0x2d8] sm:$0xff]
    %v5234 = vld [vmem:[%s5 + $0x2e0] sm:$0xff]
    %v5235 = vld [vmem:[%s5 + $0x2e8] sm:$0xff]
    %v5236 = vld [vmem:[%s5 + $0x2f0] sm:$0xff]
    %v5237 = vld [vmem:[%s5 + $0x2f8] sm:$0xff]
    %v5238 = vld [vmem:[%s5 + $0x300] sm:$0xff]
    %v5239 = vld [vmem:[%s5 + $0x308] sm:$0xff]
    %v5240 = vld [vmem:[%s5 + $0x310] sm:$0xff]
    %v5241 = vld [vmem:[%s5 + $0x318] sm:$0xff]
    %v5242 = vld [vmem:[%s5 + $0x320] sm:$0xff]
    %v5243 = vld [vmem:[%s5 + $0x328] sm:$0xff]
    %v5244 = vld [vmem:[%s5 + $0x330] sm:$0xff]
    %v5245 = vld [vmem:[%s5 + $0x338] sm:$0xff]
    %v5246 = vld [vmem:[%s5 + $0x340] sm:$0xff]
    %v5247 = vld [vmem:[%s5 + $0x348] sm:$0xff]
    %v5248 = vld [vmem:[%s5 + $0x350] sm:$0xff]
    %v5249 = vld [vmem:[%s5 + $0x358] sm:$0xff]
    %v5250 = vld [vmem:[%s5 + $0x360] sm:$0xff]
    %v5251 = vld [vmem:[%s5 + $0x368] sm:$0xff]
    %v5252 = vld [vmem:[%s5 + $0x370] sm:$0xff]
    %v5253 = vld [vmem:[%s5 + $0x378] sm:$0xff]
    %v5254 = vld [vmem:[%s5 + $0x380] sm:$0xff]
    %v5255 = vld [vmem:[%s5 + $0x388] sm:$0xff]
    %v5256 = vld [vmem:[%s5 + $0x390] sm:$0xff]
    %v5257 = vld [vmem:[%s5 + $0x398] sm:$0xff]
    %v5258 = vld [vmem:[%s5 + $0x3a0] sm:$0xff]
    %v5259 = vld [vmem:[%s5 + $0x3a8] sm:$0xff]
    %v5260 = vld [vmem:[%s5 + $0x3b0] sm:$0xff]
    %v5261 = vld [vmem:[%s5 + $0x3b8] sm:$0xff]
    %v5262 = vld [vmem:[%s5 + $0x3c0] sm:$0xff]
    %v5263 = vld [vmem:[%s5 + $0x3c8] sm:$0xff]
    %v5264 = vld [vmem:[%s5 + $0x3d0] sm:$0xff]
    %v5265 = vld [vmem:[%s5 + $0x3d8] sm:$0xff]
    %v5266 = vld [vmem:[%s5 + $0x3e0] sm:$0xff]
    %v5267 = vld [vmem:[%s5 + $0x3e8] sm:$0xff]
    %v5268 = vld [vmem:[%s5 + $0x3f0] sm:$0xff]
    %v5269 = vld [vmem:[%s5 + $0x3f8] sm:$0xff]
    %v5270 = vld [vmem:[%s5 + $0x400] sm:$0xff]
    %v5271 = vld [vmem:[%s5 + $0x408] sm:$0xff]
    %v5272 = vld [vmem:[%s5 + $0x410] sm:$0xff]
    %v5273 = vld [vmem:[%s5 + $0x418] sm:$0xff]
    %v5274 = vld [vmem:[%s5 + $0x420] sm:$0xff]
    %v5275 = vld [vmem:[%s5 + $0x428] sm:$0xff]
    %v5276 = vld [vmem:[%s5 + $0x430] sm:$0xff]
    %v5277 = vld [vmem:[%s5 + $0x438] sm:$0xff]
    %v5278 = vld [vmem:[%s5 + $0x440] sm:$0xff]
    %v5279 = vld [vmem:[%s5 + $0x448] sm:$0xff]
    %v5280 = vld [vmem:[%s5 + $0x450] sm:$0xff]
    %v5281 = vld [vmem:[%s5 + $0x458] sm:$0xff]
    %v5282 = vld [vmem:[%s5 + $0x460] sm:$0xff]
    %v5283 = vld [vmem:[%s5 + $0x468] sm:$0xff]
    %v5284 = vld [vmem:[%s5 + $0x470] sm:$0xff]
    %v5285 = vld [vmem:[%s5 + $0x478] sm:$0xff]
    %v5286 = vld [vmem:[%s5 + $0x480] sm:$0xff]
    %v5287 = vld [vmem:[%s5 + $0x488] sm:$0xff]
    %v5288 = vld [vmem:[%s5 + $0x490] sm:$0xff]
    %v5289 = vld [vmem:[%s5 + $0x498] sm:$0xff]
    %v5290 = vld [vmem:[%s5 + $0x4a0] sm:$0xff]
    %v5291 = vld [vmem:[%s5 + $0x4a8] sm:$0xff]
    %v5292 = vld [vmem:[%s5 + $0x4b0] sm:$0xff]
    %v5293 = vld [vmem:[%s5 + $0x4b8] sm:$0xff]
    %v5294 = vld [vmem:[%s5 + $0x4c0] sm:$0xff]
    %v5295 = vld [vmem:[%s5 + $0x4c8] sm:$0xff]
    %v5296 = vld [vmem:[%s5 + $0x4d0] sm:$0xff]
    %v5297 = vld [vmem:[%s5 + $0x4d8] sm:$0xff]
    %v5298 = vld [vmem:[%s5 + $0x4e0] sm:$0xff]
    %v5299 = vld [vmem:[%s5 + $0x4e8] sm:$0xff]
    %v5300 = vld [vmem:[%s5 + $0x4f0] sm:$0xff]
    %v5301 = vld [vmem:[%s5 + $0x4f8] sm:$0xff]
    %v5302 = vld [vmem:[%s5 + $0x500] sm:$0xff]
    %v5303 = vld [vmem:[%s5 + $0x508] sm:$0xff]
    %v5304 = vld [vmem:[%s5 + $0x510] sm:$0xff]
    %v5305 = vld [vmem:[%s5 + $0x518] sm:$0xff]
    %v5306 = vld [vmem:[%s5 + $0x520] sm:$0xff]
    %v5307 = vld [vmem:[%s5 + $0x528] sm:$0xff]
    %v5308 = vld [vmem:[%s5 + $0x530] sm:$0xff]
    %v5309 = vld [vmem:[%s5 + $0x538] sm:$0xff]
    %v5310 = vld [vmem:[%s5 + $0x540] sm:$0xff]
    %v5311 = vld [vmem:[%s5 + $0x548] sm:$0xff]
    %v5312 = vld [vmem:[%s5 + $0x550] sm:$0xff]
    %v5313 = vld [vmem:[%s5 + $0x558] sm:$0xff]
    %v5314 = vld [vmem:[%s5 + $0x560] sm:$0xff]
    %v5315 = vld [vmem:[%s5 + $0x568] sm:$0xff]
    %v5316 = vld [vmem:[%s5 + $0x570] sm:$0xff]
    %v5317 = vld [vmem:[%s5 + $0x578] sm:$0xff]
    %v5318 = vld [vmem:[%s5 + $0x580] sm:$0xff]
    %v5319 = vld [vmem:[%s5 + $0x588] sm:$0xff]
    %v5320 = vld [vmem:[%s5 + $0x590] sm:$0xff]
    %v5321 = vld [vmem:[%s5 + $0x598] sm:$0xff]
    %v5322 = vld [vmem:[%s5 + $0x5a0] sm:$0xff]
    %v5323 = vld [vmem:[%s5 + $0x5a8] sm:$0xff]
    %v5324 = vld [vmem:[%s5 + $0x5b0] sm:$0xff]
    %v5325 = vld [vmem:[%s5 + $0x5b8] sm:$0xff]
    %v5326 = vld [vmem:[%s5 + $0x5c0] sm:$0xff]
    %v5327 = vld [vmem:[%s5 + $0x5c8] sm:$0xff]
    %v5328 = vld [vmem:[%s5 + $0x5d0] sm:$0xff]
    %v5329 = vld [vmem:[%s5 + $0x5d8] sm:$0xff]
    %v5330 = vld [vmem:[%s5 + $0x5e0] sm:$0xff]
    %v5331 = vld [vmem:[%s5 + $0x5e8] sm:$0xff]
    %v5332 = vld [vmem:[%s5 + $0x5f0] sm:$0xff]
    %v5333 = vld [vmem:[%s5 + $0x5f8] sm:$0xff]
    %v5334 = vld [vmem:[%s5 + $0x600] sm:$0xff]
    %v5335 = vld [vmem:[%s5 + $0x608] sm:$0xff]
    %v5336 = vld [vmem:[%s5 + $0x610] sm:$0xff]
    %v5337 = vld [vmem:[%s5 + $0x618] sm:$0xff]
    %v5338 = vld [vmem:[%s5 + $0x620] sm:$0xff]
    %v5339 = vld [vmem:[%s5 + $0x628] sm:$0xff]
    %v5340 = vld [vmem:[%s5 + $0x630] sm:$0xff]
    %v5341 = vld [vmem:[%s5 + $0x638] sm:$0xff]
    %v5342 = vld [vmem:[%s5 + $0x640] sm:$0xff]
    %v5343 = vld [vmem:[%s5 + $0x648] sm:$0xff]
    %v5344 = vld [vmem:[%s5 + $0x650] sm:$0xff]
    %v5345 = vld [vmem:[%s5 + $0x658] sm:$0xff]
    %v5346 = vld [vmem:[%s5 + $0x660] sm:$0xff]
    %v5347 = vld [vmem:[%s5 + $0x668] sm:$0xff]
    %v5348 = vld [vmem:[%s5 + $0x670] sm:$0xff]
    %v5349 = vld [vmem:[%s5 + $0x678] sm:$0xff]
    %v5350 = vld [vmem:[%s5 + $0x680] sm:$0xff]
    %v5351 = vld [vmem:[%s5 + $0x688] sm:$0xff]
    %v5352 = vld [vmem:[%s5 + $0x690] sm:$0xff]
    %v5353 = vld [vmem:[%s5 + $0x698] sm:$0xff]
    %v5354 = vld [vmem:[%s5 + $0x6a0] sm:$0xff]
    %v5355 = vld [vmem:[%s5 + $0x6a8] sm:$0xff]
    %v5356 = vld [vmem:[%s5 + $0x6b0] sm:$0xff]
    %v5357 = vld [vmem:[%s5 + $0x6b8] sm:$0xff]
    %v5358 = vld [vmem:[%s5 + $0x6c0] sm:$0xff]
    %v5359 = vld [vmem:[%s5 + $0x6c8] sm:$0xff]
    %v5360 = vld [vmem:[%s5 + $0x6d0] sm:$0xff]
    %v5361 = vld [vmem:[%s5 + $0x6d8] sm:$0xff]
    %v5362 = vld [vmem:[%s5 + $0x6e0] sm:$0xff]
    %v5363 = vld [vmem:[%s5 + $0x6e8] sm:$0xff]
    %v5364 = vld [vmem:[%s5 + $0x6f0] sm:$0xff]
    %v5365 = vld [vmem:[%s5 + $0x6f8] sm:$0xff]
    %v5366 = vld [vmem:[%s5 + $0x700] sm:$0xff]
    %v5367 = vld [vmem:[%s5 + $0x708] sm:$0xff]
    %v5368 = vld [vmem:[%s5 + $0x710] sm:$0xff]
    %v5369 = vld [vmem:[%s5 + $0x718] sm:$0xff]
    %v5370 = vld [vmem:[%s5 + $0x720] sm:$0xff]
    %v5371 = vld [vmem:[%s5 + $0x728] sm:$0xff]
    %v5372 = vld [vmem:[%s5 + $0x730] sm:$0xff]
    %v5373 = vld [vmem:[%s5 + $0x738] sm:$0xff]
    %v5374 = vld [vmem:[%s5 + $0x740] sm:$0xff]
    %v5375 = vld [vmem:[%s5 + $0x748] sm:$0xff]
    %v5376 = vld [vmem:[%s5 + $0x750] sm:$0xff]
    %v5377 = vld [vmem:[%s5 + $0x758] sm:$0xff]
    %v5378 = vld [vmem:[%s5 + $0x760] sm:$0xff]
    %v5379 = vld [vmem:[%s5 + $0x768] sm:$0xff]
    %v5380 = vld [vmem:[%s5 + $0x770] sm:$0xff]
    %v5381 = vld [vmem:[%s5 + $0x778] sm:$0xff]
    %v5382 = vld [vmem:[%s5 + $0x780] sm:$0xff]
    %v5383 = vld [vmem:[%s5 + $0x788] sm:$0xff]
    %v5384 = vld [vmem:[%s5 + $0x790] sm:$0xff]
    %v5385 = vld [vmem:[%s5 + $0x798] sm:$0xff]
    %v5386 = vld [vmem:[%s5 + $0x7a0] sm:$0xff]
    %v5387 = vld [vmem:[%s5 + $0x7a8] sm:$0xff]
    %v5388 = vld [vmem:[%s5 + $0x7b0] sm:$0xff]
    %v5389 = vld [vmem:[%s5 + $0x7b8] sm:$0xff]
    %v5390 = vld [vmem:[%s5 + $0x7c0] sm:$0xff]
    %v5391 = vld [vmem:[%s5 + $0x7c8] sm:$0xff]
    %v5392 = vld [vmem:[%s5 + $0x7d0] sm:$0xff]
    %v5393 = vld [vmem:[%s5 + $0x7d8] sm:$0xff]
    %v5394 = vld [vmem:[%s5 + $0x7e0] sm:$0xff]
    %v5395 = vld [vmem:[%s5 + $0x7e8] sm:$0xff]
    %v5396 = vld [vmem:[%s5 + $0x7f0] sm:$0xff]
    %v5397 = vld [vmem:[%s5 + $0x7f8] sm:$0xff]
    %v5398 = vld [vmem:[%s6] sm:$0x1]
    %v5400 = vlaneseq
    %v5401 = vshrl.u32 %v5400, 7
    %v5402 = vsub.s32 0, %v5401
    %v5403 = vrot.slane %v5398, %v5402
    %5405 = vmatprep.subr.mxu0 0.0
    %5406 = vmatpush1.msra.mxu0 %v5142
    %5407 = vmatprep.subr.mxu0 0.0
    %5408 = vmatpush1.msra.mxu0 %v5143
    %5409 = vmatprep.subr.mxu0 0.0
    %5410 = vmatpush1.msra.mxu0 %v5144
    %5411 = vmatprep.subr.mxu0 0.0
    %5412 = vmatpush1.msra.mxu0 %v5145
    %5413 = vmatprep.subr.mxu0 0.0
    %5414 = vmatpush1.msra.mxu0 %v5146
    %5415 = vmatprep.subr.mxu0 0.0
    %5416 = vmatpush1.msra.mxu0 %v5147
    %5417 = vmatprep.subr.mxu0 0.0
    %5418 = vmatpush1.msra.mxu0 %v5148
    %5419 = vmatprep.subr.mxu0 0.0
    %5420 = vmatpush1.msra.mxu0 %v5149
    %5421 = vmatprep.subr.mxu0 0.0
    %5422 = vmatpush1.msra.mxu0 %v5150
    %5423 = vmatprep.subr.mxu0 0.0
    %5424 = vmatpush1.msra.mxu0 %v5151
    %5425 = vmatprep.subr.mxu0 0.0
    %5426 = vmatpush1.msra.mxu0 %v5152
    %5427 = vmatprep.subr.mxu0 0.0
    %5428 = vmatpush1.msra.mxu0 %v5153
    %5429 = vmatprep.subr.mxu0 0.0
    %5430 = vmatpush1.msra.mxu0 %v5154
    %5431 = vmatprep.subr.mxu0 0.0
    %5432 = vmatpush1.msra.mxu0 %v5155
    %5433 = vmatprep.subr.mxu0 0.0
    %5434 = vmatpush1.msra.mxu0 %v5156
    %5435 = vmatprep.subr.mxu0 0.0
    %5436 = vmatpush1.msra.mxu0 %v5157
    %5437 = vmatprep.subr.mxu0 0.0
    %5438 = vmatpush1.msra.mxu0 %v5158
    %5439 = vmatprep.subr.mxu0 0.0
    %5440 = vmatpush1.msra.mxu0 %v5159
    %5441 = vmatprep.subr.mxu0 0.0
    %5442 = vmatpush1.msra.mxu0 %v5160
    %5443 = vmatprep.subr.mxu0 0.0
    %5444 = vmatpush1.msra.mxu0 %v5161
    %5445 = vmatprep.subr.mxu0 0.0
    %5446 = vmatpush1.msra.mxu0 %v5162
    %5447 = vmatprep.subr.mxu0 0.0
    %5448 = vmatpush1.msra.mxu0 %v5163
    %5449 = vmatprep.subr.mxu0 0.0
    %5450 = vmatpush1.msra.mxu0 %v5164
    %5451 = vmatprep.subr.mxu0 0.0
    %5452 = vmatpush1.msra.mxu0 %v5165
    %5453 = vmatprep.subr.mxu0 0.0
    %5454 = vmatpush1.msra.mxu0 %v5166
    %5455 = vmatprep.subr.mxu0 0.0
    %5456 = vmatpush1.msra.mxu0 %v5167
    %5457 = vmatprep.subr.mxu0 0.0
    %5458 = vmatpush1.msra.mxu0 %v5168
    %5459 = vmatprep.subr.mxu0 0.0
    %5460 = vmatpush1.msra.mxu0 %v5169
    %5461 = vmatprep.subr.mxu0 0.0
    %5462 = vmatpush1.msra.mxu0 %v5170
    %5463 = vmatprep.subr.mxu0 0.0
    %5464 = vmatpush1.msra.mxu0 %v5171
    %5465 = vmatprep.subr.mxu0 0.0
    %5466 = vmatpush1.msra.mxu0 %v5172
    %5467 = vmatprep.subr.mxu0 0.0
    %5468 = vmatpush1.msra.mxu0 %v5173
    %5469 = vmatprep.mubr.f32.mxu0 %v5085
    %5470 = vmatmul.mubr.f32.gmra.mrb[0].mxu0 %v5083
    %v5471 = vpop.f32.mrb[0].mxu0
    %v5472 = vadd.f32 %v5403, %v5471
    %v5473 = vpop.f32.mrb[0].mxu0
    %5474 = vdwg.mxu0
    %5475 = vmatprep.subr.mxu0 0.0
    %5476 = vmatpush1.msra.mxu0 %v5174
    %5477 = vmatprep.subr.mxu0 0.0
    %5478 = vmatpush1.msra.mxu0 %v5175
    %5479 = vmatprep.subr.mxu0 0.0
    %5480 = vmatpush1.msra.mxu0 %v5176
    %5481 = vmatprep.subr.mxu0 0.0
    %5482 = vmatpush1.msra.mxu0 %v5177
    %5483 = vmatprep.subr.mxu0 0.0
    %5484 = vmatpush1.msra.mxu0 %v5178
    %5485 = vmatprep.subr.mxu0 0.0
    %5486 = vmatpush1.msra.mxu0 %v5179
    %5487 = vmatprep.subr.mxu0 0.0
    %5488 = vmatpush1.msra.mxu0 %v5180
    %5489 = vmatprep.subr.mxu0 0.0
    %5490 = vmatpush1.msra.mxu0 %v5181
    %5491 = vmatprep.subr.mxu0 0.0
    %5492 = vmatpush1.msra.mxu0 %v5182
    %5493 = vmatprep.subr.mxu0 0.0
    %5494 = vmatpush1.msra.mxu0 %v5183
    %5495 = vmatprep.subr.mxu0 0.0
    %5496 = vmatpush1.msra.mxu0 %v5184
    %5497 = vmatprep.subr.mxu0 0.0
    %5498 = vmatpush1.msra.mxu0 %v5185
    %5499 = vmatprep.subr.mxu0 0.0
    %5500 = vmatpush1.msra.mxu0 %v5186
    %5501 = vmatprep.subr.mxu0 0.0
    %5502 = vmatpush1.msra.mxu0 %v5187
    %5503 = vmatprep.subr.mxu0 0.0
    %5504 = vmatpush1.msra.mxu0 %v5188
    %5505 = vmatprep.subr.mxu0 0.0
    %5506 = vmatpush1.msra.mxu0 %v5189
    %5507 = vmatprep.subr.mxu0 0.0
    %5508 = vmatpush1.msra.mxu0 %v5190
    %5509 = vmatprep.subr.mxu0 0.0
    %5510 = vmatpush1.msra.mxu0 %v5191
    %5511 = vmatprep.subr.mxu0 0.0
    %5512 = vmatpush1.msra.mxu0 %v5192
    %5513 = vmatprep.subr.mxu0 0.0
    %5514 = vmatpush1.msra.mxu0 %v5193
    %5515 = vmatprep.subr.mxu0 0.0
    %5516 = vmatpush1.msra.mxu0 %v5194
    %5517 = vmatprep.subr.mxu0 0.0
    %5518 = vmatpush1.msra.mxu0 %v5195
    %5519 = vmatprep.subr.mxu0 0.0
    %5520 = vmatpush1.msra.mxu0 %v5196
    %5521 = vmatprep.subr.mxu0 0.0
    %5522 = vmatpush1.msra.mxu0 %v5197
    %5523 = vmatprep.subr.mxu0 0.0
    %5524 = vmatpush1.msra.mxu0 %v5198
    %5525 = vmatprep.subr.mxu0 0.0
    %5526 = vmatpush1.msra.mxu0 %v5199
    %5527 = vmatprep.subr.mxu0 0.0
    %5528 = vmatpush1.msra.mxu0 %v5200
    %5529 = vmatprep.subr.mxu0 0.0
    %5530 = vmatpush1.msra.mxu0 %v5201
    %5531 = vmatprep.subr.mxu0 0.0
    %5532 = vmatpush1.msra.mxu0 %v5202
    %5533 = vmatprep.subr.mxu0 0.0
    %5534 = vmatpush1.msra.mxu0 %v5203
    %5535 = vmatprep.subr.mxu0 0.0
    %5536 = vmatpush1.msra.mxu0 %v5204
    %5537 = vmatprep.subr.mxu0 0.0
    %5538 = vmatpush1.msra.mxu0 %v5205
    %5539 = vmatprep.mubr.f32.mxu0 %v5091
    %5540 = vmatmul.mubr.f32.gmra.mrb[0].mxu0 %v5089
    %v5541 = vpop.f32.mrb[0].mxu0
    %v5542 = vadd.f32 %v5472, %v5541
    %v5543 = vpop.f32.mrb[0].mxu0
    %5544 = vdwg.mxu0
    %5545 = vmatprep.subr.mxu0 0.0
    %5546 = vmatpush1.msra.mxu0 %v5206
    %5547 = vmatprep.subr.mxu0 0.0
    %5548 = vmatpush1.msra.mxu0 %v5207
    %5549 = vmatprep.subr.mxu0 0.0
    %5550 = vmatpush1.msra.mxu0 %v5208
    %5551 = vmatprep.subr.mxu0 0.0
    %5552 = vmatpush1.msra.mxu0 %v5209
    %5553 = vmatprep.subr.mxu0 0.0
    %5554 = vmatpush1.msra.mxu0 %v5210
    %5555 = vmatprep.subr.mxu0 0.0
    %5556 = vmatpush1.msra.mxu0 %v5211
    %5557 = vmatprep.subr.mxu0 0.0
    %5558 = vmatpush1.msra.mxu0 %v5212
    %5559 = vmatprep.subr.mxu0 0.0
    %5560 = vmatpush1.msra.mxu0 %v5213
    %5561 = vmatprep.subr.mxu0 0.0
    %5562 = vmatpush1.msra.mxu0 %v5214
    %5563 = vmatprep.subr.mxu0 0.0
    %5564 = vmatpush1.msra.mxu0 %v5215
    %5565 = vmatprep.subr.mxu0 0.0
    %5566 = vmatpush1.msra.mxu0 %v5216
    %5567 = vmatprep.subr.mxu0 0.0
    %5568 = vmatpush1.msra.mxu0 %v5217
    %5569 = vmatprep.subr.mxu0 0.0
    %5570 = vmatpush1.msra.mxu0 %v5218
    %5571 = vmatprep.subr.mxu0 0.0
    %5572 = vmatpush1.msra.mxu0 %v5219
    %5573 = vmatprep.subr.mxu0 0.0
    %5574 = vmatpush1.msra.mxu0 %v5220
    %5575 = vmatprep.subr.mxu0 0.0
    %5576 = vmatpush1.msra.mxu0 %v5221
    %5577 = vmatprep.subr.mxu0 0.0
    %5578 = vmatpush1.msra.mxu0 %v5222
    %5579 = vmatprep.subr.mxu0 0.0
    %5580 = vmatpush1.msra.mxu0 %v5223
    %5581 = vmatprep.subr.mxu0 0.0
    %5582 = vmatpush1.msra.mxu0 %v5224
    %5583 = vmatprep.subr.mxu0 0.0
    %5584 = vmatpush1.msra.mxu0 %v5225
    %5585 = vmatprep.subr.mxu0 0.0
    %5586 = vmatpush1.msra.mxu0 %v5226
    %5587 = vmatprep.subr.mxu0 0.0
    %5588 = vmatpush1.msra.mxu0 %v5227
    %5589 = vmatprep.subr.mxu0 0.0
    %5590 = vmatpush1.msra.mxu0 %v5228
    %5591 = vmatprep.subr.mxu0 0.0
    %5592 = vmatpush1.msra.mxu0 %v5229
    %5593 = vmatprep.subr.mxu0 0.0
    %5594 = vmatpush1.msra.mxu0 %v5230
    %5595 = vmatprep.subr.mxu0 0.0
    %5596 = vmatpush1.msra.mxu0 %v5231
    %5597 = vmatprep.subr.mxu0 0.0
    %5598 = vmatpush1.msra.mxu0 %v5232
    %5599 = vmatprep.subr.mxu0 0.0
    %5600 = vmatpush1.msra.mxu0 %v5233
    %5601 = vmatprep.subr.mxu0 0.0
    %5602 = vmatpush1.msra.mxu0 %v5234
    %5603 = vmatprep.subr.mxu0 0.0
    %5604 = vmatpush1.msra.mxu0 %v5235
    %5605 = vmatprep.subr.mxu0 0.0
    %5606 = vmatpush1.msra.mxu0 %v5236
    %5607 = vmatprep.subr.mxu0 0.0
    %5608 = vmatpush1.msra.mxu0 %v5237
    %5609 = vmatprep.mubr.f32.mxu0 %v5099
    %5610 = vmatmul.mubr.f32.gmra.mrb[0].mxu0 %v5096
    %v5611 = vpop.f32.mrb[0].mxu0
    %v5612 = vadd.f32 %v5542, %v5611
    %v5613 = vpop.f32.mrb[0].mxu0
    %5614 = vdwg.mxu0
    %5615 = vmatprep.subr.mxu0 0.0
    %5616 = vmatpush1.msra.mxu0 %v5238
    %5617 = vmatprep.subr.mxu0 0.0
    %5618 = vmatpush1.msra.mxu0 %v5239
    %5619 = vmatprep.subr.mxu0 0.0
    %5620 = vmatpush1.msra.mxu0 %v5240
    %5621 = vmatprep.subr.mxu0 0.0
    %5622 = vmatpush1.msra.mxu0 %v5241
    %5623 = vmatprep.subr.mxu0 0.0
    %5624 = vmatpush1.msra.mxu0 %v5242
    %5625 = vmatprep.subr.mxu0 0.0
    %5626 = vmatpush1.msra.mxu0 %v5243
    %5627 = vmatprep.subr.mxu0 0.0
    %5628 = vmatpush1.msra.mxu0 %v5244
    %5629 = vmatprep.subr.mxu0 0.0
    %5630 = vmatpush1.msra.mxu0 %v5245
    %5631 = vmatprep.subr.mxu0 0.0
    %5632 = vmatpush1.msra.mxu0 %v5246
    %5633 = vmatprep.subr.mxu0 0.0
    %5634 = vmatpush1.msra.mxu0 %v5247
    %5635 = vmatprep.subr.mxu0 0.0
    %5636 = vmatpush1.msra.mxu0 %v5248
    %5637 = vmatprep.subr.mxu0 0.0
    %5638 = vmatpush1.msra.mxu0 %v5249
    %5639 = vmatprep.subr.mxu0 0.0
    %5640 = vmatpush1.msra.mxu0 %v5250
    %5641 = vmatprep.subr.mxu0 0.0
    %5642 = vmatpush1.msra.mxu0 %v5251
    %5643 = vmatprep.subr.mxu0 0.0
    %5644 = vmatpush1.msra.mxu0 %v5252
    %5645 = vmatprep.subr.mxu0 0.0
    %5646 = vmatpush1.msra.mxu0 %v5253
    %5647 = vmatprep.subr.mxu0 0.0
    %5648 = vmatpush1.msra.mxu0 %v5254
    %5649 = vmatprep.subr.mxu0 0.0
    %5650 = vmatpush1.msra.mxu0 %v5255
    %5651 = vmatprep.subr.mxu0 0.0
    %5652 = vmatpush1.msra.mxu0 %v5256
    %5653 = vmatprep.subr.mxu0 0.0
    %5654 = vmatpush1.msra.mxu0 %v5257
    %5655 = vmatprep.subr.mxu0 0.0
    %5656 = vmatpush1.msra.mxu0 %v5258
    %5657 = vmatprep.subr.mxu0 0.0
    %5658 = vmatpush1.msra.mxu0 %v5259
    %5659 = vmatprep.subr.mxu0 0.0
    %5660 = vmatpush1.msra.mxu0 %v5260
    %5661 = vmatprep.subr.mxu0 0.0
    %5662 = vmatpush1.msra.mxu0 %v5261
    %5663 = vmatprep.subr.mxu0 0.0
    %5664 = vmatpush1.msra.mxu0 %v5262
    %5665 = vmatprep.subr.mxu0 0.0
    %5666 = vmatpush1.msra.mxu0 %v5263
    %5667 = vmatprep.subr.mxu0 0.0
    %5668 = vmatpush1.msra.mxu0 %v5264
    %5669 = vmatprep.subr.mxu0 0.0
    %5670 = vmatpush1.msra.mxu0 %v5265
    %5671 = vmatprep.subr.mxu0 0.0
    %5672 = vmatpush1.msra.mxu0 %v5266
    %5673 = vmatprep.subr.mxu0 0.0
    %5674 = vmatpush1.msra.mxu0 %v5267
    %5675 = vmatprep.subr.mxu0 0.0
    %5676 = vmatpush1.msra.mxu0 %v5268
    %5677 = vmatprep.subr.mxu0 0.0
    %5678 = vmatpush1.msra.mxu0 %v5269
    %5679 = vmatprep.mubr.f32.mxu0 %v5107
    %5680 = vmatmul.mubr.f32.gmra.mrb[0].mxu0 %v5104
    %v5681 = vpop.f32.mrb[0].mxu0
    %v5682 = vadd.f32 %v5612, %v5681
    %v5683 = vpop.f32.mrb[0].mxu0
    %5684 = vdwg.mxu0
    %5685 = vmatprep.subr.mxu0 0.0
    %5686 = vmatpush1.msra.mxu0 %v5270
    %5687 = vmatprep.subr.mxu0 0.0
    %5688 = vmatpush1.msra.mxu0 %v5271
    %5689 = vmatprep.subr.mxu0 0.0
    %5690 = vmatpush1.msra.mxu0 %v5272
    %5691 = vmatprep.subr.mxu0 0.0
    %5692 = vmatpush1.msra.mxu0 %v5273
    %5693 = vmatprep.subr.mxu0 0.0
    %5694 = vmatpush1.msra.mxu0 %v5274
    %5695 = vmatprep.subr.mxu0 0.0
    %5696 = vmatpush1.msra.mxu0 %v5275
    %5697 = vmatprep.subr.mxu0 0.0
    %5698 = vmatpush1.msra.mxu0 %v5276
    %5699 = vmatprep.subr.mxu0 0.0
    %5700 = vmatpush1.msra.mxu0 %v5277
    %5701 = vmatprep.subr.mxu0 0.0
    %5702 = vmatpush1.msra.mxu0 %v5278
    %5703 = vmatprep.subr.mxu0 0.0
    %5704 = vmatpush1.msra.mxu0 %v5279
    %5705 = vmatprep.subr.mxu0 0.0
    %5706 = vmatpush1.msra.mxu0 %v5280
    %5707 = vmatprep.subr.mxu0 0.0
    %5708 = vmatpush1.msra.mxu0 %v5281
    %5709 = vmatprep.subr.mxu0 0.0
    %5710 = vmatpush1.msra.mxu0 %v5282
    %5711 = vmatprep.subr.mxu0 0.0
    %5712 = vmatpush1.msra.mxu0 %v5283
    %5713 = vmatprep.subr.mxu0 0.0
    %5714 = vmatpush1.msra.mxu0 %v5284
    %5715 = vmatprep.subr.mxu0 0.0
    %5716 = vmatpush1.msra.mxu0 %v5285
    %5717 = vmatprep.subr.mxu0 0.0
    %5718 = vmatpush1.msra.mxu0 %v5286
    %5719 = vmatprep.subr.mxu0 0.0
    %5720 = vmatpush1.msra.mxu0 %v5287
    %5721 = vmatprep.subr.mxu0 0.0
    %5722 = vmatpush1.msra.mxu0 %v5288
    %5723 = vmatprep.subr.mxu0 0.0
    %5724 = vmatpush1.msra.mxu0 %v5289
    %5725 = vmatprep.subr.mxu0 0.0
    %5726 = vmatpush1.msra.mxu0 %v5290
    %5727 = vmatprep.subr.mxu0 0.0
    %5728 = vmatpush1.msra.mxu0 %v5291
    %5729 = vmatprep.subr.mxu0 0.0
    %5730 = vmatpush1.msra.mxu0 %v5292
    %5731 = vmatprep.subr.mxu0 0.0
    %5732 = vmatpush1.msra.mxu0 %v5293
    %5733 = vmatprep.subr.mxu0 0.0
    %5734 = vmatpush1.msra.mxu0 %v5294
    %5735 = vmatprep.subr.mxu0 0.0
    %5736 = vmatpush1.msra.mxu0 %v5295
    %5737 = vmatprep.subr.mxu0 0.0
    %5738 = vmatpush1.msra.mxu0 %v5296
    %5739 = vmatprep.subr.mxu0 0.0
    %5740 = vmatpush1.msra.mxu0 %v5297
    %5741 = vmatprep.subr.mxu0 0.0
    %5742 = vmatpush1.msra.mxu0 %v5298
    %5743 = vmatprep.subr.mxu0 0.0
    %5744 = vmatpush1.msra.mxu0 %v5299
    %5745 = vmatprep.subr.mxu0 0.0
    %5746 = vmatpush1.msra.mxu0 %v5300
    %5747 = vmatprep.subr.mxu0 0.0
    %5748 = vmatpush1.msra.mxu0 %v5301
    %5749 = vmatprep.mubr.f32.mxu0 %v5115
    %5750 = vmatmul.mubr.f32.gmra.mrb[0].mxu0 %v5112
    %v5751 = vpop.f32.mrb[0].mxu0
    %v5752 = vadd.f32 %v5682, %v5751
    %v5753 = vpop.f32.mrb[0].mxu0
    %5754 = vdwg.mxu0
    %5755 = vmatprep.subr.mxu0 0.0
    %5756 = vmatpush1.msra.mxu0 %v5302
    %5757 = vmatprep.subr.mxu0 0.0
    %5758 = vmatpush1.msra.mxu0 %v5303
    %5759 = vmatprep.subr.mxu0 0.0
    %5760 = vmatpush1.msra.mxu0 %v5304
    %5761 = vmatprep.subr.mxu0 0.0
    %5762 = vmatpush1.msra.mxu0 %v5305
    %5763 = vmatprep.subr.mxu0 0.0
    %5764 = vmatpush1.msra.mxu0 %v5306
    %5765 = vmatprep.subr.mxu0 0.0
    %5766 = vmatpush1.msra.mxu0 %v5307
    %5767 = vmatprep.subr.mxu0 0.0
    %5768 = vmatpush1.msra.mxu0 %v5308
    %5769 = vmatprep.subr.mxu0 0.0
    %5770 = vmatpush1.msra.mxu0 %v5309
    %5771 = vmatprep.subr.mxu0 0.0
    %5772 = vmatpush1.msra.mxu0 %v5310
    %5773 = vmatprep.subr.mxu0 0.0
    %5774 = vmatpush1.msra.mxu0 %v5311
    %5775 = vmatprep.subr.mxu0 0.0
    %5776 = vmatpush1.msra.mxu0 %v5312
    %5777 = vmatprep.subr.mxu0 0.0
    %5778 = vmatpush1.msra.mxu0 %v5313
    %5779 = vmatprep.subr.mxu0 0.0
    %5780 = vmatpush1.msra.mxu0 %v5314
    %5781 = vmatprep.subr.mxu0 0.0
    %5782 = vmatpush1.msra.mxu0 %v5315
    %5783 = vmatprep.subr.mxu0 0.0
    %5784 = vmatpush1.msra.mxu0 %v5316
    %5785 = vmatprep.subr.mxu0 0.0
    %5786 = vmatpush1.msra.mxu0 %v5317
    %5787 = vmatprep.subr.mxu0 0.0
    %5788 = vmatpush1.msra.mxu0 %v5318
    %5789 = vmatprep.subr.mxu0 0.0
    %5790 = vmatpush1.msra.mxu0 %v5319
    %5791 = vmatprep.subr.mxu0 0.0
    %5792 = vmatpush1.msra.mxu0 %v5320
    %5793 = vmatprep.subr.mxu0 0.0
    %5794 = vmatpush1.msra.mxu0 %v5321
    %5795 = vmatprep.subr.mxu0 0.0
    %5796 = vmatpush1.msra.mxu0 %v5322
    %5797 = vmatprep.subr.mxu0 0.0
    %5798 = vmatpush1.msra.mxu0 %v5323
    %5799 = vmatprep.subr.mxu0 0.0
    %5800 = vmatpush1.msra.mxu0 %v5324
    %5801 = vmatprep.subr.mxu0 0.0
    %5802 = vmatpush1.msra.mxu0 %v5325
    %5803 = vmatprep.subr.mxu0 0.0
    %5804 = vmatpush1.msra.mxu0 %v5326
    %5805 = vmatprep.subr.mxu0 0.0
    %5806 = vmatpush1.msra.mxu0 %v5327
    %5807 = vmatprep.subr.mxu0 0.0
    %5808 = vmatpush1.msra.mxu0 %v5328
    %5809 = vmatprep.subr.mxu0 0.0
    %5810 = vmatpush1.msra.mxu0 %v5329
    %5811 = vmatprep.subr.mxu0 0.0
    %5812 = vmatpush1.msra.mxu0 %v5330
    %5813 = vmatprep.subr.mxu0 0.0
    %5814 = vmatpush1.msra.mxu0 %v5331
    %5815 = vmatprep.subr.mxu0 0.0
    %5816 = vmatpush1.msra.mxu0 %v5332
    %5817 = vmatprep.subr.mxu0 0.0
    %5818 = vmatpush1.msra.mxu0 %v5333
    %5819 = vmatprep.mubr.f32.mxu0 %v5123
    %5820 = vmatmul.mubr.f32.gmra.mrb[0].mxu0 %v5120
    %v5821 = vpop.f32.mrb[0].mxu0
    %v5822 = vadd.f32 %v5752, %v5821
    %v5823 = vpop.f32.mrb[0].mxu0
    %5824 = vdwg.mxu0
    %5825 = vmatprep.subr.mxu0 0.0
    %5826 = vmatpush1.msra.mxu0 %v5334
    %5827 = vmatprep.subr.mxu0 0.0
    %5828 = vmatpush1.msra.mxu0 %v5335
    %5829 = vmatprep.subr.mxu0 0.0
    %5830 = vmatpush1.msra.mxu0 %v5336
    %5831 = vmatprep.subr.mxu0 0.0
    %5832 = vmatpush1.msra.mxu0 %v5337
    %5833 = vmatprep.subr.mxu0 0.0
    %5834 = vmatpush1.msra.mxu0 %v5338
    %5835 = vmatprep.subr.mxu0 0.0
    %5836 = vmatpush1.msra.mxu0 %v5339
    %5837 = vmatprep.subr.mxu0 0.0
    %5838 = vmatpush1.msra.mxu0 %v5340
    %5839 = vmatprep.subr.mxu0 0.0
    %5840 = vmatpush1.msra.mxu0 %v5341
    %5841 = vmatprep.subr.mxu0 0.0
    %5842 = vmatpush1.msra.mxu0 %v5342
    %5843 = vmatprep.subr.mxu0 0.0
    %5844 = vmatpush1.msra.mxu0 %v5343
    %5845 = vmatprep.subr.mxu0 0.0
    %5846 = vmatpush1.msra.mxu0 %v5344
    %5847 = vmatprep.subr.mxu0 0.0
    %5848 = vmatpush1.msra.mxu0 %v5345
    %5849 = vmatprep.subr.mxu0 0.0
    %5850 = vmatpush1.msra.mxu0 %v5346
    %5851 = vmatprep.subr.mxu0 0.0
    %5852 = vmatpush1.msra.mxu0 %v5347
    %5853 = vmatprep.subr.mxu0 0.0
    %5854 = vmatpush1.msra.mxu0 %v5348
    %5855 = vmatprep.subr.mxu0 0.0
    %5856 = vmatpush1.msra.mxu0 %v5349
    %5857 = vmatprep.subr.mxu0 0.0
    %5858 = vmatpush1.msra.mxu0 %v5350
    %5859 = vmatprep.subr.mxu0 0.0
    %5860 = vmatpush1.msra.mxu0 %v5351
    %5861 = vmatprep.subr.mxu0 0.0
    %5862 = vmatpush1.msra.mxu0 %v5352
    %5863 = vmatprep.subr.mxu0 0.0
    %5864 = vmatpush1.msra.mxu0 %v5353
    %5865 = vmatprep.subr.mxu0 0.0
    %5866 = vmatpush1.msra.mxu0 %v5354
    %5867 = vmatprep.subr.mxu0 0.0
    %5868 = vmatpush1.msra.mxu0 %v5355
    %5869 = vmatprep.subr.mxu0 0.0
    %5870 = vmatpush1.msra.mxu0 %v5356
    %5871 = vmatprep.subr.mxu0 0.0
    %5872 = vmatpush1.msra.mxu0 %v5357
    %5873 = vmatprep.subr.mxu0 0.0
    %5874 = vmatpush1.msra.mxu0 %v5358
    %5875 = vmatprep.subr.mxu0 0.0
    %5876 = vmatpush1.msra.mxu0 %v5359
    %5877 = vmatprep.subr.mxu0 0.0
    %5878 = vmatpush1.msra.mxu0 %v5360
    %5879 = vmatprep.subr.mxu0 0.0
    %5880 = vmatpush1.msra.mxu0 %v5361
    %5881 = vmatprep.subr.mxu0 0.0
    %5882 = vmatpush1.msra.mxu0 %v5362
    %5883 = vmatprep.subr.mxu0 0.0
    %5884 = vmatpush1.msra.mxu0 %v5363
    %5885 = vmatprep.subr.mxu0 0.0
    %5886 = vmatpush1.msra.mxu0 %v5364
    %5887 = vmatprep.subr.mxu0 0.0
    %5888 = vmatpush1.msra.mxu0 %v5365
    %5889 = vmatprep.mubr.f32.mxu0 %v5131
    %5890 = vmatmul.mubr.f32.gmra.mrb[0].mxu0 %v5128
    %v5891 = vpop.f32.mrb[0].mxu0
    %v5892 = vadd.f32 %v5822, %v5891
    %v5893 = vpop.f32.mrb[0].mxu0
    %5894 = vdwg.mxu0
    %5895 = vmatprep.subr.mxu0 0.0
    %5896 = vmatpush1.msra.mxu0 %v5366
    %5897 = vmatprep.subr.mxu0 0.0
    %5898 = vmatpush1.msra.mxu0 %v5367
    %5899 = vmatprep.subr.mxu0 0.0
    %5900 = vmatpush1.msra.mxu0 %v5368
    %5901 = vmatprep.subr.mxu0 0.0
    %5902 = vmatpush1.msra.mxu0 %v5369
    %5903 = vmatprep.subr.mxu0 0.0
    %5904 = vmatpush1.msra.mxu0 %v5370
    %5905 = vmatprep.subr.mxu0 0.0
    %5906 = vmatpush1.msra.mxu0 %v5371
    %5907 = vmatprep.subr.mxu0 0.0
    %5908 = vmatpush1.msra.mxu0 %v5372
    %5909 = vmatprep.subr.mxu0 0.0
    %5910 = vmatpush1.msra.mxu0 %v5373
    %5911 = vmatprep.subr.mxu0 0.0
    %5912 = vmatpush1.msra.mxu0 %v5374
    %5913 = vmatprep.subr.mxu0 0.0
    %5914 = vmatpush1.msra.mxu0 %v5375
    %5915 = vmatprep.subr.mxu0 0.0
    %5916 = vmatpush1.msra.mxu0 %v5376
    %5917 = vmatprep.subr.mxu0 0.0
    %5918 = vmatpush1.msra.mxu0 %v5377
    %5919 = vmatprep.subr.mxu0 0.0
    %5920 = vmatpush1.msra.mxu0 %v5378
    %5921 = vmatprep.subr.mxu0 0.0
    %5922 = vmatpush1.msra.mxu0 %v5379
    %5923 = vmatprep.subr.mxu0 0.0
    %5924 = vmatpush1.msra.mxu0 %v5380
    %5925 = vmatprep.subr.mxu0 0.0
    %5926 = vmatpush1.msra.mxu0 %v5381
    %5927 = vmatprep.subr.mxu0 0.0
    %5928 = vmatpush1.msra.mxu0 %v5382
    %5929 = vmatprep.subr.mxu0 0.0
    %5930 = vmatpush1.msra.mxu0 %v5383
    %5931 = vmatprep.subr.mxu0 0.0
    %5932 = vmatpush1.msra.mxu0 %v5384
    %5933 = vmatprep.subr.mxu0 0.0
    %5934 = vmatpush1.msra.mxu0 %v5385
    %5935 = vmatprep.subr.mxu0 0.0
    %5936 = vmatpush1.msra.mxu0 %v5386
    %5937 = vmatprep.subr.mxu0 0.0
    %5938 = vmatpush1.msra.mxu0 %v5387
    %5939 = vmatprep.subr.mxu0 0.0
    %5940 = vmatpush1.msra.mxu0 %v5388
    %5941 = vmatprep.subr.mxu0 0.0
    %5942 = vmatpush1.msra.mxu0 %v5389
    %5943 = vmatprep.subr.mxu0 0.0
    %5944 = vmatpush1.msra.mxu0 %v5390
    %5945 = vmatprep.subr.mxu0 0.0
    %5946 = vmatpush1.msra.mxu0 %v5391
    %5947 = vmatprep.subr.mxu0 0.0
    %5948 = vmatpush1.msra.mxu0 %v5392
    %5949 = vmatprep.subr.mxu0 0.0
    %5950 = vmatpush1.msra.mxu0 %v5393
    %5951 = vmatprep.subr.mxu0 0.0
    %5952 = vmatpush1.msra.mxu0 %v5394
    %5953 = vmatprep.subr.mxu0 0.0
    %5954 = vmatpush1.msra.mxu0 %v5395
    %5955 = vmatprep.subr.mxu0 0.0
    %5956 = vmatpush1.msra.mxu0 %v5396
    %5957 = vmatprep.subr.mxu0 0.0
    %5958 = vmatpush1.msra.mxu0 %v5397
    %5959 = vmatprep.mubr.f32.mxu0 %v5139
    %5960 = vmatmul.mubr.f32.gmra.mrb[0].mxu0 %v5136
    %v5961 = vpop.f32.mrb[0].mxu0
    %v5962 = vadd.f32 %v5892, %v5961
    %v5963 = vpop.f32.mrb[0].mxu0
    %5964 = vdwg.mxu0
    %v5965 = vmax.f32 %v5962, 0.0
    %v5966 = vld [vmem:[%s7] sm:$0xff]
    %v5967 = vld [vmem:[%s7 + $0x8] sm:$0xff]
    %v5968 = vld [vmem:[%s7 + $0x10] sm:$0xff]
    %v5969 = vld [vmem:[%s7 + $0x18] sm:$0xff]
    %v5970 = vld [vmem:[%s7 + $0x20] sm:$0xff]
    %v5971 = vld [vmem:[%s7 + $0x28] sm:$0xff]
    %v5972 = vld [vmem:[%s7 + $0x30] sm:$0xff]
    %v5973 = vld [vmem:[%s7 + $0x38] sm:$0xff]
    %v5974 = vld [vmem:[%s7 + $0x40] sm:$0xff]
    %v5975 = vld [vmem:[%s7 + $0x48] sm:$0xff]
    %v5976 = vld [vmem:[%s7 + $0x50] sm:$0xff]
    %v5977 = vld [vmem:[%s7 + $0x58] sm:$0xff]
    %v5978 = vld [vmem:[%s7 + $0x60] sm:$0xff]
    %v5979 = vld [vmem:[%s7 + $0x68] sm:$0xff]
    %v5980 = vld [vmem:[%s7 + $0x70] sm:$0xff]
    %v5981 = vld [vmem:[%s7 + $0x78] sm:$0xff]
    %v5982 = vld [vmem:[%s8] sm:$0x1]
    %v5984 = vlaneseq
    %v5985 = vshrl.u32 %v5984, 7
    %v5986 = vsub.s32 0, %v5985
    %v5987 = vrot.slane %v5982, %v5986
    %5989 = vmatprep.subr.mxu0 0.0
    %5990 = vmatpush1.msra.mxu0 %v5966
    %5991 = vmatprep.subr.mxu0 0.0
    %5992 = vmatpush1.msra.mxu0 %v5967
    %5993 = vmatprep.subr.mxu0 0.0
    %5994 = vmatpush1.msra.mxu0 %v5968
    %5995 = vmatprep.subr.mxu0 0.0
    %5996 = vmatpush1.msra.mxu0 %v5969
    %5997 = vmatprep.subr.mxu0 0.0
    %5998 = vmatpush1.msra.mxu0 %v5970
    %5999 = vmatprep.subr.mxu0 0.0
    %6000 = vmatpush1.msra.mxu0 %v5971
    %6001 = vmatprep.subr.mxu0 0.0
    %6002 = vmatpush1.msra.mxu0 %v5972
    %6003 = vmatprep.subr.mxu0 0.0
    %6004 = vmatpush1.msra.mxu0 %v5973
    %6005 = vmatprep.subr.mxu0 0.0
    %6006 = vmatpush1.msra.mxu0 %v5974
    %6007 = vmatprep.subr.mxu0 0.0
    %6008 = vmatpush1.msra.mxu0 %v5975
    %6009 = vmatprep.subr.mxu0 0.0
    %6010 = vmatpush1.msra.mxu0 %v5976
    %6011 = vmatprep.subr.mxu0 0.0
    %6012 = vmatpush1.msra.mxu0 %v5977
    %6013 = vmatprep.subr.mxu0 0.0
    %6014 = vmatpush1.msra.mxu0 %v5978
    %6015 = vmatprep.subr.mxu0 0.0
    %6016 = vmatpush1.msra.mxu0 %v5979
    %6017 = vmatprep.subr.mxu0 0.0
    %6018 = vmatpush1.msra.mxu0 %v5980
    %6019 = vmatprep.subr.mxu0 0.0
    %6020 = vmatpush1.msra.mxu0 %v5981
    %6021 = vmatprep.subr.mxu0 0.0
    %6022 = vmatpush1.msra.mxu0 0.0
    %6023 = vmatprep.subr.mxu0 0.0
    %6024 = vmatpush1.msra.mxu0 0.0
    %6025 = vmatprep.subr.mxu0 0.0
    %6026 = vmatpush1.msra.mxu0 0.0
    %6027 = vmatprep.subr.mxu0 0.0
    %6028 = vmatpush1.msra.mxu0 0.0
    %6029 = vmatprep.subr.mxu0 0.0
    %6030 = vmatpush1.msra.mxu0 0.0
    %6031 = vmatprep.subr.mxu0 0.0
    %6032 = vmatpush1.msra.mxu0 0.0
    %6033 = vmatprep.subr.mxu0 0.0
    %6034 = vmatpush1.msra.mxu0 0.0
    %6035 = vmatprep.subr.mxu0 0.0
    %6036 = vmatpush1.msra.mxu0 0.0
    %6037 = vmatprep.subr.mxu0 0.0
    %6038 = vmatpush1.msra.mxu0 0.0
    %6039 = vmatprep.subr.mxu0 0.0
    %6040 = vmatpush1.msra.mxu0 0.0
    %6041 = vmatprep.subr.mxu0 0.0
    %6042 = vmatpush1.msra.mxu0 0.0
    %6043 = vmatprep.subr.mxu0 0.0
    %6044 = vmatpush1.msra.mxu0 0.0
    %6045 = vmatprep.subr.mxu0 0.0
    %6046 = vmatpush1.msra.mxu0 0.0
    %6047 = vmatprep.subr.mxu0 0.0
    %6048 = vmatpush1.msra.mxu0 0.0
    %6049 = vmatprep.subr.mxu0 0.0
    %6050 = vmatpush1.msra.mxu0 0.0
    %6051 = vmatprep.subr.mxu0 0.0
    %6052 = vmatpush1.msra.mxu0 0.0
    %6053 = vmatprep.mubr.f32.mxu0 0.0
    %6054 = vmatmul.mubr.f32.gmra.mrb[0].mxu0 %v5965
    %v6055 = vpop.f32.mrb[0].mxu0
    %v6056 = vadd.f32 %v5987, %v6055
    %v6057 = vpop.f32.mrb[0].mxu0
    %6058 = vdwg.mxu0
    %v6059 = vlaneseq
    %v6060 = vand.u32 %v6059, 127
    %vm6061 = vcmp.lt.s32.totalorder %v6060, 3
    %v6062 = vsel %vm6061, %v6056, -1e+30
    %vm6063 = vcmask 1041408
    %v6064 = vsel %vm6063, %v6062, -inf
    %6065 = vmax.xlane.f32.xlu0 %v6064
    %v6066 = vpop.xlane.xlu0 %6065
    %v6067 = vsub.f32 %v6062, %v6066
    %v6068 = vmul.f32 %v6067, 1.442695
    %v6069 = vpow.pop %v6068
    %v6070 = vsel %vm6063, %v6069, 0.0
    %6071 = vadd.xlane.f32.xlu0 %v6070
    %v6072 = vpop.xlane.xlu0 %6071
    %v6073 = vrcp.pop %v6072
    %v6074 = vmul.f32 %v6069, %v6073
    %6075 = vst [vmem:[#allocation2] sm:$0x3] %v6074
    // Predicated region
    $region38: #{policy_forward.1} parent=1 // pred_check
      _
    $region39: #{policy_forward.1} parent=1 // pred_check_branch
      %6077 = sbr.rel (0) target = $region41
    $region40: #{policy_forward.1} parent=1 // pred_region
      %s6079 = ssub.s32 32, 32
      %6080 = vsyncadd [#allocation3], %s6079
      %s6082 = sshll.u32 [#allocation2], 4
      %s6083 = int_to_ptr.vmem [resolvable:$true] %s6082
      %6085 = dma.vmem_to_hbm [thread:$0]  %s6083, 32, %s9, [#allocation3]
    $region41: #{policy_forward.1} parent=1 // pred_fallthru
      _
    // Predicated region
    $region42: #{policy_forward.1} parent=1 // pred_check
      _
    $region43: #{policy_forward.1} parent=1 // pred_check_branch
      %6087 = sbr.rel (0) target = $region45
    $region44: #{policy_forward.1} parent=1 // pred_region
      %6088 = dma.done [#allocation3], 32
    $region45: #{policy_forward.1} parent=1 // pred_fallthru
      _
    %6089 = vsyncpa [#allocation3], 1

</llo_original>
